<compile_context>
chip_gen: v5e
topology: v5e:2x2
jax: 0.10.0
libtpu: 0.0.40
codegen_flags: <defaults>
</compile_context>

<pallas_src>
import math
import functools

import jax
import jax.numpy as jnp
from jax import lax
from jax.experimental import pallas as pl
from jax.experimental.pallas import tpu as pltpu

EPS = 1e-8  # asteroid gLN epsilon


# ----------------------------------------------------------------------------
# Pallas kernel: full transformer layer for ONE batch element, (E, T) layout.
# ----------------------------------------------------------------------------
def _sepformer_layer_kernel(n_heads,
                            x_ref, pe_ref, wqkv_ref, bqkv_ref, wo_ref,
                            vec_ref, w1_ref, b1_ref, w2_ref,
                            o_ref):
    f32 = jnp.float32
    bf16 = jnp.bfloat16

    E, T = x_ref.shape            # batch dim squeezed by the BlockSpec
    H = n_heads
    Dh = E // H

    x = x_ref[...].astype(f32)    # (E, T) fp32 working copy
    x_pos = x + pe_ref[...]       # positional encoding (dropout = 0)

    # packed per-channel vectors: columns = [gamma1, beta1, gamma2, beta2, bo, b2]
    vec = vec_ref[...]            # (E, 6) fp32
    g1, be1 = vec[:, 0:1], vec[:, 1:2]
    g2, be2 = vec[:, 2:3], vec[:, 3:4]
    bo, b2 = vec[:, 4:5], vec[:, 5:6]

    def gln(z, g, b):
        # single-pass global LayerNorm statistics over (channels, time)
        mu = jnp.mean(z, axis=(0, 1), keepdims=True)
        ex2 = jnp.mean(z * z, axis=(0, 1), keepdims=True)
        var = jnp.maximum(ex2 - mu * mu, 0.0)     # clamp fp32 cancellation
        return (z - mu) * lax.rsqrt(var + EPS) * g + b

    # ---- gLN (norm_mha) ----
    xn = gln(x_pos, g1, be1)                     # (E, T) fp32
    xn_bf = xn.astype(bf16)

    # ---- fused QKV projection: (3E, E) @ (E, T) -> (3E, T) ----
    # 1/sqrt(Dh) is already folded into the Q rows of wqkv / bqkv.
    qkv = jnp.dot(wqkv_ref[...], xn_bf,
                  preferred_element_type=f32) + bqkv_ref[...]          # (3E, T)

    # head split along the channel (sublane) axis — cheap, no lane relayout
    q = qkv[0:E, :].reshape(H, Dh, T).astype(bf16)
    k = qkv[E:2 * E, :].reshape(H, Dh, T).astype(bf16)
    v = qkv[2 * E:3 * E, :].reshape(H, Dh, T).astype(bf16)

    # ---- scores: (H, Tq, Tk), batched over heads ----
    s = lax.dot_general(q, k, (((1,), (1,)), ((0,), (0,))),
                        preferred_element_type=f32)
    s = s - jnp.max(s, axis=-1, keepdims=True)
    # NOTE: on v6e/v7x the exponent could be evaluated in bf16 to double EUP
    # throughput; kept fp32 so the same kernel runs on v5e (no bf16 EUP).
    p = jnp.exp(s)
    p = p * pl.reciprocal(jnp.sum(p, axis=-1, keepdims=True), approx=True)

    # ---- context, already channels-major: (H, Dh, Tq) ----
    ctx = lax.dot_general(v, p.astype(bf16), (((2,), (2,)), ((0,), (0,))),
                          preferred_element_type=f32)
    ctx = ctx.reshape(E, T).astype(bf16)          # merge heads back to channels

    # ---- single output projection: (E, E) @ (E, T) ----
    attn = jnp.dot(wo_ref[...], ctx, preferred_element_type=f32) + bo   # (E, T)

    # ---- residual 1 ----
    x2 = attn + x_pos                              # x_2_prime, fp32

    # ---- gLN (norm_ff) ----
    x2n = gln(x2, g2, be2).astype(bf16)

    # ---- feed-forward: linear2(relu(linear1(.))) ----
    h1 = jnp.dot(w1_ref[...], x2n, preferred_element_type=f32) + b1_ref[...]   # (F, T)
    h1 = jnp.maximum(h1, 0.0).astype(bf16)
    ff = jnp.dot(w2_ref[...], h1, preferred_element_type=f32) + b2             # (E, T)

    # ---- residual 2 + 3 ----
    o_ref[...] = (ff + x2 + x).astype(o_ref.dtype)


# ----------------------------------------------------------------------------
# Glue: positional encoding table, parameter init, pallas_call wrapper.
# ----------------------------------------------------------------------------
def positional_encoding_table(seq_len, d_model):
    position = jnp.arange(seq_len, dtype=jnp.float32)[:, None]
    div_term = jnp.exp(jnp.arange(0, d_model, 2, dtype=jnp.float32)
                       * (-math.log(10000.0) / d_model))
    pe = jnp.zeros((seq_len, d_model), dtype=jnp.float32)
    pe = pe.at[:, 0::2].set(jnp.sin(position * div_term))
    pe = pe.at[:, 1::2].set(jnp.cos(position * div_term))
    return pe


def make_params(key, embed_dim, dim_ff):
    """Deterministic synthetic parameters, PyTorch (out_features, in_features)
    orientation, shapes matching the PyTorch module."""
    E, F = embed_dim, dim_ff
    ks = jax.random.split(key, 6)

    def lin_w(k, fan_in, shape):
        # matches _init_weights: uniform(-1/in_features, 1/in_features)
        return jax.random.uniform(k, shape, jnp.float32,
                                  minval=-1.0 / fan_in, maxval=1.0 / fan_in)

    return dict(
        w_qkv=lin_w(ks[0], E, (3 * E, E)),               # MHA in_proj_weight
        b_qkv=jnp.zeros((3 * E,), jnp.float32),
        w_out=lin_w(ks[1], E, (E, E)),                   # MHA out_proj.weight
        b_out=jnp.zeros((E,), jnp.float32),
        gamma1=jnp.ones((E,), jnp.float32), beta1=jnp.zeros((E,), jnp.float32),
        gamma2=jnp.ones((E,), jnp.float32), beta2=jnp.zeros((E,), jnp.float32),
        w1=lin_w(ks[2], E, (F, E)),
        b1=jax.random.uniform(ks[3], (F,), jnp.float32, -0.05, 0.05),
        w2=lin_w(ks[4], F, (E, F)),
        b2=jax.random.uniform(ks[5], (E,), jnp.float32, -0.05, 0.05),
    )


def sepformer_transformer_layer(x_bct, params, n_heads):
    """x_bct: (B, embed_dim, T)  ->  (B, embed_dim, T) bf16  (PyTorch layout)."""
    B, E, T = x_bct.shape
    F = params["w1"].shape[0]
    assert E % n_heads == 0
    Dh = E // n_heads
    # Dh multiple of 8 keeps the in-kernel head split a pure sublane regrouping.
    assert Dh % 8 == 0, "head_dim should be a multiple of 8"
    scale = 1.0 / math.sqrt(Dh)
    bf16 = jnp.bfloat16

    # bf16 activations in HBM (the demo already supplies bf16, so no extra copy).
    if x_bct.dtype != bf16:
        x_bct = x_bct.astype(bf16)

    # Positional table in channels-major layout (weight-like, computed once).
    pe_t = positional_encoding_table(T, E).T.astype(jnp.float32)        # (E, T)

    # Fold 1/sqrt(Dh) into the Q rows of the fused in-projection.
    qscale = jnp.concatenate([jnp.full((E,), scale, jnp.float32),
                              jnp.ones((2 * E,), jnp.float32)])
    wqkv = (params["w_qkv"] * qscale[:, None]).astype(bf16)             # (3E, E)
    bqkv = (params["b_qkv"] * qscale)[:, None].astype(jnp.float32)      # (3E, 1)
    wo = params["w_out"].astype(bf16)                                   # (E, E)
    w1 = params["w1"].astype(bf16)                                      # (F, E)
    w2 = params["w2"].astype(bf16)                                      # (E, F)
    b1 = params["b1"][:, None].astype(jnp.float32)                      # (F, 1)
    # packed per-channel vectors (fewer refs / DMA descriptors)
    vec_e = jnp.stack([params["gamma1"], params["beta1"],
                       params["gamma2"], params["beta2"],
                       params["b_out"], params["b2"]],
                      axis=1).astype(jnp.float32)                       # (E, 6)

    weight_args = (pe_t, wqkv, bqkv, wo, vec_e, w1, b1, w2)

    x_spec = pl.BlockSpec((None, E, T), lambda b: (b, 0, 0))
    out_spec = pl.BlockSpec((None, E, T), lambda b: (b, 0, 0))
    kernel = functools.partial(_sepformer_layer_kernel, n_heads)

    def run(weight_pipeline_mode):
        def wspec(a):
            if weight_pipeline_mode is None:
                return pl.BlockSpec(a.shape, lambda b: (0, 0))
            return pl.BlockSpec(a.shape, lambda b: (0, 0),
                                pipeline_mode=weight_pipeline_mode)

        in_specs = [x_spec] + [wspec(a) for a in weight_args]
        f = pl.pallas_call(
            kernel,
            out_shape=jax.ShapeDtypeStruct((B, E, T), bf16),
            grid_spec=pltpu.PrefetchScalarGridSpec(
                num_scalar_prefetch=0,
                grid=(B,),
                in_specs=in_specs,
                out_specs=out_spec,
            ),
            compiler_params=pltpu.CompilerParams(
                dimension_semantics=("parallel",),
                vmem_limit_bytes=32 * 1024 * 1024,
            ),
        )
        out = f(x_bct, *weight_args)
        return jax.block_until_ready(out)

    try:
        # Grid-invariant weights single-buffered (saves their duplicate VMEM
        # copy; mainly relevant for v7x's 64 MiB VMEM at realistic sizes).
        return run(pl.Buffered(1))
    except Exception:
        # Fallback for JAX versions where pallas_call does not honor
        # single-buffered pipeline_mode on BlockSpecs.
        return run(None)


# ----------------------------------------------------------------------------
# Pure-JAX fp32 reference (same math) for a correctness sanity check.
# ----------------------------------------------------------------------------
def reference(x_bct, params, n_heads):
    B, E, T = x_bct.shape
    H = n_heads
    Dh = E // H
    x = jnp.transpose(x_bct.astype(jnp.float32), (0, 2, 1))    # (B, T, E)
    pe = positional_encoding_table(T, E)[None]
    x_pos = x + pe

    def gln(z, g, b):
        mu = jnp.mean(z, axis=(1, 2), keepdims=True)
        var = jnp.mean((z - mu) ** 2, axis=(1, 2), keepdims=True)
        return (z - mu) / jnp.sqrt(var + EPS) * g + b

    xn = gln(x_pos, params["gamma1"], params["beta1"])
    qkv = xn @ params["w_qkv"].T + params["b_qkv"]
    q, k, v = jnp.split(qkv, 3, axis=-1)
    qh = q.reshape(B, T, H, Dh).transpose(0, 2, 1, 3) / math.sqrt(Dh)
    kh = k.reshape(B, T, H, Dh).transpose(0, 2, 1, 3)
    vh = v.reshape(B, T, H, Dh).transpose(0, 2, 1, 3)
    s = jnp.einsum("bhqd,bhkd->bhqk", qh, kh)
    p = jax.nn.softmax(s, axis=-1)
    ctx = jnp.einsum("bhqk,bhkd->bhqd", p, vh).transpose(0, 2, 1, 3).reshape(B, T, E)
    attn = ctx @ params["w_out"].T + params["b_out"]
    x2 = attn + x_pos
    x2n = gln(x2, params["gamma2"], params["beta2"])
    ff = jnp.maximum(x2n @ params["w1"].T + params["b1"], 0.0) @ params["w2"].T + params["b2"]
    out = ff + x2 + x
    return jnp.transpose(out, (0, 2, 1))


if __name__ == "__main__":
    # Small demo shapes.  T = 128 keeps every activation load/store lane-dense
    # (time is the lane axis of the kernel's (E, T) tiles); B = 2 gives two
    # parallel grid steps (both v7x TensorCores busy).
    B, E, T = 2, 64, 128       # batch, embed_dim (channels), time (sequence)
    n_heads = 4
    dim_ff = 128

    key = jax.random.PRNGKey(0)
    k_x, k_p = jax.random.split(key)
    # bf16 activations end-to-end in HBM (halves activation DMA bytes).
    x = jax.random.normal(k_x, (B, E, T), dtype=jnp.float32).astype(jnp.bfloat16)
    params = make_params(k_p, E, dim_ff)

    out = sepformer_transformer_layer(x, params, n_heads)
    ref = jax.block_until_ready(reference(x, params, n_heads))

    assert out.shape == (B, E, T), out.shape
    assert out.dtype == jnp.bfloat16, out.dtype
    out_f32 = out.astype(jnp.float32)
    max_err = jnp.max(jnp.abs(out_f32 - ref))
    # bf16 input/output plus bf16 MXU operands with fp32 accumulation: |out| is
    # at most ~8 here, so the bf16 output store alone bounds the abs error at
    # roughly 8 * 2^-9 ~= 1.6e-2; 3e-2 leaves margin for the matmul rounding.
    assert jnp.allclose(out_f32, ref, atol=3e-2, rtol=3e-2), \
        f"max abs err {max_err}"

    print("KERNEL_OK")
</pallas_src>

<mosaic_0001>
module attributes {stable_mosaic.version = 11 : i64} {
  func.func @_sepformer_layer_kernel(%arg0: i32, %arg1: memref<1x64x128xbf16, #tpu.memory_space<vmem>>, %arg2: memref<64x128xf32, #tpu.memory_space<vmem>>, %arg3: memref<192x64xbf16, #tpu.memory_space<vmem>>, %arg4: memref<192x1xf32, #tpu.memory_space<vmem>>, %arg5: memref<64x64xbf16, #tpu.memory_space<vmem>>, %arg6: memref<64x6xf32, #tpu.memory_space<vmem>>, %arg7: memref<128x64xbf16, #tpu.memory_space<vmem>>, %arg8: memref<128x1xf32, #tpu.memory_space<vmem>>, %arg9: memref<64x128xbf16, #tpu.memory_space<vmem>>, %arg10: memref<1x64x128xbf16, #tpu.memory_space<vmem>>) attributes {dimension_semantics = [#tpu.dimension_semantics<parallel>], iteration_bounds = array<i64: 2>, scalar_prefetch = 0 : i64, scratch_operands = 0 : i64, tpu.core_type = #tpu.core_type<tc>, window_params = [{transform_indices = @transform_0, window_bounds = array<i64: 1, 64, 128>}, {pipeline_mode = #tpu.pipeline_mode<synchronous>, transform_indices = @transform_1, window_bounds = array<i64: 64, 128>}, {pipeline_mode = #tpu.pipeline_mode<synchronous>, transform_indices = @transform_2, window_bounds = array<i64: 192, 64>}, {pipeline_mode = #tpu.pipeline_mode<synchronous>, transform_indices = @transform_3, window_bounds = array<i64: 192, 1>}, {pipeline_mode = #tpu.pipeline_mode<synchronous>, transform_indices = @transform_4, window_bounds = array<i64: 64, 64>}, {pipeline_mode = #tpu.pipeline_mode<synchronous>, transform_indices = @transform_5, window_bounds = array<i64: 64, 6>}, {pipeline_mode = #tpu.pipeline_mode<synchronous>, transform_indices = @transform_6, window_bounds = array<i64: 128, 64>}, {pipeline_mode = #tpu.pipeline_mode<synchronous>, transform_indices = @transform_7, window_bounds = array<i64: 128, 1>}, {pipeline_mode = #tpu.pipeline_mode<synchronous>, transform_indices = @transform_8, window_bounds = array<i64: 64, 128>}, {transform_indices = @transform_9, window_bounds = array<i64: 1, 64, 128>}]} {
    %c0 = arith.constant 0 : index
    %c0_0 = arith.constant 0 : index
    %c0_1 = arith.constant 0 : index
    %0 = vector.load %arg1[%c0, %c0_0, %c0_1] : memref<1x64x128xbf16, #tpu.memory_space<vmem>>, vector<1x64x128xbf16>
    %1 = vector.shape_cast %0 : vector<1x64x128xbf16> to vector<64x128xbf16>
    %2 = arith.extf %1 : vector<64x128xbf16> to vector<64x128xf32>
    %c0_2 = arith.constant 0 : index
    %c0_3 = arith.constant 0 : index
    %3 = vector.load %arg2[%c0_2, %c0_3] : memref<64x128xf32, #tpu.memory_space<vmem>>, vector<64x128xf32>
    %4 = arith.addf %2, %3 : vector<64x128xf32>
    %c0_4 = arith.constant 0 : index
    %c0_5 = arith.constant 0 : index
    %5 = vector.load %arg6[%c0_4, %c0_5] : memref<64x6xf32, #tpu.memory_space<vmem>>, vector<64x6xf32>
    %6 = vector.extract_strided_slice %5 {offsets = [0, 0], sizes = [64, 1], strides = [1, 1]} : vector<64x6xf32> to vector<64x1xf32>
    %7 = vector.extract_strided_slice %5 {offsets = [0, 1], sizes = [64, 1], strides = [1, 1]} : vector<64x6xf32> to vector<64x1xf32>
    %8 = vector.extract_strided_slice %5 {offsets = [0, 2], sizes = [64, 1], strides = [1, 1]} : vector<64x6xf32> to vector<64x1xf32>
    %9 = vector.extract_strided_slice %5 {offsets = [0, 3], sizes = [64, 1], strides = [1, 1]} : vector<64x6xf32> to vector<64x1xf32>
    %10 = vector.extract_strided_slice %5 {offsets = [0, 4], sizes = [64, 1], strides = [1, 1]} : vector<64x6xf32> to vector<64x1xf32>
    %11 = vector.extract_strided_slice %5 {offsets = [0, 5], sizes = [64, 1], strides = [1, 1]} : vector<64x6xf32> to vector<64x1xf32>
    %12 = vector.shape_cast %4 : vector<64x128xf32> to vector<1x64x128xf32>
    %cst = arith.constant dense<0.000000e+00> : vector<1xf32>
    %13 = vector.multi_reduction <add>, %12, %cst [1, 2] : vector<1x64x128xf32> to vector<1xf32>
    %14 = vector.shape_cast %13 : vector<1xf32> to vector<1x1x1xf32>
    %15 = vector.extract %14[0, 0, 0] : f32 from vector<1x1x1xf32>
    %16 = vector.broadcast %15 : f32 to vector<1x1xf32>
    %cst_6 = arith.constant 8.192000e+03 : f32
    %17 = vector.broadcast %cst_6 : f32 to vector<1x1xf32>
    %18 = arith.divf %16, %17 : vector<1x1xf32>
    %19 = arith.mulf %4, %4 : vector<64x128xf32>
    %20 = vector.shape_cast %19 : vector<64x128xf32> to vector<1x64x128xf32>
    %cst_7 = arith.constant dense<0.000000e+00> : vector<1xf32>
    %21 = vector.multi_reduction <add>, %20, %cst_7 [1, 2] : vector<1x64x128xf32> to vector<1xf32>
    %22 = vector.shape_cast %21 : vector<1xf32> to vector<1x1x1xf32>
    %23 = vector.extract %22[0, 0, 0] : f32 from vector<1x1x1xf32>
    %24 = vector.broadcast %23 : f32 to vector<1x1xf32>
    %cst_8 = arith.constant 8.192000e+03 : f32
    %25 = vector.broadcast %cst_8 : f32 to vector<1x1xf32>
    %26 = arith.divf %24, %25 : vector<1x1xf32>
    %27 = arith.mulf %18, %18 : vector<1x1xf32>
    %28 = arith.subf %26, %27 : vector<1x1xf32>
    %cst_9 = arith.constant 0.000000e+00 : f32
    %29 = vector.broadcast %cst_9 : f32 to vector<1x1xf32>
    %30 = arith.maximumf %28, %29 : vector<1x1xf32>
    %31 = vector.broadcast %18 : vector<1x1xf32> to vector<64x128xf32>
    %32 = arith.subf %4, %31 : vector<64x128xf32>
    %cst_10 = arith.constant 9.99999993E-9 : f32
    %33 = vector.broadcast %cst_10 : f32 to vector<1x1xf32>
    %34 = arith.addf %30, %33 : vector<1x1xf32>
    %35 = math.rsqrt %34 : vector<1x1xf32>
    %36 = vector.broadcast %35 : vector<1x1xf32> to vector<64x128xf32>
    %37 = arith.mulf %32, %36 : vector<64x128xf32>
    %38 = vector.broadcast %6 : vector<64x1xf32> to vector<64x128xf32>
    %39 = arith.mulf %37, %38 : vector<64x128xf32>
    %40 = vector.broadcast %7 : vector<64x1xf32> to vector<64x128xf32>
    %41 = arith.addf %39, %40 : vector<64x128xf32>
    %42 = arith.truncf %41 : vector<64x128xf32> to vector<64x128xbf16>
    %c0_11 = arith.constant 0 : index
    %c0_12 = arith.constant 0 : index
    %43 = vector.load %arg3[%c0_11, %c0_12] : memref<192x64xbf16, #tpu.memory_space<vmem>>, vector<192x64xbf16>
    %cst_13 = arith.constant dense<0.000000e+00> : vector<192x128xf32>
    %44 = tpu.matmul %43, %42, %cst_13 {dimension_numbers = #tpu.dot_dimension_numbers<[1], [0], [0], [1], [0, 0, 1, 1], [], []>} : vector<192x64xbf16>, vector<64x128xbf16>, vector<192x128xf32> -> vector<192x128xf32>
    %c0_14 = arith.constant 0 : index
    %c0_15 = arith.constant 0 : index
    %45 = vector.load %arg4[%c0_14, %c0_15] : memref<192x1xf32, #tpu.memory_space<vmem>>, vector<192x1xf32>
    %46 = vector.broadcast %45 : vector<192x1xf32> to vector<192x128xf32>
    %47 = arith.addf %44, %46 : vector<192x128xf32>
    %48 = vector.extract_strided_slice %47 {offsets = [0, 0], sizes = [64, 128], strides = [1, 1]} : vector<192x128xf32> to vector<64x128xf32>
    %49 = vector.shape_cast %48 : vector<64x128xf32> to vector<4x16x128xf32>
    %50 = arith.truncf %49 : vector<4x16x128xf32> to vector<4x16x128xbf16>
    %51 = vector.extract_strided_slice %47 {offsets = [64, 0], sizes = [64, 128], strides = [1, 1]} : vector<192x128xf32> to vector<64x128xf32>
    %52 = vector.shape_cast %51 : vector<64x128xf32> to vector<4x16x128xf32>
    %53 = arith.truncf %52 : vector<4x16x128xf32> to vector<4x16x128xbf16>
    %54 = vector.extract_strided_slice %47 {offsets = [128, 0], sizes = [64, 128], strides = [1, 1]} : vector<192x128xf32> to vector<64x128xf32>
    %55 = vector.shape_cast %54 : vector<64x128xf32> to vector<4x16x128xf32>
    %56 = arith.truncf %55 : vector<4x16x128xf32> to vector<4x16x128xbf16>
    %cst_16 = arith.constant dense<0.000000e+00> : vector<4x128x128xf32>
    %57 = tpu.matmul %50, %53, %cst_16 {dimension_numbers = #tpu.dot_dimension_numbers<[1], [1], [2], [2], [0, 0, 0, 2, 1, 2], [0], [0]>} : vector<4x16x128xbf16>, vector<4x16x128xbf16>, vector<4x128x128xf32> -> vector<4x128x128xf32>
    %cst_17 = arith.constant dense<0xFF800000> : vector<4x128xf32>
    %58 = vector.multi_reduction <maximumf>, %57, %cst_17 [2] : vector<4x128x128xf32> to vector<4x128xf32>
    %59 = vector.shape_cast %58 : vector<4x128xf32> to vector<4x128x1xf32>
    %60 = vector.broadcast %59 : vector<4x128x1xf32> to vector<4x128x128xf32>
    %61 = arith.subf %57, %60 : vector<4x128x128xf32>
    %62 = math.exp %61 : vector<4x128x128xf32>
    %cst_18 = arith.constant dense<0.000000e+00> : vector<4x128xf32>
    %63 = vector.multi_reduction <add>, %62, %cst_18 [2] : vector<4x128x128xf32> to vector<4x128xf32>
    %64 = vector.shape_cast %63 : vector<4x128xf32> to vector<4x128x1xf32>
    %65 = tpu.reciprocal %64 {approx = true} : vector<4x128x1xf32> -> vector<4x128x1xf32>
    %66 = vector.broadcast %65 : vector<4x128x1xf32> to vector<4x128x128xf32>
    %67 = arith.mulf %62, %66 : vector<4x128x128xf32>
    %68 = arith.truncf %67 : vector<4x128x128xf32> to vector<4x128x128xbf16>
    %cst_19 = arith.constant dense<0.000000e+00> : vector<4x16x128xf32>
    %69 = tpu.matmul %56, %68, %cst_19 {dimension_numbers = #tpu.dot_dimension_numbers<[2], [2], [1], [1], [0, 0, 0, 1, 1, 1], [0], [0]>} : vector<4x16x128xbf16>, vector<4x128x128xbf16>, vector<4x16x128xf32> -> vector<4x16x128xf32>
    %70 = vector.shape_cast %69 : vector<4x16x128xf32> to vector<64x128xf32>
    %71 = arith.truncf %70 : vector<64x128xf32> to vector<64x128xbf16>
    %c0_20 = arith.constant 0 : index
    %c0_21 = arith.constant 0 : index
    %72 = vector.load %arg5[%c0_20, %c0_21] : memref<64x64xbf16, #tpu.memory_space<vmem>>, vector<64x64xbf16>
    %cst_22 = arith.constant dense<0.000000e+00> : vector<64x128xf32>
    %73 = tpu.matmul %72, %71, %cst_22 {dimension_numbers = #tpu.dot_dimension_numbers<[1], [0], [0], [1], [0, 0, 1, 1], [], []>} : vector<64x64xbf16>, vector<64x128xbf16>, vector<64x128xf32> -> vector<64x128xf32>
    %74 = vector.broadcast %10 : vector<64x1xf32> to vector<64x128xf32>
    %75 = arith.addf %73, %74 : vector<64x128xf32>
    %76 = arith.addf %75, %4 : vector<64x128xf32>
    %77 = vector.shape_cast %76 : vector<64x128xf32> to vector<1x64x128xf32>
    %cst_23 = arith.constant dense<0.000000e+00> : vector<1xf32>
    %78 = vector.multi_reduction <add>, %77, %cst_23 [1, 2] : vector<1x64x128xf32> to vector<1xf32>
    %79 = vector.shape_cast %78 : vector<1xf32> to vector<1x1x1xf32>
    %80 = vector.extract %79[0, 0, 0] : f32 from vector<1x1x1xf32>
    %81 = vector.broadcast %80 : f32 to vector<1x1xf32>
    %cst_24 = arith.constant 8.192000e+03 : f32
    %82 = vector.broadcast %cst_24 : f32 to vector<1x1xf32>
    %83 = arith.divf %81, %82 : vector<1x1xf32>
    %84 = arith.mulf %76, %76 : vector<64x128xf32>
    %85 = vector.shape_cast %84 : vector<64x128xf32> to vector<1x64x128xf32>
    %cst_25 = arith.constant dense<0.000000e+00> : vector<1xf32>
    %86 = vector.multi_reduction <add>, %85, %cst_25 [1, 2] : vector<1x64x128xf32> to vector<1xf32>
    %87 = vector.shape_cast %86 : vector<1xf32> to vector<1x1x1xf32>
    %88 = vector.extract %87[0, 0, 0] : f32 from vector<1x1x1xf32>
    %89 = vector.broadcast %88 : f32 to vector<1x1xf32>
    %cst_26 = arith.constant 8.192000e+03 : f32
    %90 = vector.broadcast %cst_26 : f32 to vector<1x1xf32>
    %91 = arith.divf %89, %90 : vector<1x1xf32>
    %92 = arith.mulf %83, %83 : vector<1x1xf32>
    %93 = arith.subf %91, %92 : vector<1x1xf32>
    %cst_27 = arith.constant 0.000000e+00 : f32
    %94 = vector.broadcast %cst_27 : f32 to vector<1x1xf32>
    %95 = arith.maximumf %93, %94 : vector<1x1xf32>
    %96 = vector.broadcast %83 : vector<1x1xf32> to vector<64x128xf32>
    %97 = arith.subf %76, %96 : vector<64x128xf32>
    %cst_28 = arith.constant 9.99999993E-9 : f32
    %98 = vector.broadcast %cst_28 : f32 to vector<1x1xf32>
    %99 = arith.addf %95, %98 : vector<1x1xf32>
    %100 = math.rsqrt %99 : vector<1x1xf32>
    %101 = vector.broadcast %100 : vector<1x1xf32> to vector<64x128xf32>
    %102 = arith.mulf %97, %101 : vector<64x128xf32>
    %103 = vector.broadcast %8 : vector<64x1xf32> to vector<64x128xf32>
    %104 = arith.mulf %102, %103 : vector<64x128xf32>
    %105 = vector.broadcast %9 : vector<64x1xf32> to vector<64x128xf32>
    %106 = arith.addf %104, %105 : vector<64x128xf32>
    %107 = arith.truncf %106 : vector<64x128xf32> to vector<64x128xbf16>
    %c0_29 = arith.constant 0 : index
    %c0_30 = arith.constant 0 : index
    %108 = vector.load %arg7[%c0_29, %c0_30] : memref<128x64xbf16, #tpu.memory_space<vmem>>, vector<128x64xbf16>
    %cst_31 = arith.constant dense<0.000000e+00> : vector<128x128xf32>
    %109 = tpu.matmul %108, %107, %cst_31 {dimension_numbers = #tpu.dot_dimension_numbers<[1], [0], [0], [1], [0, 0, 1, 1], [], []>} : vector<128x64xbf16>, vector<64x128xbf16>, vector<128x128xf32> -> vector<128x128xf32>
    %c0_32 = arith.constant 0 : index
    %c0_33 = arith.constant 0 : index
    %110 = vector.load %arg8[%c0_32, %c0_33] : memref<128x1xf32, #tpu.memory_space<vmem>>, vector<128x1xf32>
    %111 = vector.broadcast %110 : vector<128x1xf32> to vector<128x128xf32>
    %112 = arith.addf %109, %111 : vector<128x128xf32>
    %cst_34 = arith.constant 0.000000e+00 : f32
    %113 = vector.broadcast %cst_34 : f32 to vector<128x128xf32>
    %114 = arith.maximumf %112, %113 : vector<128x128xf32>
    %115 = arith.truncf %114 : vector<128x128xf32> to vector<128x128xbf16>
    %c0_35 = arith.constant 0 : index
    %c0_36 = arith.constant 0 : index
    %116 = vector.load %arg9[%c0_35, %c0_36] : memref<64x128xbf16, #tpu.memory_space<vmem>>, vector<64x128xbf16>
    %cst_37 = arith.constant dense<0.000000e+00> : vector<64x128xf32>
    %117 = tpu.matmul %116, %115, %cst_37 {dimension_numbers = #tpu.dot_dimension_numbers<[1], [0], [0], [1], [0, 0, 1, 1], [], []>} : vector<64x128xbf16>, vector<128x128xbf16>, vector<64x128xf32> -> vector<64x128xf32>
    %118 = vector.broadcast %11 : vector<64x1xf32> to vector<64x128xf32>
    %119 = arith.addf %117, %118 : vector<64x128xf32>
    %120 = arith.addf %119, %76 : vector<64x128xf32>
    %121 = arith.addf %120, %2 : vector<64x128xf32>
    %122 = arith.truncf %121 : vector<64x128xf32> to vector<64x128xbf16>
    %c0_38 = arith.constant 0 : index
    %c0_39 = arith.constant 0 : index
    %c0_40 = arith.constant 0 : index
    %123 = vector.load %arg10[%c0_38, %c0_39, %c0_40] : memref<1x64x128xbf16, #tpu.memory_space<vmem>>, vector<1x64x128xbf16>
    %124 = vector.shape_cast %123 : vector<1x64x128xbf16> to vector<64x128xbf16>
    %125 = vector.shape_cast %122 : vector<64x128xbf16> to vector<1x64x128xbf16>
    tpu.vector_store %arg10[%c0_38, %c0_39, %c0_40], %125 {strides = array<i32>} : memref<1x64x128xbf16, #tpu.memory_space<vmem>>, vector<1x64x128xbf16>,
    return
  }
  func.func @transform_0(%arg0: i32) -> (i32, i32, i32) {
    %c0_i32 = arith.constant 0 : i32
    %c0_i32_0 = arith.constant 0 : i32
    %c0_i32_1 = arith.constant 0 : i32
    return %arg0, %c0_i32, %c0_i32_0 : i32, i32, i32
  }
  func.func @transform_1(%arg0: i32) -> (i32, i32) {
    %c0_i32 = arith.constant 0 : i32
    %c0_i32_0 = arith.constant 0 : i32
    %c0_i32_1 = arith.constant 0 : i32
    return %c0_i32, %c0_i32_0 : i32, i32
  }
  func.func @transform_2(%arg0: i32) -> (i32, i32) {
    %c0_i32 = arith.constant 0 : i32
    %c0_i32_0 = arith.constant 0 : i32
    %c0_i32_1 = arith.constant 0 : i32
    return %c0_i32, %c0_i32_0 : i32, i32
  }
  func.func @transform_3(%arg0: i32) -> (i32, i32) {
    %c0_i32 = arith.constant 0 : i32
    %c0_i32_0 = arith.constant 0 : i32
    %c0_i32_1 = arith.constant 0 : i32
    return %c0_i32, %c0_i32_0 : i32, i32
  }
  func.func @transform_4(%arg0: i32) -> (i32, i32) {
    %c0_i32 = arith.constant 0 : i32
    %c0_i32_0 = arith.constant 0 : i32
    %c0_i32_1 = arith.constant 0 : i32
    return %c0_i32, %c0_i32_0 : i32, i32
  }
  func.func @transform_5(%arg0: i32) -> (i32, i32) {
    %c0_i32 = arith.constant 0 : i32
    %c0_i32_0 = arith.constant 0 : i32
    %c0_i32_1 = arith.constant 0 : i32
    return %c0_i32, %c0_i32_0 : i32, i32
  }
  func.func @transform_6(%arg0: i32) -> (i32, i32) {
    %c0_i32 = arith.constant 0 : i32
    %c0_i32_0 = arith.constant 0 : i32
    %c0_i32_1 = arith.constant 0 : i32
    return %c0_i32, %c0_i32_0 : i32, i32
  }
  func.func @transform_7(%arg0: i32) -> (i32, i32) {
    %c0_i32 = arith.constant 0 : i32
    %c0_i32_0 = arith.constant 0 : i32
    %c0_i32_1 = arith.constant 0 : i32
    return %c0_i32, %c0_i32_0 : i32, i32
  }
  func.func @transform_8(%arg0: i32) -> (i32, i32) {
    %c0_i32 = arith.constant 0 : i32
    %c0_i32_0 = arith.constant 0 : i32
    %c0_i32_1 = arith.constant 0 : i32
    return %c0_i32, %c0_i32_0 : i32, i32
  }
  func.func @transform_9(%arg0: i32) -> (i32, i32, i32) {
    %c0_i32 = arith.constant 0 : i32
    %c0_i32_0 = arith.constant 0 : i32
    %c0_i32_1 = arith.constant 0 : i32
    return %arg0, %c0_i32, %c0_i32_0 : i32, i32, i32
  }
}

module attributes {stable_mosaic.version = 11 : i64} {
  func.func @_sepformer_layer_kernel(%arg0: i32, %arg1: memref<1x64x128xbf16, #tpu.memory_space<vmem>>, %arg2: memref<64x128xf32, #tpu.memory_space<vmem>>, %arg3: memref<192x64xbf16, #tpu.memory_space<vmem>>, %arg4: memref<192x1xf32, #tpu.memory_space<vmem>>, %arg5: memref<64x64xbf16, #tpu.memory_space<vmem>>, %arg6: memref<64x6xf32, #tpu.memory_space<vmem>>, %arg7: memref<128x64xbf16, #tpu.memory_space<vmem>>, %arg8: memref<128x1xf32, #tpu.memory_space<vmem>>, %arg9: memref<64x128xbf16, #tpu.memory_space<vmem>>, %arg10: memref<1x64x128xbf16, #tpu.memory_space<vmem>>) attributes {dimension_semantics = [#tpu.dimension_semantics<parallel>], iteration_bounds = array<i64: 2>, scalar_prefetch = 0 : i64, scratch_operands = 0 : i64, tpu.core_type = #tpu.core_type<tc>, window_params = [{transform_indices = @transform_0, window_bounds = array<i64: 1, 64, 128>}, {pipeline_mode = #tpu.pipeline_mode<synchronous>, transform_indices = @transform_1, window_bounds = array<i64: 64, 128>}, {pipeline_mode = #tpu.pipeline_mode<synchronous>, transform_indices = @transform_2, window_bounds = array<i64: 192, 64>}, {pipeline_mode = #tpu.pipeline_mode<synchronous>, transform_indices = @transform_3, window_bounds = array<i64: 192, 1>}, {pipeline_mode = #tpu.pipeline_mode<synchronous>, transform_indices = @transform_4, window_bounds = array<i64: 64, 64>}, {pipeline_mode = #tpu.pipeline_mode<synchronous>, transform_indices = @transform_5, window_bounds = array<i64: 64, 6>}, {pipeline_mode = #tpu.pipeline_mode<synchronous>, transform_indices = @transform_6, window_bounds = array<i64: 128, 64>}, {pipeline_mode = #tpu.pipeline_mode<synchronous>, transform_indices = @transform_7, window_bounds = array<i64: 128, 1>}, {pipeline_mode = #tpu.pipeline_mode<synchronous>, transform_indices = @transform_8, window_bounds = array<i64: 64, 128>}, {transform_indices = @transform_9, window_bounds = array<i64: 1, 64, 128>}]} {
    %c0 = arith.constant 0 : index
    %c0_0 = arith.constant 0 : index
    %c0_1 = arith.constant 0 : index
    %0 = vector.load %arg1[%c0, %c0_0, %c0_1] : memref<1x64x128xbf16, #tpu.memory_space<vmem>>, vector<1x64x128xbf16>
    %1 = vector.shape_cast %0 : vector<1x64x128xbf16> to vector<64x128xbf16>
    %2 = arith.extf %1 : vector<64x128xbf16> to vector<64x128xf32>
    %c0_2 = arith.constant 0 : index
    %c0_3 = arith.constant 0 : index
    %3 = vector.load %arg2[%c0_2, %c0_3] : memref<64x128xf32, #tpu.memory_space<vmem>>, vector<64x128xf32>
    %4 = arith.addf %2, %3 : vector<64x128xf32>
    %c0_4 = arith.constant 0 : index
    %c0_5 = arith.constant 0 : index
    %5 = vector.load %arg6[%c0_4, %c0_5] : memref<64x6xf32, #tpu.memory_space<vmem>>, vector<64x6xf32>
    %6 = vector.extract_strided_slice %5 {offsets = [0, 0], sizes = [64, 1], strides = [1, 1]} : vector<64x6xf32> to vector<64x1xf32>
    %7 = vector.extract_strided_slice %5 {offsets = [0, 1], sizes = [64, 1], strides = [1, 1]} : vector<64x6xf32> to vector<64x1xf32>
    %8 = vector.extract_strided_slice %5 {offsets = [0, 2], sizes = [64, 1], strides = [1, 1]} : vector<64x6xf32> to vector<64x1xf32>
    %9 = vector.extract_strided_slice %5 {offsets = [0, 3], sizes = [64, 1], strides = [1, 1]} : vector<64x6xf32> to vector<64x1xf32>
    %10 = vector.extract_strided_slice %5 {offsets = [0, 4], sizes = [64, 1], strides = [1, 1]} : vector<64x6xf32> to vector<64x1xf32>
    %11 = vector.extract_strided_slice %5 {offsets = [0, 5], sizes = [64, 1], strides = [1, 1]} : vector<64x6xf32> to vector<64x1xf32>
    %12 = vector.shape_cast %4 : vector<64x128xf32> to vector<1x64x128xf32>
    %cst = arith.constant dense<0.000000e+00> : vector<1xf32>
    %13 = vector.multi_reduction <add>, %12, %cst [1, 2] : vector<1x64x128xf32> to vector<1xf32>
    %14 = vector.shape_cast %13 : vector<1xf32> to vector<1x1x1xf32>
    %15 = vector.extract %14[0, 0, 0] : f32 from vector<1x1x1xf32>
    %16 = vector.broadcast %15 : f32 to vector<1x1xf32>
    %cst_6 = arith.constant 8.192000e+03 : f32
    %17 = vector.broadcast %cst_6 : f32 to vector<1x1xf32>
    %18 = arith.divf %16, %17 : vector<1x1xf32>
    %19 = arith.mulf %4, %4 : vector<64x128xf32>
    %20 = vector.shape_cast %19 : vector<64x128xf32> to vector<1x64x128xf32>
    %cst_7 = arith.constant dense<0.000000e+00> : vector<1xf32>
    %21 = vector.multi_reduction <add>, %20, %cst_7 [1, 2] : vector<1x64x128xf32> to vector<1xf32>
    %22 = vector.shape_cast %21 : vector<1xf32> to vector<1x1x1xf32>
    %23 = vector.extract %22[0, 0, 0] : f32 from vector<1x1x1xf32>
    %24 = vector.broadcast %23 : f32 to vector<1x1xf32>
    %cst_8 = arith.constant 8.192000e+03 : f32
    %25 = vector.broadcast %cst_8 : f32 to vector<1x1xf32>
    %26 = arith.divf %24, %25 : vector<1x1xf32>
    %27 = arith.mulf %18, %18 : vector<1x1xf32>
    %28 = arith.subf %26, %27 : vector<1x1xf32>
    %cst_9 = arith.constant 0.000000e+00 : f32
    %29 = vector.broadcast %cst_9 : f32 to vector<1x1xf32>
    %30 = arith.maximumf %28, %29 : vector<1x1xf32>
    %31 = vector.broadcast %18 : vector<1x1xf32> to vector<64x128xf32>
    %32 = arith.subf %4, %31 : vector<64x128xf32>
    %cst_10 = arith.constant 9.99999993E-9 : f32
    %33 = vector.broadcast %cst_10 : f32 to vector<1x1xf32>
    %34 = arith.addf %30, %33 : vector<1x1xf32>
    %35 = math.rsqrt %34 : vector<1x1xf32>
    %36 = vector.broadcast %35 : vector<1x1xf32> to vector<64x128xf32>
    %37 = arith.mulf %32, %36 : vector<64x128xf32>
    %38 = vector.broadcast %6 : vector<64x1xf32> to vector<64x128xf32>
    %39 = arith.mulf %37, %38 : vector<64x128xf32>
    %40 = vector.broadcast %7 : vector<64x1xf32> to vector<64x128xf32>
    %41 = arith.addf %39, %40 : vector<64x128xf32>
    %42 = arith.truncf %41 : vector<64x128xf32> to vector<64x128xbf16>
    %c0_11 = arith.constant 0 : index
    %c0_12 = arith.constant 0 : index
    %43 = vector.load %arg3[%c0_11, %c0_12] : memref<192x64xbf16, #tpu.memory_space<vmem>>, vector<192x64xbf16>
    %cst_13 = arith.constant dense<0.000000e+00> : vector<192x128xf32>
    %44 = tpu.matmul %43, %42, %cst_13 {dimension_numbers = #tpu.dot_dimension_numbers<[1], [0], [0], [1], [0, 0, 1, 1], [], []>} : vector<192x64xbf16>, vector<64x128xbf16>, vector<192x128xf32> -> vector<192x128xf32>
    %c0_14 = arith.constant 0 : index
    %c0_15 = arith.constant 0 : index
    %45 = vector.load %arg4[%c0_14, %c0_15] : memref<192x1xf32, #tpu.memory_space<vmem>>, vector<192x1xf32>
    %46 = vector.broadcast %45 : vector<192x1xf32> to vector<192x128xf32>
    %47 = arith.addf %44, %46 : vector<192x128xf32>
    %48 = vector.extract_strided_slice %47 {offsets = [0, 0], sizes = [64, 128], strides = [1, 1]} : vector<192x128xf32> to vector<64x128xf32>
    %49 = vector.shape_cast %48 : vector<64x128xf32> to vector<4x16x128xf32>
    %50 = arith.truncf %49 : vector<4x16x128xf32> to vector<4x16x128xbf16>
    %51 = vector.extract_strided_slice %47 {offsets = [64, 0], sizes = [64, 128], strides = [1, 1]} : vector<192x128xf32> to vector<64x128xf32>
    %52 = vector.shape_cast %51 : vector<64x128xf32> to vector<4x16x128xf32>
    %53 = arith.truncf %52 : vector<4x16x128xf32> to vector<4x16x128xbf16>
    %54 = vector.extract_strided_slice %47 {offsets = [128, 0], sizes = [64, 128], strides = [1, 1]} : vector<192x128xf32> to vector<64x128xf32>
    %55 = vector.shape_cast %54 : vector<64x128xf32> to vector<4x16x128xf32>
    %56 = arith.truncf %55 : vector<4x16x128xf32> to vector<4x16x128xbf16>
    %cst_16 = arith.constant dense<0.000000e+00> : vector<4x128x128xf32>
    %57 = tpu.matmul %50, %53, %cst_16 {dimension_numbers = #tpu.dot_dimension_numbers<[1], [1], [2], [2], [0, 0, 0, 2, 1, 2], [0], [0]>} : vector<4x16x128xbf16>, vector<4x16x128xbf16>, vector<4x128x128xf32> -> vector<4x128x128xf32>
    %cst_17 = arith.constant dense<0xFF800000> : vector<4x128xf32>
    %58 = vector.multi_reduction <maximumf>, %57, %cst_17 [2] : vector<4x128x128xf32> to vector<4x128xf32>
    %59 = vector.shape_cast %58 : vector<4x128xf32> to vector<4x128x1xf32>
    %60 = vector.broadcast %59 : vector<4x128x1xf32> to vector<4x128x128xf32>
    %61 = arith.subf %57, %60 : vector<4x128x128xf32>
    %62 = math.exp %61 : vector<4x128x128xf32>
    %cst_18 = arith.constant dense<0.000000e+00> : vector<4x128xf32>
    %63 = vector.multi_reduction <add>, %62, %cst_18 [2] : vector<4x128x128xf32> to vector<4x128xf32>
    %64 = vector.shape_cast %63 : vector<4x128xf32> to vector<4x128x1xf32>
    %65 = tpu.reciprocal %64 {approx = true} : vector<4x128x1xf32> -> vector<4x128x1xf32>
    %66 = vector.broadcast %65 : vector<4x128x1xf32> to vector<4x128x128xf32>
    %67 = arith.mulf %62, %66 : vector<4x128x128xf32>
    %68 = arith.truncf %67 : vector<4x128x128xf32> to vector<4x128x128xbf16>
    %cst_19 = arith.constant dense<0.000000e+00> : vector<4x16x128xf32>
    %69 = tpu.matmul %56, %68, %cst_19 {dimension_numbers = #tpu.dot_dimension_numbers<[2], [2], [1], [1], [0, 0, 0, 1, 1, 1], [0], [0]>} : vector<4x16x128xbf16>, vector<4x128x128xbf16>, vector<4x16x128xf32> -> vector<4x16x128xf32>
    %70 = vector.shape_cast %69 : vector<4x16x128xf32> to vector<64x128xf32>
    %71 = arith.truncf %70 : vector<64x128xf32> to vector<64x128xbf16>
    %c0_20 = arith.constant 0 : index
    %c0_21 = arith.constant 0 : index
    %72 = vector.load %arg5[%c0_20, %c0_21] : memref<64x64xbf16, #tpu.memory_space<vmem>>, vector<64x64xbf16>
    %cst_22 = arith.constant dense<0.000000e+00> : vector<64x128xf32>
    %73 = tpu.matmul %72, %71, %cst_22 {dimension_numbers = #tpu.dot_dimension_numbers<[1], [0], [0], [1], [0, 0, 1, 1], [], []>} : vector<64x64xbf16>, vector<64x128xbf16>, vector<64x128xf32> -> vector<64x128xf32>
    %74 = vector.broadcast %10 : vector<64x1xf32> to vector<64x128xf32>
    %75 = arith.addf %73, %74 : vector<64x128xf32>
    %76 = arith.addf %75, %4 : vector<64x128xf32>
    %77 = vector.shape_cast %76 : vector<64x128xf32> to vector<1x64x128xf32>
    %cst_23 = arith.constant dense<0.000000e+00> : vector<1xf32>
    %78 = vector.multi_reduction <add>, %77, %cst_23 [1, 2] : vector<1x64x128xf32> to vector<1xf32>
    %79 = vector.shape_cast %78 : vector<1xf32> to vector<1x1x1xf32>
    %80 = vector.extract %79[0, 0, 0] : f32 from vector<1x1x1xf32>
    %81 = vector.broadcast %80 : f32 to vector<1x1xf32>
    %cst_24 = arith.constant 8.192000e+03 : f32
    %82 = vector.broadcast %cst_24 : f32 to vector<1x1xf32>
    %83 = arith.divf %81, %82 : vector<1x1xf32>
    %84 = arith.mulf %76, %76 : vector<64x128xf32>
    %85 = vector.shape_cast %84 : vector<64x128xf32> to vector<1x64x128xf32>
    %cst_25 = arith.constant dense<0.000000e+00> : vector<1xf32>
    %86 = vector.multi_reduction <add>, %85, %cst_25 [1, 2] : vector<1x64x128xf32> to vector<1xf32>
    %87 = vector.shape_cast %86 : vector<1xf32> to vector<1x1x1xf32>
    %88 = vector.extract %87[0, 0, 0] : f32 from vector<1x1x1xf32>
    %89 = vector.broadcast %88 : f32 to vector<1x1xf32>
    %cst_26 = arith.constant 8.192000e+03 : f32
    %90 = vector.broadcast %cst_26 : f32 to vector<1x1xf32>
    %91 = arith.divf %89, %90 : vector<1x1xf32>
    %92 = arith.mulf %83, %83 : vector<1x1xf32>
    %93 = arith.subf %91, %92 : vector<1x1xf32>
    %cst_27 = arith.constant 0.000000e+00 : f32
    %94 = vector.broadcast %cst_27 : f32 to vector<1x1xf32>
    %95 = arith.maximumf %93, %94 : vector<1x1xf32>
    %96 = vector.broadcast %83 : vector<1x1xf32> to vector<64x128xf32>
    %97 = arith.subf %76, %96 : vector<64x128xf32>
    %cst_28 = arith.constant 9.99999993E-9 : f32
    %98 = vector.broadcast %cst_28 : f32 to vector<1x1xf32>
    %99 = arith.addf %95, %98 : vector<1x1xf32>
    %100 = math.rsqrt %99 : vector<1x1xf32>
    %101 = vector.broadcast %100 : vector<1x1xf32> to vector<64x128xf32>
    %102 = arith.mulf %97, %101 : vector<64x128xf32>
    %103 = vector.broadcast %8 : vector<64x1xf32> to vector<64x128xf32>
    %104 = arith.mulf %102, %103 : vector<64x128xf32>
    %105 = vector.broadcast %9 : vector<64x1xf32> to vector<64x128xf32>
    %106 = arith.addf %104, %105 : vector<64x128xf32>
    %107 = arith.truncf %106 : vector<64x128xf32> to vector<64x128xbf16>
    %c0_29 = arith.constant 0 : index
    %c0_30 = arith.constant 0 : index
    %108 = vector.load %arg7[%c0_29, %c0_30] : memref<128x64xbf16, #tpu.memory_space<vmem>>, vector<128x64xbf16>
    %cst_31 = arith.constant dense<0.000000e+00> : vector<128x128xf32>
    %109 = tpu.matmul %108, %107, %cst_31 {dimension_numbers = #tpu.dot_dimension_numbers<[1], [0], [0], [1], [0, 0, 1, 1], [], []>} : vector<128x64xbf16>, vector<64x128xbf16>, vector<128x128xf32> -> vector<128x128xf32>
    %c0_32 = arith.constant 0 : index
    %c0_33 = arith.constant 0 : index
    %110 = vector.load %arg8[%c0_32, %c0_33] : memref<128x1xf32, #tpu.memory_space<vmem>>, vector<128x1xf32>
    %111 = vector.broadcast %110 : vector<128x1xf32> to vector<128x128xf32>
    %112 = arith.addf %109, %111 : vector<128x128xf32>
    %cst_34 = arith.constant 0.000000e+00 : f32
    %113 = vector.broadcast %cst_34 : f32 to vector<128x128xf32>
    %114 = arith.maximumf %112, %113 : vector<128x128xf32>
    %115 = arith.truncf %114 : vector<128x128xf32> to vector<128x128xbf16>
    %c0_35 = arith.constant 0 : index
    %c0_36 = arith.constant 0 : index
    %116 = vector.load %arg9[%c0_35, %c0_36] : memref<64x128xbf16, #tpu.memory_space<vmem>>, vector<64x128xbf16>
    %cst_37 = arith.constant dense<0.000000e+00> : vector<64x128xf32>
    %117 = tpu.matmul %116, %115, %cst_37 {dimension_numbers = #tpu.dot_dimension_numbers<[1], [0], [0], [1], [0, 0, 1, 1], [], []>} : vector<64x128xbf16>, vector<128x128xbf16>, vector<64x128xf32> -> vector<64x128xf32>
    %118 = vector.broadcast %11 : vector<64x1xf32> to vector<64x128xf32>
    %119 = arith.addf %117, %118 : vector<64x128xf32>
    %120 = arith.addf %119, %76 : vector<64x128xf32>
    %121 = arith.addf %120, %2 : vector<64x128xf32>
    %122 = arith.truncf %121 : vector<64x128xf32> to vector<64x128xbf16>
    %c0_38 = arith.constant 0 : index
    %c0_39 = arith.constant 0 : index
    %c0_40 = arith.constant 0 : index
    %123 = vector.load %arg10[%c0_38, %c0_39, %c0_40] : memref<1x64x128xbf16, #tpu.memory_space<vmem>>, vector<1x64x128xbf16>
    %124 = vector.shape_cast %123 : vector<1x64x128xbf16> to vector<64x128xbf16>
    %125 = vector.shape_cast %122 : vector<64x128xbf16> to vector<1x64x128xbf16>
    tpu.vector_store %arg10[%c0_38, %c0_39, %c0_40], %125 {strides = array<i32>} : memref<1x64x128xbf16, #tpu.memory_space<vmem>>, vector<1x64x128xbf16>,
    return
  }
  func.func @transform_0(%arg0: i32) -> (i32, i32, i32) {
    %c0_i32 = arith.constant 0 : i32
    %c0_i32_0 = arith.constant 0 : i32
    %c0_i32_1 = arith.constant 0 : i32
    return %arg0, %c0_i32, %c0_i32_0 : i32, i32, i32
  }
  func.func @transform_1(%arg0: i32) -> (i32, i32) {
    %c0_i32 = arith.constant 0 : i32
    %c0_i32_0 = arith.constant 0 : i32
    %c0_i32_1 = arith.constant 0 : i32
    return %c0_i32, %c0_i32_0 : i32, i32
  }
  func.func @transform_2(%arg0: i32) -> (i32, i32) {
    %c0_i32 = arith.constant 0 : i32
    %c0_i32_0 = arith.constant 0 : i32
    %c0_i32_1 = arith.constant 0 : i32
    return %c0_i32, %c0_i32_0 : i32, i32
  }
  func.func @transform_3(%arg0: i32) -> (i32, i32) {
    %c0_i32 = arith.constant 0 : i32
    %c0_i32_0 = arith.constant 0 : i32
    %c0_i32_1 = arith.constant 0 : i32
    return %c0_i32, %c0_i32_0 : i32, i32
  }
  func.func @transform_4(%arg0: i32) -> (i32, i32) {
    %c0_i32 = arith.constant 0 : i32
    %c0_i32_0 = arith.constant 0 : i32
    %c0_i32_1 = arith.constant 0 : i32
    return %c0_i32, %c0_i32_0 : i32, i32
  }
  func.func @transform_5(%arg0: i32) -> (i32, i32) {
    %c0_i32 = arith.constant 0 : i32
    %c0_i32_0 = arith.constant 0 : i32
    %c0_i32_1 = arith.constant 0 : i32
    return %c0_i32, %c0_i32_0 : i32, i32
  }
  func.func @transform_6(%arg0: i32) -> (i32, i32) {
    %c0_i32 = arith.constant 0 : i32
    %c0_i32_0 = arith.constant 0 : i32
    %c0_i32_1 = arith.constant 0 : i32
    return %c0_i32, %c0_i32_0 : i32, i32
  }
  func.func @transform_7(%arg0: i32) -> (i32, i32) {
    %c0_i32 = arith.constant 0 : i32
    %c0_i32_0 = arith.constant 0 : i32
    %c0_i32_1 = arith.constant 0 : i32
    return %c0_i32, %c0_i32_0 : i32, i32
  }
  func.func @transform_8(%arg0: i32) -> (i32, i32) {
    %c0_i32 = arith.constant 0 : i32
    %c0_i32_0 = arith.constant 0 : i32
    %c0_i32_1 = arith.constant 0 : i32
    return %c0_i32, %c0_i32_0 : i32, i32
  }
  func.func @transform_9(%arg0: i32) -> (i32, i32, i32) {
    %c0_i32 = arith.constant 0 : i32
    %c0_i32_0 = arith.constant 0 : i32
    %c0_i32_1 = arith.constant 0 : i32
    return %arg0, %c0_i32, %c0_i32_0 : i32, i32, i32
  }
}

</mosaic_0001>

<llo_original>
// kernel: tpu_custom_call.1
$region0: #{tpu_custom_call.1}
  #allocation0 [shape = 'u32[]', space=smem, size = 0x4, offset = 0x4, fixed_abs, tag = 'smem constant byte address 0x4 - core index']
  #allocation1 [shape = 'u32[72,128]{1,0:T(1,128)}', space=vmem, size = 0x9000, scoped, tag = 'internal scratch']
  %s0 = inlined_call_operand.vmem [shape: bf16[2,64,128], index: 0, kind: input, shape index: {}]
  %s1 = inlined_call_operand.vmem [shape: f32[64,128], index: 1, kind: input, shape index: {}]
  %s2 = inlined_call_operand.vmem [shape: bf16[192,64], index: 2, kind: input, shape index: {}]
  %s3 = inlined_call_operand.vmem [shape: f32[192,1], index: 3, kind: input, shape index: {}]
  %s4 = inlined_call_operand.vmem [shape: bf16[64,64], index: 4, kind: input, shape index: {}]
  %s5 = inlined_call_operand.vmem [shape: f32[64,6], index: 5, kind: input, shape index: {}]
  %s6 = inlined_call_operand.vmem [shape: bf16[128,64], index: 6, kind: input, shape index: {}]
  %s7 = inlined_call_operand.vmem [shape: f32[128,1], index: 7, kind: input, shape index: {}]
  %s8 = inlined_call_operand.vmem [shape: bf16[64,128], index: 8, kind: input, shape index: {}]
  %s9 = inlined_call_operand.hbm [shape: bf16[2,64,128], index: 9, kind: output, shape index: {}]
  %s10 = sld [smem:[#allocation0]]
  $region69: #{tpu_custom_call.1} parent=0
    _
  %s12 = ssub.s32 1, %s10
  %s13 = scalar_select 0, %s12, %s10
  $region1: #{tpu_custom_call.1} parent=0
    #allocation2 [shape = 'u8[32768]{0}', space=vmem, size = 0x8000, scoped, tag = 'output window, operand 0']
    #allocation3 [shape = 's32[2]{0}', space=sflag, size = 0x8, scoped, tag = 'scoped memory for tpu_custom_call.1']
    %14 = vsyncpa [#allocation3], 0
    %s15 = scalar_lea.sflag [#allocation3], 1
    %16 = vsyncpa %s15, 0
    loop: start=0, step=1, limit=4
    $region2: #{tpu_custom_call.1} parent=1 // loop_pre_header
      _
    $region3: #{tpu_custom_call.1} parent=1 // loop_header
      %s18 = sphi 0, %s22
      %p19 = scmp.ge.s32.totalorder %s18, 4
      %s28 = sphi 0, %s30
      %s31 = sphi 0, %s28
      %s32 = sphi 0, %s31
      %s48 = sphi 0, %s32
      %s52 = sphi 0, %s52
      %s54 = sphi 0, %s52
      %s55 = sphi 0, %s54
      %s69 = sphi 0, %s55
      %s73 = sphi 0, %s73
      %s75 = sphi 0, %s73
      %s76 = sphi 0, %s75
      %s90 = sphi 0, %s76
      %s94 = sphi 0, %s94
      %s96 = sphi 0, %s94
      %s97 = sphi 0, %s96
      %s111 = sphi 0, %s97
      %s115 = sphi 0, %s115
      %s117 = sphi 0, %s115
      %s118 = sphi 0, %s117
      %s132 = sphi 0, %s118
      %s136 = sphi 0, %s136
      %s138 = sphi 0, %s136
      %s139 = sphi 0, %s138
      %s153 = sphi 0, %s139
      %s157 = sphi 0, %s157
      %s159 = sphi 0, %s157
      %s160 = sphi 0, %s159
      %s174 = sphi 0, %s160
      %s178 = sphi 0, %s178
      %s180 = sphi 0, %s178
      %s181 = sphi 0, %s180
      %s195 = sphi 0, %s181
      %s199 = sphi 0, %s199
      %s201 = sphi 0, %s199
      %s202 = sphi 0, %s201
      %s216 = sphi 0, %s202
      %s222 = sphi 0, %s224
      %s225 = sphi 0, %s222
      %s226 = sphi 0, %s225
      %s242 = sphi 0, %s226
    $region4: #{tpu_custom_call.1} parent=1 // loop_header_branch
      %21 = sbr.rel (%p19) target = $region8
    $region5: #{tpu_custom_call.1} parent=1 // loop_body
      %s23 = ssub.s32 %s18, 1
      %s24 = ssub.s32 %s18, 2
      %s25 = sadd.s32 %s18, 1
      %s26 = ssub.s32 %s18, %s25
      %p27 = scmp.eq.s32.totalorder %s26, 0
      %s29 = sadd.s32 %s28, 1
      %s30 = scalar_select %p27, %s28, %s29
      %p33 = pneg %p27
      %p34 = scmp.eq.s32.totalorder %s18, 1
      %p35 = por %p33, %p34
      %p36 = scmp.ne.s32.totalorder %s28, %s31
      %p37 = scmp.eq.s32.totalorder %s18, 0
      %p38 = por %p36, %p37
      %p39 = scmp.ne.s32.totalorder %s28, %s31
      %p40 = scmp.eq.s32.totalorder %s23, 1
      %p41 = por %p39, %p40
      %p42 = scmp.ne.s32.totalorder %s31, %s32
      %p43 = scmp.eq.s32.totalorder %s23, 0
      %p44 = por %p42, %p43
      %p45 = scmp.ne.s32.totalorder %s31, %s32
      %p46 = scmp.eq.s32.totalorder %s24, 1
      %p47 = por %p45, %p46
      %p49 = scmp.ne.s32.totalorder %s32, %s48
      %p50 = scmp.eq.s32.totalorder %s24, 0
      %p51 = por %p49, %p50
      %s53 = sadd.s32 %s52, 1
      %p56 = scmp.eq.s32.totalorder %s18, 1
      %p57 = scmp.ne.s32.totalorder %s52, %s54
      %p58 = scmp.eq.s32.totalorder %s18, 0
      %p59 = por %p57, %p58
      %p60 = scmp.ne.s32.totalorder %s52, %s54
      %p61 = scmp.eq.s32.totalorder %s23, 1
      %p62 = por %p60, %p61
      %p63 = scmp.ne.s32.totalorder %s54, %s55
      %p64 = scmp.eq.s32.totalorder %s23, 0
      %p65 = por %p63, %p64
      %p66 = scmp.ne.s32.totalorder %s54, %s55
      %p67 = scmp.eq.s32.totalorder %s24, 1
      %p68 = por %p66, %p67
      %p70 = scmp.ne.s32.totalorder %s55, %s69
      %p71 = scmp.eq.s32.totalorder %s24, 0
      %p72 = por %p70, %p71
      %s74 = sadd.s32 %s73, 1
      %p77 = scmp.eq.s32.totalorder %s18, 1
      %p78 = scmp.ne.s32.totalorder %s73, %s75
      %p79 = scmp.eq.s32.totalorder %s18, 0
      %p80 = por %p78, %p79
      %p81 = scmp.ne.s32.totalorder %s73, %s75
      %p82 = scmp.eq.s32.totalorder %s23, 1
      %p83 = por %p81, %p82
      %p84 = scmp.ne.s32.totalorder %s75, %s76
      %p85 = scmp.eq.s32.totalorder %s23, 0
      %p86 = por %p84, %p85
      %p87 = scmp.ne.s32.totalorder %s75, %s76
      %p88 = scmp.eq.s32.totalorder %s24, 1
      %p89 = por %p87, %p88
      %p91 = scmp.ne.s32.totalorder %s76, %s90
      %p92 = scmp.eq.s32.totalorder %s24, 0
      %p93 = por %p91, %p92
      %s95 = sadd.s32 %s94, 1
      %p98 = scmp.eq.s32.totalorder %s18, 1
      %p99 = scmp.ne.s32.totalorder %s94, %s96
      %p100 = scmp.eq.s32.totalorder %s18, 0
      %p101 = por %p99, %p100
      %p102 = scmp.ne.s32.totalorder %s94, %s96
      %p103 = scmp.eq.s32.totalorder %s23, 1
      %p104 = por %p102, %p103
      %p105 = scmp.ne.s32.totalorder %s96, %s97
      %p106 = scmp.eq.s32.totalorder %s23, 0
      %p107 = por %p105, %p106
      %p108 = scmp.ne.s32.totalorder %s96, %s97
      %p109 = scmp.eq.s32.totalorder %s24, 1
      %p110 = por %p108, %p109
      %p112 = scmp.ne.s32.totalorder %s97, %s111
      %p113 = scmp.eq.s32.totalorder %s24, 0
      %p114 = por %p112, %p113
      %s116 = sadd.s32 %s115, 1
      %p119 = scmp.eq.s32.totalorder %s18, 1
      %p120 = scmp.ne.s32.totalorder %s115, %s117
      %p121 = scmp.eq.s32.totalorder %s18, 0
      %p122 = por %p120, %p121
      %p123 = scmp.ne.s32.totalorder %s115, %s117
      %p124 = scmp.eq.s32.totalorder %s23, 1
      %p125 = por %p123, %p124
      %p126 = scmp.ne.s32.totalorder %s117, %s118
      %p127 = scmp.eq.s32.totalorder %s23, 0
      %p128 = por %p126, %p127
      %p129 = scmp.ne.s32.totalorder %s117, %s118
      %p130 = scmp.eq.s32.totalorder %s24, 1
      %p131 = por %p129, %p130
      %p133 = scmp.ne.s32.totalorder %s118, %s132
      %p134 = scmp.eq.s32.totalorder %s24, 0
      %p135 = por %p133, %p134
      %s137 = sadd.s32 %s136, 1
      %p140 = scmp.eq.s32.totalorder %s18, 1
      %p141 = scmp.ne.s32.totalorder %s136, %s138
      %p142 = scmp.eq.s32.totalorder %s18, 0
      %p143 = por %p141, %p142
      %p144 = scmp.ne.s32.totalorder %s136, %s138
      %p145 = scmp.eq.s32.totalorder %s23, 1
      %p146 = por %p144, %p145
      %p147 = scmp.ne.s32.totalorder %s138, %s139
      %p148 = scmp.eq.s32.totalorder %s23, 0
      %p149 = por %p147, %p148
      %p150 = scmp.ne.s32.totalorder %s138, %s139
      %p151 = scmp.eq.s32.totalorder %s24, 1
      %p152 = por %p150, %p151
      %p154 = scmp.ne.s32.totalorder %s139, %s153
      %p155 = scmp.eq.s32.totalorder %s24, 0
      %p156 = por %p154, %p155
      %s158 = sadd.s32 %s157, 1
      %p161 = scmp.eq.s32.totalorder %s18, 1
      %p162 = scmp.ne.s32.totalorder %s157, %s159
      %p163 = scmp.eq.s32.totalorder %s18, 0
      %p164 = por %p162, %p163
      %p165 = scmp.ne.s32.totalorder %s157, %s159
      %p166 = scmp.eq.s32.totalorder %s23, 1
      %p167 = por %p165, %p166
      %p168 = scmp.ne.s32.totalorder %s159, %s160
      %p169 = scmp.eq.s32.totalorder %s23, 0
      %p170 = por %p168, %p169
      %p171 = scmp.ne.s32.totalorder %s159, %s160
      %p172 = scmp.eq.s32.totalorder %s24, 1
      %p173 = por %p171, %p172
      %p175 = scmp.ne.s32.totalorder %s160, %s174
      %p176 = scmp.eq.s32.totalorder %s24, 0
      %p177 = por %p175, %p176
      %s179 = sadd.s32 %s178, 1
      %p182 = scmp.eq.s32.totalorder %s18, 1
      %p183 = scmp.ne.s32.totalorder %s178, %s180
      %p184 = scmp.eq.s32.totalorder %s18, 0
      %p185 = por %p183, %p184
      %p186 = scmp.ne.s32.totalorder %s178, %s180
      %p187 = scmp.eq.s32.totalorder %s23, 1
      %p188 = por %p186, %p187
      %p189 = scmp.ne.s32.totalorder %s180, %s181
      %p190 = scmp.eq.s32.totalorder %s23, 0
      %p191 = por %p189, %p190
      %p192 = scmp.ne.s32.totalorder %s180, %s181
      %p193 = scmp.eq.s32.totalorder %s24, 1
      %p194 = por %p192, %p193
      %p196 = scmp.ne.s32.totalorder %s181, %s195
      %p197 = scmp.eq.s32.totalorder %s24, 0
      %p198 = por %p196, %p197
      %s200 = sadd.s32 %s199, 1
      %p203 = scmp.eq.s32.totalorder %s18, 1
      %p204 = scmp.ne.s32.totalorder %s199, %s201
      %p205 = scmp.eq.s32.totalorder %s18, 0
      %p206 = por %p204, %p205
      %p207 = scmp.ne.s32.totalorder %s199, %s201
      %p208 = scmp.eq.s32.totalorder %s23, 1
      %p209 = por %p207, %p208
      %p210 = scmp.ne.s32.totalorder %s201, %s202
      %p211 = scmp.eq.s32.totalorder %s23, 0
      %p212 = por %p210, %p211
      %p213 = scmp.ne.s32.totalorder %s201, %s202
      %p214 = scmp.eq.s32.totalorder %s24, 1
      %p215 = por %p213, %p214
      %p217 = scmp.ne.s32.totalorder %s202, %s216
      %p218 = scmp.eq.s32.totalorder %s24, 0
      %p219 = por %p217, %p218
      %s220 = ssub.s32 %s18, %s25
      %p221 = scmp.eq.s32.totalorder %s220, 0
      %s223 = sadd.s32 %s222, 1
      %s224 = scalar_select %p221, %s222, %s223
      %p227 = pneg %p221
      %p228 = scmp.eq.s32.totalorder %s18, 1
      %p229 = por %p227, %p228
      %p230 = scmp.ne.s32.totalorder %s222, %s225
      %p231 = scmp.eq.s32.totalorder %s18, 0
      %p232 = por %p230, %p231
      %p233 = scmp.ne.s32.totalorder %s222, %s225
      %p234 = scmp.eq.s32.totalorder %s23, 1
      %p235 = por %p233, %p234
      %p236 = scmp.ne.s32.totalorder %s225, %s226
      %p237 = scmp.eq.s32.totalorder %s23, 0
      %p238 = por %p236, %p237
      %p239 = scmp.ne.s32.totalorder %s225, %s226
      %p240 = scmp.eq.s32.totalorder %s24, 1
      %p241 = por %p239, %p240
      %p243 = scmp.ne.s32.totalorder %s226, %s242
      %p244 = scmp.eq.s32.totalorder %s24, 0
      %p245 = por %p243, %p244
      %p246 = scmp.le.s32.totalorder 1, %s18
      %p247 = scmp.lt.s32.totalorder %s18, 3
      %p248 = pnand %p246, %p247
      %p249 = pneg %p248
      // Predicated region
      $region9: #{tpu_custom_call.1} parent=5 // pred_check
        _
      $region10: #{tpu_custom_call.1} parent=5 // pred_check_branch
        %251 = sbr.rel (%p248) target = $region12
      $region11: #{tpu_custom_call.1} parent=5 // pred_region
        %s252 = ssub.s32 %s18, 1
        // Predicated region
        $region13: #{tpu_custom_call.1} parent=11 // pred_check
          %p253 = pneg %p65
        $region14: #{tpu_custom_call.1} parent=11 // pred_check_branch
          %255 = sbr.rel (%p253) target = $region16
        $region15: #{tpu_custom_call.1} parent=11 // pred_region
          _
        $region16: #{tpu_custom_call.1} parent=11 // pred_fallthru
          _
        // Predicated region
        $region17: #{tpu_custom_call.1} parent=11 // pred_check
          %p256 = pneg %p86
        $region18: #{tpu_custom_call.1} parent=11 // pred_check_branch
          %258 = sbr.rel (%p256) target = $region20
        $region19: #{tpu_custom_call.1} parent=11 // pred_region
          _
        $region20: #{tpu_custom_call.1} parent=11 // pred_fallthru
          _
        // Predicated region
        $region21: #{tpu_custom_call.1} parent=11 // pred_check
          %p259 = pneg %p107
        $region22: #{tpu_custom_call.1} parent=11 // pred_check_branch
          %261 = sbr.rel (%p259) target = $region24
        $region23: #{tpu_custom_call.1} parent=11 // pred_region
          _
        $region24: #{tpu_custom_call.1} parent=11 // pred_fallthru
          _
        // Predicated region
        $region25: #{tpu_custom_call.1} parent=11 // pred_check
          %p262 = pneg %p128
        $region26: #{tpu_custom_call.1} parent=11 // pred_check_branch
          %264 = sbr.rel (%p262) target = $region28
        $region27: #{tpu_custom_call.1} parent=11 // pred_region
          _
        $region28: #{tpu_custom_call.1} parent=11 // pred_fallthru
          _
        // Predicated region
        $region29: #{tpu_custom_call.1} parent=11 // pred_check
          %p265 = pneg %p149
        $region30: #{tpu_custom_call.1} parent=11 // pred_check_branch
          %267 = sbr.rel (%p265) target = $region32
        $region31: #{tpu_custom_call.1} parent=11 // pred_region
          _
        $region32: #{tpu_custom_call.1} parent=11 // pred_fallthru
          _
        // Predicated region
        $region33: #{tpu_custom_call.1} parent=11 // pred_check
          %p268 = pneg %p170
        $region34: #{tpu_custom_call.1} parent=11 // pred_check_branch
          %270 = sbr.rel (%p268) target = $region36
        $region35: #{tpu_custom_call.1} parent=11 // pred_region
          _
        $region36: #{tpu_custom_call.1} parent=11 // pred_fallthru
          _
        // Predicated region
        $region37: #{tpu_custom_call.1} parent=11 // pred_check
          %p271 = pneg %p191
        $region38: #{tpu_custom_call.1} parent=11 // pred_check_branch
          %273 = sbr.rel (%p271) target = $region40
        $region39: #{tpu_custom_call.1} parent=11 // pred_region
          _
        $region40: #{tpu_custom_call.1} parent=11 // pred_fallthru
          _
        // Predicated region
        $region41: #{tpu_custom_call.1} parent=11 // pred_check
          %p274 = pneg %p212
        $region42: #{tpu_custom_call.1} parent=11 // pred_check_branch
          %276 = sbr.rel (%p274) target = $region44
        $region43: #{tpu_custom_call.1} parent=11 // pred_region
          _
        $region44: #{tpu_custom_call.1} parent=11 // pred_fallthru
          _
      $region12: #{tpu_custom_call.1} parent=5 // pred_fallthru
        _
      %p277 = scmp.lt.s32.totalorder %s18, 2
      // Predicated region
      $region45: #{tpu_custom_call.1} parent=5 // pred_check
        %p278 = pneg %p277
      $region46: #{tpu_custom_call.1} parent=5 // pred_check_branch
        %280 = sbr.rel (%p278) target = $region48
      $region47: #{tpu_custom_call.1} parent=5 // pred_region
        // Predicated region
        $region49: #{tpu_custom_call.1} parent=47 // pred_check
          %p281 = pneg %p38
        $region50: #{tpu_custom_call.1} parent=47 // pred_check_branch
          %283 = sbr.rel (%p281) target = $region52
        $region51: #{tpu_custom_call.1} parent=47 // pred_region
          %p284 = scmp.lt.s32.totalorder %s18, 1
          %s285 = scalar_select %p284, %s18, 1
          %s286 = smul.addr %s285, 8
          %s287 = smul.addr %s286, 4
          %s288 = scalar_lea.vmem %s0, %s287
        $region52: #{tpu_custom_call.1} parent=47 // pred_fallthru
          _
      $region48: #{tpu_custom_call.1} parent=5 // pred_fallthru
        _
      %p289 = scmp.le.s32.totalorder 1, %s18
      %p290 = scmp.lt.s32.totalorder %s18, 3
      %p291 = pnand %p289, %p290
      %p292 = pneg %p291
      // Predicated region
      $region53: #{tpu_custom_call.1} parent=5 // pred_check
        _
      $region54: #{tpu_custom_call.1} parent=5 // pred_check_branch
        %294 = sbr.rel (%p291) target = $region56
      $region55: #{tpu_custom_call.1} parent=5 // pred_region
        %s295 = ssub.s32 %s18, 1
        %p296 = scmp.lt.s32.totalorder %s23, 1
        %s297 = scalar_select %p296, %s23, 1
        %s298 = smul.addr %s297, 8
        %s299 = smul.addr %s298, 4
        %s300 = scalar_lea.vmem %s0, %s299
        %p301 = pneg %p44
        %p302 = pneg %p41
        %p303 = pneg %p65
        %p304 = pneg %p62
        %p305 = pneg %p86
        %p306 = pneg %p83
        %p307 = pneg %p107
        %p308 = pneg %p104
        %p309 = pneg %p128
        %p310 = pneg %p125
        %p311 = pneg %p149
        %p312 = pneg %p146
        %p313 = pneg %p170
        %p314 = pneg %p167
        %p315 = pneg %p191
        %p316 = pneg %p188
        %p317 = pneg %p212
        %p318 = pneg %p209
        %p319 = pneg %p238
        %p320 = pneg %p235
        %s321 = sand.u32 %s225, 1
        %s322 = scalar_lea.sflag [#allocation3], %s321
        %s323 = sand.u32 %s225, 1
        %s324 = smul.addr %s323, 32
        %s325 = scalar_lea.vmem [#allocation2], %s324
        %p326 = scmp.lt.s32.totalorder %s23, 1
        %s327 = scalar_select %p326, %s23, 1
        %s328 = smul.addr %s327, 8
        %s329 = smul.addr %s328, 4
        %s330 = scalar_lea.vmem %s0, %s329
        %v332 = vld [vmem:[%s330] sm:$0xf]
        %v333 = vld [vmem:[%s330 + $0x4] sm:$0xf]
        %v334 = vld [vmem:[%s330 + $0x8] sm:$0xf]
        %v335 = vld [vmem:[%s330 + $0xc] sm:$0xf]
        %v336 = vld [vmem:[%s330 + $0x10] sm:$0xf]
        %v337 = vld [vmem:[%s330 + $0x14] sm:$0xf]
        %v338 = vld [vmem:[%s330 + $0x18] sm:$0xf]
        %v339 = vld [vmem:[%s330 + $0x1c] sm:$0xf]
        %v340 = vunpack.c.l.bf16 %v332
        %v341 = vunpack.c.l.bf16 %v333
        %v342 = vunpack.c.l.bf16 %v334
        %v343 = vunpack.c.l.bf16 %v335
        %v344 = vunpack.c.l.bf16 %v336
        %v345 = vunpack.c.l.bf16 %v337
        %v346 = vunpack.c.l.bf16 %v338
        %v347 = vunpack.c.l.bf16 %v339
        %v348 = vld [vmem:[%s1] sm:$0xff]
        %v349 = vld [vmem:[%s1 + $0x8] sm:$0xff]
        %v350 = vld [vmem:[%s1 + $0x10] sm:$0xff]
        %v351 = vld [vmem:[%s1 + $0x18] sm:$0xff]
        %v352 = vld [vmem:[%s1 + $0x20] sm:$0xff]
        %v353 = vld [vmem:[%s1 + $0x28] sm:$0xff]
        %v354 = vld [vmem:[%s1 + $0x30] sm:$0xff]
        %v355 = vld [vmem:[%s1 + $0x38] sm:$0xff]
        %v356 = vadd.f32 %v340, %v348
        %v357 = vadd.f32 %v341, %v349
        %v358 = vadd.f32 %v342, %v350
        %v359 = vadd.f32 %v343, %v351
        %v360 = vadd.f32 %v344, %v352
        %v361 = vadd.f32 %v345, %v353
        %v362 = vadd.f32 %v346, %v354
        %v363 = vadd.f32 %v347, %v355
        %v364 = vld [vmem:[%s5] sm:$0xff]
        %v365 = vld [vmem:[%s5 + $0x8] sm:$0xff]
        %v366 = vld [vmem:[%s5 + $0x10] sm:$0xff]
        %v367 = vld [vmem:[%s5 + $0x18] sm:$0xff]
        %v368 = vld [vmem:[%s5 + $0x20] sm:$0xff]
        %v369 = vld [vmem:[%s5 + $0x28] sm:$0xff]
        %v370 = vld [vmem:[%s5 + $0x30] sm:$0xff]
        %v371 = vld [vmem:[%s5 + $0x38] sm:$0xff]
        %v372 = vadd.f32 %v356, %v357
        %v373 = vadd.f32 %v372, %v358
        %v374 = vadd.f32 %v373, %v359
        %v375 = vadd.f32 %v374, %v360
        %v376 = vadd.f32 %v375, %v361
        %v377 = vadd.f32 %v376, %v362
        %v378 = vadd.f32 %v377, %v363
        %379 = vadd.xlane.f32.xlu0 %v378
        %v380 = vpop.xlane.xlu0 %379
        %v381 = vrot.slane %v380, 4
        %v382 = vadd.f32 %v380, %v381
        %v383 = vrot.slane %v382, 2
        %v384 = vadd.f32 %v382, %v383
        %v385 = vrot.slane %v384, 1
        %v386 = vadd.f32 %v384, %v385
        %s387 = vtos %v386
        %v388 = vstv %s387
        %v389 = vrcp.pop 8192.0
        %v390 = vmul.f32 8192.0, %v389
        %v391 = vsub.f32 1.0, %v390
        %v392 = vmul.f32 %v389, %v391
        %v393 = vadd.f32 %v389, %v392
        %vm394 = vweird.f32 %v389
        %v395 = vsel %vm394, %v389, %v393
        %v396 = vmul.f32 %v388, %v395
        %v397 = vmul.f32 %v356, %v356
        %v398 = vmul.f32 %v357, %v357
        %v399 = vmul.f32 %v358, %v358
        %v400 = vmul.f32 %v359, %v359
        %v401 = vmul.f32 %v360, %v360
        %v402 = vmul.f32 %v361, %v361
        %v403 = vmul.f32 %v362, %v362
        %v404 = vmul.f32 %v363, %v363
        %v405 = vadd.f32 %v397, %v398
        %v406 = vadd.f32 %v405, %v399
        %v407 = vadd.f32 %v406, %v400
        %v408 = vadd.f32 %v407, %v401
        %v409 = vadd.f32 %v408, %v402
        %v410 = vadd.f32 %v409, %v403
        %v411 = vadd.f32 %v410, %v404
        %412 = vadd.xlane.f32.xlu0 %v411
        %v413 = vpop.xlane.xlu0 %412
        %v414 = vrot.slane %v413, 4
        %v415 = vadd.f32 %v413, %v414
        %v416 = vrot.slane %v415, 2
        %v417 = vadd.f32 %v415, %v416
        %v418 = vrot.slane %v417, 1
        %v419 = vadd.f32 %v417, %v418
        %s420 = vtos %v419
        %v421 = vstv %s420
        %v422 = vmul.f32 %v421, %v395
        %v423 = vmul.f32 %v396, %v396
        %v424 = vsub.f32 %v422, %v423
        %v425 = vmax.f32 %v424, 0.0
        %v426 = vsub.f32 %v356, %v396
        %v427 = vsub.f32 %v357, %v396
        %v428 = vsub.f32 %v358, %v396
        %v429 = vsub.f32 %v359, %v396
        %v430 = vsub.f32 %v360, %v396
        %v431 = vsub.f32 %v361, %v396
        %v432 = vsub.f32 %v362, %v396
        %v433 = vsub.f32 %v363, %v396
        %v434 = vadd.f32 %v425, 1e-08
        %v435 = vrsqrt.pop %v434
        %v436 = vmul.f32 %v435, %v434
        %v437 = vmul.f32 %v436, %v435
        %v438 = vmul.f32 0.5, %v437
        %v439 = vsub.f32 1.5, %v438
        %v440 = vmul.f32 %v435, %v439
        %vm441 = vweird.f32 %v434
        %vm442 = vweird.f32 %v435
        %vm443 = vmor %vm441, %vm442
        %v444 = vsel %vm443, %v435, %v440
        %v445 = vmul.f32 %v426, %v444
        %v446 = vmul.f32 %v427, %v444
        %v447 = vmul.f32 %v428, %v444
        %v448 = vmul.f32 %v429, %v444
        %v449 = vmul.f32 %v430, %v444
        %v450 = vmul.f32 %v431, %v444
        %v451 = vmul.f32 %v432, %v444
        %v452 = vmul.f32 %v433, %v444
        %454 = vset.pattern.permute.xlu0 0
        %455 = vperm.xlu0 %454, %v364
        %v456 = vpop.permute.xlu0 %455
        %459 = vset.pattern.permute.xlu0 0
        %460 = vperm.xlu0 %459, %v365
        %v461 = vpop.permute.xlu0 %460
        %464 = vset.pattern.permute.xlu0 0
        %465 = vperm.xlu0 %464, %v366
        %v466 = vpop.permute.xlu0 %465
        %469 = vset.pattern.permute.xlu0 0
        %470 = vperm.xlu0 %469, %v367
        %v471 = vpop.permute.xlu0 %470
        %474 = vset.pattern.permute.xlu0 0
        %475 = vperm.xlu0 %474, %v368
        %v476 = vpop.permute.xlu0 %475
        %479 = vset.pattern.permute.xlu0 0
        %480 = vperm.xlu0 %479, %v369
        %v481 = vpop.permute.xlu0 %480
        %484 = vset.pattern.permute.xlu0 0
        %485 = vperm.xlu0 %484, %v370
        %v486 = vpop.permute.xlu0 %485
        %489 = vset.pattern.permute.xlu0 0
        %490 = vperm.xlu0 %489, %v371
        %v491 = vpop.permute.xlu0 %490
        %v493 = vmul.f32 %v445, %v456
        %v494 = vmul.f32 %v446, %v461
        %v495 = vmul.f32 %v447, %v466
        %v496 = vmul.f32 %v448, %v471
        %v497 = vmul.f32 %v449, %v476
        %v498 = vmul.f32 %v450, %v481
        %v499 = vmul.f32 %v451, %v486
        %v500 = vmul.f32 %v452, %v491
        %501 = vset.pattern.permute.xlu0 1
        %502 = vperm.xlu0 %501, %v364
        %v503 = vpop.permute.xlu0 %502
        %505 = vset.pattern.permute.xlu0 1
        %506 = vperm.xlu0 %505, %v365
        %v507 = vpop.permute.xlu0 %506
        %509 = vset.pattern.permute.xlu0 1
        %510 = vperm.xlu0 %509, %v366
        %v511 = vpop.permute.xlu0 %510
        %513 = vset.pattern.permute.xlu0 1
        %514 = vperm.xlu0 %513, %v367
        %v515 = vpop.permute.xlu0 %514
        %517 = vset.pattern.permute.xlu0 1
        %518 = vperm.xlu0 %517, %v368
        %v519 = vpop.permute.xlu0 %518
        %521 = vset.pattern.permute.xlu0 1
        %522 = vperm.xlu0 %521, %v369
        %v523 = vpop.permute.xlu0 %522
        %525 = vset.pattern.permute.xlu0 1
        %526 = vperm.xlu0 %525, %v370
        %v527 = vpop.permute.xlu0 %526
        %529 = vset.pattern.permute.xlu0 1
        %530 = vperm.xlu0 %529, %v371
        %v531 = vpop.permute.xlu0 %530
        %v533 = vadd.f32 %v493, %v503
        %v534 = vadd.f32 %v494, %v507
        %v535 = vadd.f32 %v495, %v511
        %v536 = vadd.f32 %v496, %v515
        %v537 = vadd.f32 %v497, %v519
        %v538 = vadd.f32 %v498, %v523
        %v539 = vadd.f32 %v499, %v527
        %v540 = vadd.f32 %v500, %v531
        %v541 = vpack.c.bf16 %v534, %v533
        %v542 = vpack.c.bf16 %v536, %v535
        %v543 = vpack.c.bf16 %v538, %v537
        %v544 = vpack.c.bf16 %v540, %v539
        %v545 = vld [vmem:[%s2] sm:$0xf]
        %v546 = vld [vmem:[%s2 + $0x4] sm:$0xf]
        %v547 = vld [vmem:[%s2 + $0x8] sm:$0xf]
        %v548 = vld [vmem:[%s2 + $0xc] sm:$0xf]
        %v549 = vld [vmem:[%s2 + $0x10] sm:$0xf]
        %v550 = vld [vmem:[%s2 + $0x14] sm:$0xf]
        %v551 = vld [vmem:[%s2 + $0x18] sm:$0xf]
        %v552 = vld [vmem:[%s2 + $0x1c] sm:$0xf]
        %v553 = vld [vmem:[%s2 + $0x20] sm:$0xf]
        %v554 = vld [vmem:[%s2 + $0x24] sm:$0xf]
        %v555 = vld [vmem:[%s2 + $0x28] sm:$0xf]
        %v556 = vld [vmem:[%s2 + $0x2c] sm:$0xf]
        %v557 = vld [vmem:[%s2 + $0x30] sm:$0xf]
        %v558 = vld [vmem:[%s2 + $0x34] sm:$0xf]
        %v559 = vld [vmem:[%s2 + $0x38] sm:$0xf]
        %v560 = vld [vmem:[%s2 + $0x3c] sm:$0xf]
        %v561 = vld [vmem:[%s2 + $0x40] sm:$0xf]
        %v562 = vld [vmem:[%s2 + $0x44] sm:$0xf]
        %v563 = vld [vmem:[%s2 + $0x48] sm:$0xf]
        %v564 = vld [vmem:[%s2 + $0x4c] sm:$0xf]
        %v565 = vld [vmem:[%s2 + $0x50] sm:$0xf]
        %v566 = vld [vmem:[%s2 + $0x54] sm:$0xf]
        %v567 = vld [vmem:[%s2 + $0x58] sm:$0xf]
        %v568 = vld [vmem:[%s2 + $0x5c] sm:$0xf]
        %v569 = vld [vmem:[%s3] sm:$0xff]
        %v570 = vld [vmem:[%s3 + $0x8] sm:$0xff]
        %v571 = vld [vmem:[%s3 + $0x10] sm:$0xff]
        %v572 = vld [vmem:[%s3 + $0x18] sm:$0xff]
        %v573 = vld [vmem:[%s3 + $0x20] sm:$0xff]
        %v574 = vld [vmem:[%s3 + $0x28] sm:$0xff]
        %v575 = vld [vmem:[%s3 + $0x30] sm:$0xff]
        %v576 = vld [vmem:[%s3 + $0x38] sm:$0xff]
        %v577 = vld [vmem:[%s3 + $0x40] sm:$0xff]
        %v578 = vld [vmem:[%s3 + $0x48] sm:$0xff]
        %v579 = vld [vmem:[%s3 + $0x50] sm:$0xff]
        %v580 = vld [vmem:[%s3 + $0x58] sm:$0xff]
        %v581 = vld [vmem:[%s3 + $0x60] sm:$0xff]
        %v582 = vld [vmem:[%s3 + $0x68] sm:$0xff]
        %v583 = vld [vmem:[%s3 + $0x70] sm:$0xff]
        %v584 = vld [vmem:[%s3 + $0x78] sm:$0xff]
        %v585 = vld [vmem:[%s3 + $0x80] sm:$0xff]
        %v586 = vld [vmem:[%s3 + $0x88] sm:$0xff]
        %v587 = vld [vmem:[%s3 + $0x90] sm:$0xff]
        %v588 = vld [vmem:[%s3 + $0x98] sm:$0xff]
        %v589 = vld [vmem:[%s3 + $0xa0] sm:$0xff]
        %v590 = vld [vmem:[%s3 + $0xa8] sm:$0xff]
        %v591 = vld [vmem:[%s3 + $0xb0] sm:$0xff]
        %v592 = vld [vmem:[%s3 + $0xb8] sm:$0xff]
        %594 = vset.pattern.permute.xlu0 0
        %595 = vperm.xlu0 %594, %v569
        %v596 = vpop.permute.xlu0 %595
        %599 = vset.pattern.permute.xlu0 0
        %600 = vperm.xlu0 %599, %v570
        %v601 = vpop.permute.xlu0 %600
        %604 = vset.pattern.permute.xlu0 0
        %605 = vperm.xlu0 %604, %v571
        %v606 = vpop.permute.xlu0 %605
        %609 = vset.pattern.permute.xlu0 0
        %610 = vperm.xlu0 %609, %v572
        %v611 = vpop.permute.xlu0 %610
        %614 = vset.pattern.permute.xlu0 0
        %615 = vperm.xlu0 %614, %v573
        %v616 = vpop.permute.xlu0 %615
        %619 = vset.pattern.permute.xlu0 0
        %620 = vperm.xlu0 %619, %v574
        %v621 = vpop.permute.xlu0 %620
        %624 = vset.pattern.permute.xlu0 0
        %625 = vperm.xlu0 %624, %v575
        %v626 = vpop.permute.xlu0 %625
        %629 = vset.pattern.permute.xlu0 0
        %630 = vperm.xlu0 %629, %v576
        %v631 = vpop.permute.xlu0 %630
        %634 = vset.pattern.permute.xlu0 0
        %635 = vperm.xlu0 %634, %v577
        %v636 = vpop.permute.xlu0 %635
        %639 = vset.pattern.permute.xlu0 0
        %640 = vperm.xlu0 %639, %v578
        %v641 = vpop.permute.xlu0 %640
        %644 = vset.pattern.permute.xlu0 0
        %645 = vperm.xlu0 %644, %v579
        %v646 = vpop.permute.xlu0 %645
        %649 = vset.pattern.permute.xlu0 0
        %650 = vperm.xlu0 %649, %v580
        %v651 = vpop.permute.xlu0 %650
        %654 = vset.pattern.permute.xlu0 0
        %655 = vperm.xlu0 %654, %v581
        %v656 = vpop.permute.xlu0 %655
        %659 = vset.pattern.permute.xlu0 0
        %660 = vperm.xlu0 %659, %v582
        %v661 = vpop.permute.xlu0 %660
        %664 = vset.pattern.permute.xlu0 0
        %665 = vperm.xlu0 %664, %v583
        %v666 = vpop.permute.xlu0 %665
        %669 = vset.pattern.permute.xlu0 0
        %670 = vperm.xlu0 %669, %v584
        %v671 = vpop.permute.xlu0 %670
        %674 = vset.pattern.permute.xlu0 0
        %675 = vperm.xlu0 %674, %v585
        %v676 = vpop.permute.xlu0 %675
        %679 = vset.pattern.permute.xlu0 0
        %680 = vperm.xlu0 %679, %v586
        %v681 = vpop.permute.xlu0 %680
        %684 = vset.pattern.permute.xlu0 0
        %685 = vperm.xlu0 %684, %v587
        %v686 = vpop.permute.xlu0 %685
        %689 = vset.pattern.permute.xlu0 0
        %690 = vperm.xlu0 %689, %v588
        %v691 = vpop.permute.xlu0 %690
        %694 = vset.pattern.permute.xlu0 0
        %695 = vperm.xlu0 %694, %v589
        %v696 = vpop.permute.xlu0 %695
        %699 = vset.pattern.permute.xlu0 0
        %700 = vperm.xlu0 %699, %v590
        %v701 = vpop.permute.xlu0 %700
        %704 = vset.pattern.permute.xlu0 0
        %705 = vperm.xlu0 %704, %v591
        %v706 = vpop.permute.xlu0 %705
        %709 = vset.pattern.permute.xlu0 0
        %710 = vperm.xlu0 %709, %v592
        %v711 = vpop.permute.xlu0 %710
        %v737 = vunpack.c.l.b16 %v545
        %v738 = vunpack.c.l.b16 %v546
        %v739 = vunpack.c.l.b16 %v547
        %v740 = vunpack.c.l.b16 %v548
        %v741 = vunpack.c.l.b16 %v549
        %v742 = vunpack.c.l.b16 %v550
        %v743 = vunpack.c.l.b16 %v551
        %v744 = vunpack.c.l.b16 %v552
        %v745 = vunpack.c.l.b16 %v553
        %v746 = vunpack.c.l.b16 %v554
        %v747 = vunpack.c.l.b16 %v555
        %v748 = vunpack.c.l.b16 %v556
        %v749 = vunpack.c.l.b16 %v557
        %v750 = vunpack.c.l.b16 %v558
        %v751 = vunpack.c.l.b16 %v559
        %v752 = vunpack.c.l.b16 %v560
        %v753 = vunpack.c.l.b16 %v561
        %v754 = vunpack.c.l.b16 %v562
        %v755 = vunpack.c.l.b16 %v563
        %v756 = vunpack.c.l.b16 %v564
        %v757 = vunpack.c.l.b16 %v565
        %v758 = vunpack.c.l.b16 %v566
        %v759 = vunpack.c.l.b16 %v567
        %v760 = vunpack.c.l.b16 %v568
        %v761 = vpack.c.b16 %v738, %v737
        %v762 = vpack.c.b16 %v740, %v739
        %v763 = vpack.c.b16 %v742, %v741
        %v764 = vpack.c.b16 %v744, %v743
        %v765 = vpack.c.b16 %v746, %v745
        %v766 = vpack.c.b16 %v748, %v747
        %v767 = vpack.c.b16 %v750, %v749
        %v768 = vpack.c.b16 %v752, %v751
        %v769 = vpack.c.b16 %v754, %v753
        %v770 = vpack.c.b16 %v756, %v755
        %v771 = vpack.c.b16 %v758, %v757
        %v772 = vpack.c.b16 %v760, %v759
        %vm773 = vcmask 523264
        %v775 = vsel %vm773, %v761, 0
        %v778 = vsel %vm773, %v762, 0
        %v781 = vsel %vm773, %v763, 0
        %v784 = vsel %vm773, %v764, 0
        %v787 = vsel %vm773, %v765, 0
        %v790 = vsel %vm773, %v766, 0
        %v793 = vsel %vm773, %v767, 0
        %v796 = vsel %vm773, %v768, 0
        %v799 = vsel %vm773, %v769, 0
        %v802 = vsel %vm773, %v770, 0
        %v805 = vsel %vm773, %v771, 0
        %v808 = vsel %vm773, %v772, 0
        %810 = vmatpush.bf16.msra.mxu0 0
        %811 = vmatpush.bf16.msra.mxu0 0
        %812 = vmatpush.bf16.msra.mxu0 0
        %813 = vmatpush.bf16.msra.mxu0 0
        %814 = vmatpush.bf16.msra.mxu0 %v544
        %815 = vmatpush.bf16.msra.mxu0 %v543
        %816 = vmatpush.bf16.msra.mxu0 %v542
        %817 = vmatpush.bf16.msra.mxu0 %v541
        %818 = vmatmul.bf16.gmra.mxu0 %v775
        %v819 = vpop.f32.mrf.mxu0
        %v820 = vadd.f32 %v596, %v819
        %v821 = vpop.f32.mrf.mxu0
        %v822 = vadd.f32 %v601, %v821
        %823 = vmatmul.bf16.gmra.mxu0 %v778
        %v824 = vpop.f32.mrf.mxu0
        %v825 = vadd.f32 %v606, %v824
        %v826 = vpop.f32.mrf.mxu0
        %v827 = vadd.f32 %v611, %v826
        %828 = vmatmul.bf16.gmra.mxu0 %v781
        %v829 = vpop.f32.mrf.mxu0
        %v830 = vadd.f32 %v616, %v829
        %v831 = vpop.f32.mrf.mxu0
        %v832 = vadd.f32 %v621, %v831
        %833 = vmatmul.bf16.gmra.mxu0 %v784
        %v834 = vpop.f32.mrf.mxu0
        %v835 = vadd.f32 %v626, %v834
        %v836 = vpop.f32.mrf.mxu0
        %v837 = vadd.f32 %v631, %v836
        %838 = vmatmul.bf16.gmra.mxu0 %v787
        %v839 = vpop.f32.mrf.mxu0
        %v840 = vadd.f32 %v636, %v839
        %v841 = vpop.f32.mrf.mxu0
        %v842 = vadd.f32 %v641, %v841
        %843 = vmatmul.bf16.gmra.mxu0 %v790
        %v844 = vpop.f32.mrf.mxu0
        %v845 = vadd.f32 %v646, %v844
        %v846 = vpop.f32.mrf.mxu0
        %v847 = vadd.f32 %v651, %v846
        %848 = vmatmul.bf16.gmra.mxu0 %v793
        %v849 = vpop.f32.mrf.mxu0
        %v850 = vadd.f32 %v656, %v849
        %v851 = vpop.f32.mrf.mxu0
        %v852 = vadd.f32 %v661, %v851
        %853 = vmatmul.bf16.gmra.mxu0 %v796
        %v854 = vpop.f32.mrf.mxu0
        %v855 = vadd.f32 %v666, %v854
        %v856 = vpop.f32.mrf.mxu0
        %v857 = vadd.f32 %v671, %v856
        %858 = vmatmul.bf16.gmra.mxu0 %v799
        %v859 = vpop.f32.mrf.mxu0
        %v860 = vadd.f32 %v676, %v859
        %v861 = vpop.f32.mrf.mxu0
        %v862 = vadd.f32 %v681, %v861
        %863 = vmatmul.bf16.gmra.mxu0 %v802
        %v864 = vpop.f32.mrf.mxu0
        %v865 = vadd.f32 %v686, %v864
        %v866 = vpop.f32.mrf.mxu0
        %v867 = vadd.f32 %v691, %v866
        %868 = vmatmul.bf16.gmra.mxu0 %v805
        %v869 = vpop.f32.mrf.mxu0
        %v870 = vadd.f32 %v696, %v869
        %v871 = vpop.f32.mrf.mxu0
        %v872 = vadd.f32 %v701, %v871
        %873 = vmatmul.bf16.gmra.mxu0 %v808
        %v874 = vpop.f32.mrf.mxu0
        %v875 = vadd.f32 %v706, %v874
        %v876 = vpop.f32.mrf.mxu0
        %v877 = vadd.f32 %v711, %v876
        %878 = vdwg.mxu0
        %v879 = vpack.c.bf16 %v820, %v820
        %v880 = vpack.c.bf16 %v822, %v822
        %v881 = vpack.c.bf16 %v825, %v825
        %v882 = vpack.c.bf16 %v827, %v827
        %v883 = vpack.c.bf16 %v830, %v830
        %v884 = vpack.c.bf16 %v832, %v832
        %v885 = vpack.c.bf16 %v835, %v835
        %v886 = vpack.c.bf16 %v837, %v837
        %v887 = vpack.c.bf16 %v840, %v840
        %v888 = vpack.c.bf16 %v842, %v842
        %v889 = vpack.c.bf16 %v845, %v845
        %v890 = vpack.c.bf16 %v847, %v847
        %v891 = vpack.c.bf16 %v850, %v850
        %v892 = vpack.c.bf16 %v852, %v852
        %v893 = vpack.c.bf16 %v855, %v855
        %v894 = vpack.c.bf16 %v857, %v857
        %v895 = vpack.c.bf16 %v860, %v860
        %v896 = vpack.c.bf16 %v862, %v862
        %v897 = vpack.c.bf16 %v865, %v865
        %v898 = vpack.c.bf16 %v867, %v867
        %v899 = vpack.c.bf16 %v870, %v870
        %v900 = vpack.c.bf16 %v872, %v872
        %v901 = vpack.c.bf16 %v875, %v875
        %v902 = vpack.c.bf16 %v877, %v877
        %v905 = vunpack.c.l.b16 %v879
        %v906 = vunpack.c.l.b16 %v880
        %v907 = vpack.c.b16 %v906, %v905
        %909 = vxpose.xlu0.c.b16.start [1/8] %v907, 128
        %910 = vxpose.xlu0.c.b16.cont [2/8] 0, 128
        %911 = vxpose.xlu0.c.b16.cont [3/8] 0, 128
        %912 = vxpose.xlu0.c.b16.cont [4/8] 0, 128
        %913 = vxpose.xlu0.c.b16.cont [5/8] 0, 128
        %914 = vxpose.xlu0.c.b16.cont [6/8] 0, 128
        %915 = vxpose.xlu0.c.b16.cont [7/8] 0, 128
        %916 = vxpose.xlu0.c.b16.end [8/8] 0, 128
        %v917 = vpop.trf.xlu0
        %v918 = vpop.trf.xlu0
        %v919 = vpop.trf.xlu0
        %v920 = vpop.trf.xlu0
        %v921 = vpop.trf.xlu0
        %v922 = vpop.trf.xlu0
        %v923 = vpop.trf.xlu0
        %v924 = vpop.trf.xlu0
        %v927 = vunpack.c.l.b16 %v887
        %v928 = vunpack.c.l.b16 %v888
        %v929 = vpack.c.b16 %v928, %v927
        %vm931 = vcmask 130048
        %v933 = vsel %vm931, %v917, 0
        %v936 = vsel %vm931, %v918, 0
        %v939 = vsel %vm931, %v919, 0
        %v942 = vsel %vm931, %v920, 0
        %v945 = vsel %vm931, %v921, 0
        %v948 = vsel %vm931, %v922, 0
        %v951 = vsel %vm931, %v923, 0
        %v954 = vsel %vm931, %v924, 0
        %956 = vmatpush.bf16.msra.mxu0 0
        %957 = vmatpush.bf16.msra.mxu0 0
        %958 = vmatpush.bf16.msra.mxu0 0
        %959 = vmatpush.bf16.msra.mxu0 0
        %960 = vmatpush.bf16.msra.mxu0 0
        %961 = vmatpush.bf16.msra.mxu0 0
        %962 = vmatpush.bf16.msra.mxu0 0
        %963 = vmatpush.bf16.msra.mxu0 %v929
        %964 = vmatmul.bf16.gmra.mxu0 %v933
        %v965 = vpop.f32.mrf.mxu0
        %v966 = vadd.f32 0.0, %v965
        %v967 = vpop.f32.mrf.mxu0
        %v968 = vadd.f32 0.0, %v967
        %969 = vmatmul.bf16.gmra.mxu0 %v936
        %v970 = vpop.f32.mrf.mxu0
        %v971 = vadd.f32 0.0, %v970
        %v972 = vpop.f32.mrf.mxu0
        %v973 = vadd.f32 0.0, %v972
        %974 = vmatmul.bf16.gmra.mxu0 %v939
        %v975 = vpop.f32.mrf.mxu0
        %v976 = vadd.f32 0.0, %v975
        %v977 = vpop.f32.mrf.mxu0
        %v978 = vadd.f32 0.0, %v977
        %979 = vmatmul.bf16.gmra.mxu0 %v942
        %v980 = vpop.f32.mrf.mxu0
        %v981 = vadd.f32 0.0, %v980
        %v982 = vpop.f32.mrf.mxu0
        %v983 = vadd.f32 0.0, %v982
        %984 = vmatmul.bf16.gmra.mxu0 %v945
        %v985 = vpop.f32.mrf.mxu0
        %v986 = vadd.f32 0.0, %v985
        %v987 = vpop.f32.mrf.mxu0
        %v988 = vadd.f32 0.0, %v987
        %989 = vmatmul.bf16.gmra.mxu0 %v948
        %v990 = vpop.f32.mrf.mxu0
        %v991 = vadd.f32 0.0, %v990
        %v992 = vpop.f32.mrf.mxu0
        %v993 = vadd.f32 0.0, %v992
        %994 = vmatmul.bf16.gmra.mxu0 %v951
        %v995 = vpop.f32.mrf.mxu0
        %v996 = vadd.f32 0.0, %v995
        %v997 = vpop.f32.mrf.mxu0
        %v998 = vadd.f32 0.0, %v997
        %999 = vmatmul.bf16.gmra.mxu0 %v954
        %v1000 = vpop.f32.mrf.mxu0
        %v1001 = vadd.f32 0.0, %v1000
        %v1002 = vpop.f32.mrf.mxu0
        %v1003 = vadd.f32 0.0, %v1002
        %1004 = vdwg.mxu0
        %v1007 = vunpack.c.l.b16 %v881
        %v1008 = vunpack.c.l.b16 %v882
        %v1009 = vpack.c.b16 %v1008, %v1007
        %1011 = vxpose.xlu0.c.b16.start [1/8] %v1009, 128
        %1012 = vxpose.xlu0.c.b16.cont [2/8] 0, 128
        %1013 = vxpose.xlu0.c.b16.cont [3/8] 0, 128
        %1014 = vxpose.xlu0.c.b16.cont [4/8] 0, 128
        %1015 = vxpose.xlu0.c.b16.cont [5/8] 0, 128
        %1016 = vxpose.xlu0.c.b16.cont [6/8] 0, 128
        %1017 = vxpose.xlu0.c.b16.cont [7/8] 0, 128
        %1018 = vxpose.xlu0.c.b16.end [8/8] 0, 128
        %v1019 = vpop.trf.xlu0
        %v1020 = vpop.trf.xlu0
        %v1021 = vpop.trf.xlu0
        %v1022 = vpop.trf.xlu0
        %v1023 = vpop.trf.xlu0
        %v1024 = vpop.trf.xlu0
        %v1025 = vpop.trf.xlu0
        %v1026 = vpop.trf.xlu0
        %v1029 = vunpack.c.l.b16 %v889
        %v1030 = vunpack.c.l.b16 %v890
        %v1031 = vpack.c.b16 %v1030, %v1029
        %v1034 = vsel %vm931, %v1019, 0
        %v1037 = vsel %vm931, %v1020, 0
        %v1040 = vsel %vm931, %v1021, 0
        %v1043 = vsel %vm931, %v1022, 0
        %v1046 = vsel %vm931, %v1023, 0
        %v1049 = vsel %vm931, %v1024, 0
        %v1052 = vsel %vm931, %v1025, 0
        %v1055 = vsel %vm931, %v1026, 0
        %1057 = vmatpush.bf16.msra.mxu0 0
        %1058 = vmatpush.bf16.msra.mxu0 0
        %1059 = vmatpush.bf16.msra.mxu0 0
        %1060 = vmatpush.bf16.msra.mxu0 0
        %1061 = vmatpush.bf16.msra.mxu0 0
        %1062 = vmatpush.bf16.msra.mxu0 0
        %1063 = vmatpush.bf16.msra.mxu0 0
        %1064 = vmatpush.bf16.msra.mxu0 %v1031
        %1065 = vmatmul.bf16.gmra.mxu0 %v1034
        %v1066 = vpop.f32.mrf.mxu0
        %v1067 = vadd.f32 0.0, %v1066
        %v1068 = vpop.f32.mrf.mxu0
        %v1069 = vadd.f32 0.0, %v1068
        %1070 = vmatmul.bf16.gmra.mxu0 %v1037
        %v1071 = vpop.f32.mrf.mxu0
        %v1072 = vadd.f32 0.0, %v1071
        %v1073 = vpop.f32.mrf.mxu0
        %v1074 = vadd.f32 0.0, %v1073
        %1075 = vmatmul.bf16.gmra.mxu0 %v1040
        %v1076 = vpop.f32.mrf.mxu0
        %v1077 = vadd.f32 0.0, %v1076
        %v1078 = vpop.f32.mrf.mxu0
        %v1079 = vadd.f32 0.0, %v1078
        %1080 = vmatmul.bf16.gmra.mxu0 %v1043
        %v1081 = vpop.f32.mrf.mxu0
        %v1082 = vadd.f32 0.0, %v1081
        %v1083 = vpop.f32.mrf.mxu0
        %v1084 = vadd.f32 0.0, %v1083
        %1085 = vmatmul.bf16.gmra.mxu0 %v1046
        %v1086 = vpop.f32.mrf.mxu0
        %v1087 = vadd.f32 0.0, %v1086
        %v1088 = vpop.f32.mrf.mxu0
        %v1089 = vadd.f32 0.0, %v1088
        %1090 = vmatmul.bf16.gmra.mxu0 %v1049
        %v1091 = vpop.f32.mrf.mxu0
        %v1092 = vadd.f32 0.0, %v1091
        %v1093 = vpop.f32.mrf.mxu0
        %v1094 = vadd.f32 0.0, %v1093
        %1095 = vmatmul.bf16.gmra.mxu0 %v1052
        %v1096 = vpop.f32.mrf.mxu0
        %v1097 = vadd.f32 0.0, %v1096
        %v1098 = vpop.f32.mrf.mxu0
        %v1099 = vadd.f32 0.0, %v1098
        %1100 = vmatmul.bf16.gmra.mxu0 %v1055
        %v1101 = vpop.f32.mrf.mxu0
        %v1102 = vadd.f32 0.0, %v1101
        %v1103 = vpop.f32.mrf.mxu0
        %v1104 = vadd.f32 0.0, %v1103
        %1105 = vdwg.mxu0
        %v1108 = vunpack.c.l.b16 %v883
        %v1109 = vunpack.c.l.b16 %v884
        %v1110 = vpack.c.b16 %v1109, %v1108
        %1112 = vxpose.xlu0.c.b16.start [1/8] %v1110, 128
        %1113 = vxpose.xlu0.c.b16.cont [2/8] 0, 128
        %1114 = vxpose.xlu0.c.b16.cont [3/8] 0, 128
        %1115 = vxpose.xlu0.c.b16.cont [4/8] 0, 128
        %1116 = vxpose.xlu0.c.b16.cont [5/8] 0, 128
        %1117 = vxpose.xlu0.c.b16.cont [6/8] 0, 128
        %1118 = vxpose.xlu0.c.b16.cont [7/8] 0, 128
        %1119 = vxpose.xlu0.c.b16.end [8/8] 0, 128
        %v1120 = vpop.trf.xlu0
        %v1121 = vpop.trf.xlu0
        %v1122 = vpop.trf.xlu0
        %v1123 = vpop.trf.xlu0
        %v1124 = vpop.trf.xlu0
        %v1125 = vpop.trf.xlu0
        %v1126 = vpop.trf.xlu0
        %v1127 = vpop.trf.xlu0
        %v1130 = vunpack.c.l.b16 %v891
        %v1131 = vunpack.c.l.b16 %v892
        %v1132 = vpack.c.b16 %v1131, %v1130
        %v1135 = vsel %vm931, %v1120, 0
        %v1138 = vsel %vm931, %v1121, 0
        %v1141 = vsel %vm931, %v1122, 0
        %v1144 = vsel %vm931, %v1123, 0
        %v1147 = vsel %vm931, %v1124, 0
        %v1150 = vsel %vm931, %v1125, 0
        %v1153 = vsel %vm931, %v1126, 0
        %v1156 = vsel %vm931, %v1127, 0
        %1158 = vmatpush.bf16.msra.mxu0 0
        %1159 = vmatpush.bf16.msra.mxu0 0
        %1160 = vmatpush.bf16.msra.mxu0 0
        %1161 = vmatpush.bf16.msra.mxu0 0
        %1162 = vmatpush.bf16.msra.mxu0 0
        %1163 = vmatpush.bf16.msra.mxu0 0
        %1164 = vmatpush.bf16.msra.mxu0 0
        %1165 = vmatpush.bf16.msra.mxu0 %v1132
        %1166 = vmatmul.bf16.gmra.mxu0 %v1135
        %v1167 = vpop.f32.mrf.mxu0
        %v1168 = vadd.f32 0.0, %v1167
        %v1169 = vpop.f32.mrf.mxu0
        %v1170 = vadd.f32 0.0, %v1169
        %1171 = vmatmul.bf16.gmra.mxu0 %v1138
        %v1172 = vpop.f32.mrf.mxu0
        %v1173 = vadd.f32 0.0, %v1172
        %v1174 = vpop.f32.mrf.mxu0
        %v1175 = vadd.f32 0.0, %v1174
        %1176 = vmatmul.bf16.gmra.mxu0 %v1141
        %v1177 = vpop.f32.mrf.mxu0
        %v1178 = vadd.f32 0.0, %v1177
        %v1179 = vpop.f32.mrf.mxu0
        %v1180 = vadd.f32 0.0, %v1179
        %1181 = vmatmul.bf16.gmra.mxu0 %v1144
        %v1182 = vpop.f32.mrf.mxu0
        %v1183 = vadd.f32 0.0, %v1182
        %v1184 = vpop.f32.mrf.mxu0
        %v1185 = vadd.f32 0.0, %v1184
        %1186 = vmatmul.bf16.gmra.mxu0 %v1147
        %v1187 = vpop.f32.mrf.mxu0
        %v1188 = vadd.f32 0.0, %v1187
        %v1189 = vpop.f32.mrf.mxu0
        %v1190 = vadd.f32 0.0, %v1189
        %1191 = vmatmul.bf16.gmra.mxu0 %v1150
        %v1192 = vpop.f32.mrf.mxu0
        %v1193 = vadd.f32 0.0, %v1192
        %v1194 = vpop.f32.mrf.mxu0
        %v1195 = vadd.f32 0.0, %v1194
        %1196 = vmatmul.bf16.gmra.mxu0 %v1153
        %v1197 = vpop.f32.mrf.mxu0
        %v1198 = vadd.f32 0.0, %v1197
        %v1199 = vpop.f32.mrf.mxu0
        %v1200 = vadd.f32 0.0, %v1199
        %1201 = vmatmul.bf16.gmra.mxu0 %v1156
        %v1202 = vpop.f32.mrf.mxu0
        %v1203 = vadd.f32 0.0, %v1202
        %v1204 = vpop.f32.mrf.mxu0
        %v1205 = vadd.f32 0.0, %v1204
        %1206 = vdwg.mxu0
        %v1209 = vunpack.c.l.b16 %v885
        %v1210 = vunpack.c.l.b16 %v886
        %v1211 = vpack.c.b16 %v1210, %v1209
        %1213 = vxpose.xlu0.c.b16.start [1/8] %v1211, 128
        %1214 = vxpose.xlu0.c.b16.cont [2/8] 0, 128
        %1215 = vxpose.xlu0.c.b16.cont [3/8] 0, 128
        %1216 = vxpose.xlu0.c.b16.cont [4/8] 0, 128
        %1217 = vxpose.xlu0.c.b16.cont [5/8] 0, 128
        %1218 = vxpose.xlu0.c.b16.cont [6/8] 0, 128
        %1219 = vxpose.xlu0.c.b16.cont [7/8] 0, 128
        %1220 = vxpose.xlu0.c.b16.end [8/8] 0, 128
        %v1221 = vpop.trf.xlu0
        %v1222 = vpop.trf.xlu0
        %v1223 = vpop.trf.xlu0
        %v1224 = vpop.trf.xlu0
        %v1225 = vpop.trf.xlu0
        %v1226 = vpop.trf.xlu0
        %v1227 = vpop.trf.xlu0
        %v1228 = vpop.trf.xlu0
        %v1231 = vunpack.c.l.b16 %v893
        %v1232 = vunpack.c.l.b16 %v894
        %v1233 = vpack.c.b16 %v1232, %v1231
        %v1236 = vsel %vm931, %v1221, 0
        %v1239 = vsel %vm931, %v1222, 0
        %v1242 = vsel %vm931, %v1223, 0
        %v1245 = vsel %vm931, %v1224, 0
        %v1248 = vsel %vm931, %v1225, 0
        %v1251 = vsel %vm931, %v1226, 0
        %v1254 = vsel %vm931, %v1227, 0
        %v1257 = vsel %vm931, %v1228, 0
        %1259 = vmatpush.bf16.msra.mxu0 0
        %1260 = vmatpush.bf16.msra.mxu0 0
        %1261 = vmatpush.bf16.msra.mxu0 0
        %1262 = vmatpush.bf16.msra.mxu0 0
        %1263 = vmatpush.bf16.msra.mxu0 0
        %1264 = vmatpush.bf16.msra.mxu0 0
        %1265 = vmatpush.bf16.msra.mxu0 0
        %1266 = vmatpush.bf16.msra.mxu0 %v1233
        %1267 = vmatmul.bf16.gmra.mxu0 %v1236
        %v1268 = vpop.f32.mrf.mxu0
        %v1269 = vadd.f32 0.0, %v1268
        %v1270 = vpop.f32.mrf.mxu0
        %v1271 = vadd.f32 0.0, %v1270
        %1272 = vmatmul.bf16.gmra.mxu0 %v1239
        %v1273 = vpop.f32.mrf.mxu0
        %v1274 = vadd.f32 0.0, %v1273
        %v1275 = vpop.f32.mrf.mxu0
        %v1276 = vadd.f32 0.0, %v1275
        %1277 = vmatmul.bf16.gmra.mxu0 %v1242
        %v1278 = vpop.f32.mrf.mxu0
        %v1279 = vadd.f32 0.0, %v1278
        %v1280 = vpop.f32.mrf.mxu0
        %v1281 = vadd.f32 0.0, %v1280
        %1282 = vmatmul.bf16.gmra.mxu0 %v1245
        %v1283 = vpop.f32.mrf.mxu0
        %v1284 = vadd.f32 0.0, %v1283
        %v1285 = vpop.f32.mrf.mxu0
        %v1286 = vadd.f32 0.0, %v1285
        %1287 = vmatmul.bf16.gmra.mxu0 %v1248
        %v1288 = vpop.f32.mrf.mxu0
        %v1289 = vadd.f32 0.0, %v1288
        %v1290 = vpop.f32.mrf.mxu0
        %v1291 = vadd.f32 0.0, %v1290
        %1292 = vmatmul.bf16.gmra.mxu0 %v1251
        %v1293 = vpop.f32.mrf.mxu0
        %v1294 = vadd.f32 0.0, %v1293
        %v1295 = vpop.f32.mrf.mxu0
        %v1296 = vadd.f32 0.0, %v1295
        %1297 = vmatmul.bf16.gmra.mxu0 %v1254
        %v1298 = vpop.f32.mrf.mxu0
        %v1299 = vadd.f32 0.0, %v1298
        %v1300 = vpop.f32.mrf.mxu0
        %v1301 = vadd.f32 0.0, %v1300
        %1302 = vmatmul.bf16.gmra.mxu0 %v1257
        %v1303 = vpop.f32.mrf.mxu0
        %v1304 = vadd.f32 0.0, %v1303
        %v1305 = vpop.f32.mrf.mxu0
        %v1306 = vadd.f32 0.0, %v1305
        %1307 = vdwg.mxu0
        %1308 = vmax.xlane.f32.xlu0 %v966
        %v1309 = vpop.xlane.xlu0 %1308
        %1310 = vmax.xlane.f32.xlu0 %v968
        %v1311 = vpop.xlane.xlu0 %1310
        %1312 = vmax.xlane.f32.xlu0 %v971
        %v1313 = vpop.xlane.xlu0 %1312
        %1314 = vmax.xlane.f32.xlu0 %v973
        %v1315 = vpop.xlane.xlu0 %1314
        %1316 = vmax.xlane.f32.xlu0 %v976
        %v1317 = vpop.xlane.xlu0 %1316
        %1318 = vmax.xlane.f32.xlu0 %v978
        %v1319 = vpop.xlane.xlu0 %1318
        %1320 = vmax.xlane.f32.xlu0 %v981
        %v1321 = vpop.xlane.xlu0 %1320
        %1322 = vmax.xlane.f32.xlu0 %v983
        %v1323 = vpop.xlane.xlu0 %1322
        %1324 = vmax.xlane.f32.xlu0 %v986
        %v1325 = vpop.xlane.xlu0 %1324
        %1326 = vmax.xlane.f32.xlu0 %v988
        %v1327 = vpop.xlane.xlu0 %1326
        %1328 = vmax.xlane.f32.xlu0 %v991
        %v1329 = vpop.xlane.xlu0 %1328
        %1330 = vmax.xlane.f32.xlu0 %v993
        %v1331 = vpop.xlane.xlu0 %1330
        %1332 = vmax.xlane.f32.xlu0 %v996
        %v1333 = vpop.xlane.xlu0 %1332
        %1334 = vmax.xlane.f32.xlu0 %v998
        %v1335 = vpop.xlane.xlu0 %1334
        %1336 = vmax.xlane.f32.xlu0 %v1001
        %v1337 = vpop.xlane.xlu0 %1336
        %1338 = vmax.xlane.f32.xlu0 %v1003
        %v1339 = vpop.xlane.xlu0 %1338
        %1340 = vmax.xlane.f32.xlu0 %v1067
        %v1341 = vpop.xlane.xlu0 %1340
        %1342 = vmax.xlane.f32.xlu0 %v1069
        %v1343 = vpop.xlane.xlu0 %1342
        %1344 = vmax.xlane.f32.xlu0 %v1072
        %v1345 = vpop.xlane.xlu0 %1344
        %1346 = vmax.xlane.f32.xlu0 %v1074
        %v1347 = vpop.xlane.xlu0 %1346
        %1348 = vmax.xlane.f32.xlu0 %v1077
        %v1349 = vpop.xlane.xlu0 %1348
        %1350 = vmax.xlane.f32.xlu0 %v1079
        %v1351 = vpop.xlane.xlu0 %1350
        %1352 = vmax.xlane.f32.xlu0 %v1082
        %v1353 = vpop.xlane.xlu0 %1352
        %1354 = vmax.xlane.f32.xlu0 %v1084
        %v1355 = vpop.xlane.xlu0 %1354
        %1356 = vmax.xlane.f32.xlu0 %v1087
        %v1357 = vpop.xlane.xlu0 %1356
        %1358 = vmax.xlane.f32.xlu0 %v1089
        %v1359 = vpop.xlane.xlu0 %1358
        %1360 = vmax.xlane.f32.xlu0 %v1092
        %v1361 = vpop.xlane.xlu0 %1360
        %1362 = vmax.xlane.f32.xlu0 %v1094
        %v1363 = vpop.xlane.xlu0 %1362
        %1364 = vmax.xlane.f32.xlu0 %v1097
        %v1365 = vpop.xlane.xlu0 %1364
        %1366 = vmax.xlane.f32.xlu0 %v1099
        %v1367 = vpop.xlane.xlu0 %1366
        %1368 = vmax.xlane.f32.xlu0 %v1102
        %v1369 = vpop.xlane.xlu0 %1368
        %1370 = vmax.xlane.f32.xlu0 %v1104
        %v1371 = vpop.xlane.xlu0 %1370
        %1372 = vmax.xlane.f32.xlu0 %v1168
        %v1373 = vpop.xlane.xlu0 %1372
        %1374 = vmax.xlane.f32.xlu0 %v1170
        %v1375 = vpop.xlane.xlu0 %1374
        %1376 = vmax.xlane.f32.xlu0 %v1173
        %v1377 = vpop.xlane.xlu0 %1376
        %1378 = vmax.xlane.f32.xlu0 %v1175
        %v1379 = vpop.xlane.xlu0 %1378
        %1380 = vmax.xlane.f32.xlu0 %v1178
        %v1381 = vpop.xlane.xlu0 %1380
        %1382 = vmax.xlane.f32.xlu0 %v1180
        %v1383 = vpop.xlane.xlu0 %1382
        %1384 = vmax.xlane.f32.xlu0 %v1183
        %v1385 = vpop.xlane.xlu0 %1384
        %1386 = vmax.xlane.f32.xlu0 %v1185
        %v1387 = vpop.xlane.xlu0 %1386
        %1388 = vmax.xlane.f32.xlu0 %v1188
        %v1389 = vpop.xlane.xlu0 %1388
        %1390 = vmax.xlane.f32.xlu0 %v1190
        %v1391 = vpop.xlane.xlu0 %1390
        %1392 = vmax.xlane.f32.xlu0 %v1193
        %v1393 = vpop.xlane.xlu0 %1392
        %1394 = vmax.xlane.f32.xlu0 %v1195
        %v1395 = vpop.xlane.xlu0 %1394
        %1396 = vmax.xlane.f32.xlu0 %v1198
        %v1397 = vpop.xlane.xlu0 %1396
        %1398 = vmax.xlane.f32.xlu0 %v1200
        %v1399 = vpop.xlane.xlu0 %1398
        %1400 = vmax.xlane.f32.xlu0 %v1203
        %v1401 = vpop.xlane.xlu0 %1400
        %1402 = vmax.xlane.f32.xlu0 %v1205
        %v1403 = vpop.xlane.xlu0 %1402
        %1404 = vmax.xlane.f32.xlu0 %v1269
        %v1405 = vpop.xlane.xlu0 %1404
        %1406 = vmax.xlane.f32.xlu0 %v1271
        %v1407 = vpop.xlane.xlu0 %1406
        %1408 = vmax.xlane.f32.xlu0 %v1274
        %v1409 = vpop.xlane.xlu0 %1408
        %1410 = vmax.xlane.f32.xlu0 %v1276
        %v1411 = vpop.xlane.xlu0 %1410
        %1412 = vmax.xlane.f32.xlu0 %v1279
        %v1413 = vpop.xlane.xlu0 %1412
        %1414 = vmax.xlane.f32.xlu0 %v1281
        %v1415 = vpop.xlane.xlu0 %1414
        %1416 = vmax.xlane.f32.xlu0 %v1284
        %v1417 = vpop.xlane.xlu0 %1416
        %1418 = vmax.xlane.f32.xlu0 %v1286
        %v1419 = vpop.xlane.xlu0 %1418
        %1420 = vmax.xlane.f32.xlu0 %v1289
        %v1421 = vpop.xlane.xlu0 %1420
        %1422 = vmax.xlane.f32.xlu0 %v1291
        %v1423 = vpop.xlane.xlu0 %1422
        %1424 = vmax.xlane.f32.xlu0 %v1294
        %v1425 = vpop.xlane.xlu0 %1424
        %1426 = vmax.xlane.f32.xlu0 %v1296
        %v1427 = vpop.xlane.xlu0 %1426
        %1428 = vmax.xlane.f32.xlu0 %v1299
        %v1429 = vpop.xlane.xlu0 %1428
        %1430 = vmax.xlane.f32.xlu0 %v1301
        %v1431 = vpop.xlane.xlu0 %1430
        %1432 = vmax.xlane.f32.xlu0 %v1304
        %v1433 = vpop.xlane.xlu0 %1432
        %1434 = vmax.xlane.f32.xlu0 %v1306
        %v1435 = vpop.xlane.xlu0 %1434
        %v1436 = vsub.f32 %v966, %v1309
        %v1437 = vsub.f32 %v968, %v1311
        %v1438 = vsub.f32 %v971, %v1313
        %v1439 = vsub.f32 %v973, %v1315
        %v1440 = vsub.f32 %v976, %v1317
        %v1441 = vsub.f32 %v978, %v1319
        %v1442 = vsub.f32 %v981, %v1321
        %v1443 = vsub.f32 %v983, %v1323
        %v1444 = vsub.f32 %v986, %v1325
        %v1445 = vsub.f32 %v988, %v1327
        %v1446 = vsub.f32 %v991, %v1329
        %v1447 = vsub.f32 %v993, %v1331
        %v1448 = vsub.f32 %v996, %v1333
        %v1449 = vsub.f32 %v998, %v1335
        %v1450 = vsub.f32 %v1001, %v1337
        %v1451 = vsub.f32 %v1003, %v1339
        %v1452 = vsub.f32 %v1067, %v1341
        %v1453 = vsub.f32 %v1069, %v1343
        %v1454 = vsub.f32 %v1072, %v1345
        %v1455 = vsub.f32 %v1074, %v1347
        %v1456 = vsub.f32 %v1077, %v1349
        %v1457 = vsub.f32 %v1079, %v1351
        %v1458 = vsub.f32 %v1082, %v1353
        %v1459 = vsub.f32 %v1084, %v1355
        %v1460 = vsub.f32 %v1087, %v1357
        %v1461 = vsub.f32 %v1089, %v1359
        %v1462 = vsub.f32 %v1092, %v1361
        %v1463 = vsub.f32 %v1094, %v1363
        %v1464 = vsub.f32 %v1097, %v1365
        %v1465 = vsub.f32 %v1099, %v1367
        %v1466 = vsub.f32 %v1102, %v1369
        %v1467 = vsub.f32 %v1104, %v1371
        %v1468 = vsub.f32 %v1168, %v1373
        %v1469 = vsub.f32 %v1170, %v1375
        %v1470 = vsub.f32 %v1173, %v1377
        %v1471 = vsub.f32 %v1175, %v1379
        %v1472 = vsub.f32 %v1178, %v1381
        %v1473 = vsub.f32 %v1180, %v1383
        %v1474 = vsub.f32 %v1183, %v1385
        %v1475 = vsub.f32 %v1185, %v1387
        %v1476 = vsub.f32 %v1188, %v1389
        %v1477 = vsub.f32 %v1190, %v1391
        %v1478 = vsub.f32 %v1193, %v1393
        %v1479 = vsub.f32 %v1195, %v1395
        %v1480 = vsub.f32 %v1198, %v1397
        %v1481 = vsub.f32 %v1200, %v1399
        %v1482 = vsub.f32 %v1203, %v1401
        %v1483 = vsub.f32 %v1205, %v1403
        %v1484 = vsub.f32 %v1269, %v1405
        %v1485 = vsub.f32 %v1271, %v1407
        %v1486 = vsub.f32 %v1274, %v1409
        %v1487 = vsub.f32 %v1276, %v1411
        %v1488 = vsub.f32 %v1279, %v1413
        %v1489 = vsub.f32 %v1281, %v1415
        %v1490 = vsub.f32 %v1284, %v1417
        %v1491 = vsub.f32 %v1286, %v1419
        %v1492 = vsub.f32 %v1289, %v1421
        %v1493 = vsub.f32 %v1291, %v1423
        %v1494 = vsub.f32 %v1294, %v1425
        %v1495 = vsub.f32 %v1296, %v1427
        %v1496 = vsub.f32 %v1299, %v1429
        %v1497 = vsub.f32 %v1301, %v1431
        %v1498 = vsub.f32 %v1304, %v1433
        %v1499 = vsub.f32 %v1306, %v1435
        %v1500 = vmul.f32 %v1436, 1.442695
        %v1501 = vpow.pop %v1500
        %v1502 = vmul.f32 %v1437, 1.442695
        %v1503 = vpow.pop %v1502
        %v1504 = vmul.f32 %v1438, 1.442695
        %v1505 = vpow.pop %v1504
        %v1506 = vmul.f32 %v1439, 1.442695
        %v1507 = vpow.pop %v1506
        %v1508 = vmul.f32 %v1440, 1.442695
        %v1509 = vpow.pop %v1508
        %v1510 = vmul.f32 %v1441, 1.442695
        %v1511 = vpow.pop %v1510
        %v1512 = vmul.f32 %v1442, 1.442695
        %v1513 = vpow.pop %v1512
        %v1514 = vmul.f32 %v1443, 1.442695
        %v1515 = vpow.pop %v1514
        %v1516 = vmul.f32 %v1444, 1.442695
        %v1517 = vpow.pop %v1516
        %v1518 = vmul.f32 %v1445, 1.442695
        %v1519 = vpow.pop %v1518
        %v1520 = vmul.f32 %v1446, 1.442695
        %v1521 = vpow.pop %v1520
        %v1522 = vmul.f32 %v1447, 1.442695
        %v1523 = vpow.pop %v1522
        %v1524 = vmul.f32 %v1448, 1.442695
        %v1525 = vpow.pop %v1524
        %v1526 = vmul.f32 %v1449, 1.442695
        %v1527 = vpow.pop %v1526
        %v1528 = vmul.f32 %v1450, 1.442695
        %v1529 = vpow.pop %v1528
        %v1530 = vmul.f32 %v1451, 1.442695
        %v1531 = vpow.pop %v1530
        %v1532 = vmul.f32 %v1452, 1.442695
        %v1533 = vpow.pop %v1532
        %v1534 = vmul.f32 %v1453, 1.442695
        %v1535 = vpow.pop %v1534
        %v1536 = vmul.f32 %v1454, 1.442695
        %v1537 = vpow.pop %v1536
        %v1538 = vmul.f32 %v1455, 1.442695
        %v1539 = vpow.pop %v1538
        %v1540 = vmul.f32 %v1456, 1.442695
        %v1541 = vpow.pop %v1540
        %v1542 = vmul.f32 %v1457, 1.442695
        %v1543 = vpow.pop %v1542
        %v1544 = vmul.f32 %v1458, 1.442695
        %v1545 = vpow.pop %v1544
        %v1546 = vmul.f32 %v1459, 1.442695
        %v1547 = vpow.pop %v1546
        %v1548 = vmul.f32 %v1460, 1.442695
        %v1549 = vpow.pop %v1548
        %v1550 = vmul.f32 %v1461, 1.442695
        %v1551 = vpow.pop %v1550
        %v1552 = vmul.f32 %v1462, 1.442695
        %v1553 = vpow.pop %v1552
        %v1554 = vmul.f32 %v1463, 1.442695
        %v1555 = vpow.pop %v1554
        %v1556 = vmul.f32 %v1464, 1.442695
        %v1557 = vpow.pop %v1556
        %v1558 = vmul.f32 %v1465, 1.442695
        %v1559 = vpow.pop %v1558
        %v1560 = vmul.f32 %v1466, 1.442695
        %v1561 = vpow.pop %v1560
        %v1562 = vmul.f32 %v1467, 1.442695
        %v1563 = vpow.pop %v1562
        %v1564 = vmul.f32 %v1468, 1.442695
        %v1565 = vpow.pop %v1564
        %v1566 = vmul.f32 %v1469, 1.442695
        %v1567 = vpow.pop %v1566
        %v1568 = vmul.f32 %v1470, 1.442695
        %v1569 = vpow.pop %v1568
        %v1570 = vmul.f32 %v1471, 1.442695
        %v1571 = vpow.pop %v1570
        %v1572 = vmul.f32 %v1472, 1.442695
        %v1573 = vpow.pop %v1572
        %v1574 = vmul.f32 %v1473, 1.442695
        %v1575 = vpow.pop %v1574
        %v1576 = vmul.f32 %v1474, 1.442695
        %v1577 = vpow.pop %v1576
        %v1578 = vmul.f32 %v1475, 1.442695
        %v1579 = vpow.pop %v1578
        %v1580 = vmul.f32 %v1476, 1.442695
        %v1581 = vpow.pop %v1580
        %v1582 = vmul.f32 %v1477, 1.442695
        %v1583 = vpow.pop %v1582
        %v1584 = vmul.f32 %v1478, 1.442695
        %v1585 = vpow.pop %v1584
        %v1586 = vmul.f32 %v1479, 1.442695
        %v1587 = vpow.pop %v1586
        %v1588 = vmul.f32 %v1480, 1.442695
        %v1589 = vpow.pop %v1588
        %v1590 = vmul.f32 %v1481, 1.442695
        %v1591 = vpow.pop %v1590
        %v1592 = vmul.f32 %v1482, 1.442695
        %v1593 = vpow.pop %v1592
        %v1594 = vmul.f32 %v1483, 1.442695
        %v1595 = vpow.pop %v1594
        %v1596 = vmul.f32 %v1484, 1.442695
        %v1597 = vpow.pop %v1596
        %v1598 = vmul.f32 %v1485, 1.442695
        %v1599 = vpow.pop %v1598
        %v1600 = vmul.f32 %v1486, 1.442695
        %v1601 = vpow.pop %v1600
        %v1602 = vmul.f32 %v1487, 1.442695
        %v1603 = vpow.pop %v1602
        %v1604 = vmul.f32 %v1488, 1.442695
        %v1605 = vpow.pop %v1604
        %v1606 = vmul.f32 %v1489, 1.442695
        %v1607 = vpow.pop %v1606
        %v1608 = vmul.f32 %v1490, 1.442695
        %v1609 = vpow.pop %v1608
        %v1610 = vmul.f32 %v1491, 1.442695
        %v1611 = vpow.pop %v1610
        %v1612 = vmul.f32 %v1492, 1.442695
        %v1613 = vpow.pop %v1612
        %v1614 = vmul.f32 %v1493, 1.442695
        %v1615 = vpow.pop %v1614
        %v1616 = vmul.f32 %v1494, 1.442695
        %v1617 = vpow.pop %v1616
        %v1618 = vmul.f32 %v1495, 1.442695
        %v1619 = vpow.pop %v1618
        %v1620 = vmul.f32 %v1496, 1.442695
        %v1621 = vpow.pop %v1620
        %v1622 = vmul.f32 %v1497, 1.442695
        %v1623 = vpow.pop %v1622
        %v1624 = vmul.f32 %v1498, 1.442695
        %v1625 = vpow.pop %v1624
        %v1626 = vmul.f32 %v1499, 1.442695
        %v1627 = vpow.pop %v1626
        %1628 = vadd.xlane.f32.xlu0 %v1501
        %v1629 = vpop.xlane.xlu0 %1628
        %1630 = vadd.xlane.f32.xlu0 %v1503
        %v1631 = vpop.xlane.xlu0 %1630
        %1632 = vadd.xlane.f32.xlu0 %v1505
        %v1633 = vpop.xlane.xlu0 %1632
        %1634 = vadd.xlane.f32.xlu0 %v1507
        %v1635 = vpop.xlane.xlu0 %1634
        %1636 = vadd.xlane.f32.xlu0 %v1509
        %v1637 = vpop.xlane.xlu0 %1636
        %1638 = vadd.xlane.f32.xlu0 %v1511
        %v1639 = vpop.xlane.xlu0 %1638
        %1640 = vadd.xlane.f32.xlu0 %v1513
        %v1641 = vpop.xlane.xlu0 %1640
        %1642 = vadd.xlane.f32.xlu0 %v1515
        %v1643 = vpop.xlane.xlu0 %1642
        %1644 = vadd.xlane.f32.xlu0 %v1517
        %v1645 = vpop.xlane.xlu0 %1644
        %1646 = vadd.xlane.f32.xlu0 %v1519
        %v1647 = vpop.xlane.xlu0 %1646
        %1648 = vadd.xlane.f32.xlu0 %v1521
        %v1649 = vpop.xlane.xlu0 %1648
        %1650 = vadd.xlane.f32.xlu0 %v1523
        %v1651 = vpop.xlane.xlu0 %1650
        %1652 = vadd.xlane.f32.xlu0 %v1525
        %v1653 = vpop.xlane.xlu0 %1652
        %1654 = vadd.xlane.f32.xlu0 %v1527
        %v1655 = vpop.xlane.xlu0 %1654
        %1656 = vadd.xlane.f32.xlu0 %v1529
        %v1657 = vpop.xlane.xlu0 %1656
        %1658 = vadd.xlane.f32.xlu0 %v1531
        %v1659 = vpop.xlane.xlu0 %1658
        %1660 = vadd.xlane.f32.xlu0 %v1533
        %v1661 = vpop.xlane.xlu0 %1660
        %1662 = vadd.xlane.f32.xlu0 %v1535
        %v1663 = vpop.xlane.xlu0 %1662
        %1664 = vadd.xlane.f32.xlu0 %v1537
        %v1665 = vpop.xlane.xlu0 %1664
        %1666 = vadd.xlane.f32.xlu0 %v1539
        %v1667 = vpop.xlane.xlu0 %1666
        %1668 = vadd.xlane.f32.xlu0 %v1541
        %v1669 = vpop.xlane.xlu0 %1668
        %1670 = vadd.xlane.f32.xlu0 %v1543
        %v1671 = vpop.xlane.xlu0 %1670
        %1672 = vadd.xlane.f32.xlu0 %v1545
        %v1673 = vpop.xlane.xlu0 %1672
        %1674 = vadd.xlane.f32.xlu0 %v1547
        %v1675 = vpop.xlane.xlu0 %1674
        %1676 = vadd.xlane.f32.xlu0 %v1549
        %v1677 = vpop.xlane.xlu0 %1676
        %1678 = vadd.xlane.f32.xlu0 %v1551
        %v1679 = vpop.xlane.xlu0 %1678
        %1680 = vadd.xlane.f32.xlu0 %v1553
        %v1681 = vpop.xlane.xlu0 %1680
        %1682 = vadd.xlane.f32.xlu0 %v1555
        %v1683 = vpop.xlane.xlu0 %1682
        %1684 = vadd.xlane.f32.xlu0 %v1557
        %v1685 = vpop.xlane.xlu0 %1684
        %1686 = vadd.xlane.f32.xlu0 %v1559
        %v1687 = vpop.xlane.xlu0 %1686
        %1688 = vadd.xlane.f32.xlu0 %v1561
        %v1689 = vpop.xlane.xlu0 %1688
        %1690 = vadd.xlane.f32.xlu0 %v1563
        %v1691 = vpop.xlane.xlu0 %1690
        %1692 = vadd.xlane.f32.xlu0 %v1565
        %v1693 = vpop.xlane.xlu0 %1692
        %1694 = vadd.xlane.f32.xlu0 %v1567
        %v1695 = vpop.xlane.xlu0 %1694
        %1696 = vadd.xlane.f32.xlu0 %v1569
        %v1697 = vpop.xlane.xlu0 %1696
        %1698 = vadd.xlane.f32.xlu0 %v1571
        %v1699 = vpop.xlane.xlu0 %1698
        %1700 = vadd.xlane.f32.xlu0 %v1573
        %v1701 = vpop.xlane.xlu0 %1700
        %1702 = vadd.xlane.f32.xlu0 %v1575
        %v1703 = vpop.xlane.xlu0 %1702
        %1704 = vadd.xlane.f32.xlu0 %v1577
        %v1705 = vpop.xlane.xlu0 %1704
        %1706 = vadd.xlane.f32.xlu0 %v1579
        %v1707 = vpop.xlane.xlu0 %1706
        %1708 = vadd.xlane.f32.xlu0 %v1581
        %v1709 = vpop.xlane.xlu0 %1708
        %1710 = vadd.xlane.f32.xlu0 %v1583
        %v1711 = vpop.xlane.xlu0 %1710
        %1712 = vadd.xlane.f32.xlu0 %v1585
        %v1713 = vpop.xlane.xlu0 %1712
        %1714 = vadd.xlane.f32.xlu0 %v1587
        %v1715 = vpop.xlane.xlu0 %1714
        %1716 = vadd.xlane.f32.xlu0 %v1589
        %v1717 = vpop.xlane.xlu0 %1716
        %1718 = vadd.xlane.f32.xlu0 %v1591
        %v1719 = vpop.xlane.xlu0 %1718
        %1720 = vadd.xlane.f32.xlu0 %v1593
        %v1721 = vpop.xlane.xlu0 %1720
        %1722 = vadd.xlane.f32.xlu0 %v1595
        %v1723 = vpop.xlane.xlu0 %1722
        %1724 = vadd.xlane.f32.xlu0 %v1597
        %v1725 = vpop.xlane.xlu0 %1724
        %1726 = vadd.xlane.f32.xlu0 %v1599
        %v1727 = vpop.xlane.xlu0 %1726
        %1728 = vadd.xlane.f32.xlu0 %v1601
        %v1729 = vpop.xlane.xlu0 %1728
        %1730 = vadd.xlane.f32.xlu0 %v1603
        %v1731 = vpop.xlane.xlu0 %1730
        %1732 = vadd.xlane.f32.xlu0 %v1605
        %v1733 = vpop.xlane.xlu0 %1732
        %1734 = vadd.xlane.f32.xlu0 %v1607
        %v1735 = vpop.xlane.xlu0 %1734
        %1736 = vadd.xlane.f32.xlu0 %v1609
        %v1737 = vpop.xlane.xlu0 %1736
        %1738 = vadd.xlane.f32.xlu0 %v1611
        %v1739 = vpop.xlane.xlu0 %1738
        %1740 = vadd.xlane.f32.xlu0 %v1613
        %v1741 = vpop.xlane.xlu0 %1740
        %1742 = vadd.xlane.f32.xlu0 %v1615
        %v1743 = vpop.xlane.xlu0 %1742
        %1744 = vadd.xlane.f32.xlu0 %v1617
        %v1745 = vpop.xlane.xlu0 %1744
        %1746 = vadd.xlane.f32.xlu0 %v1619
        %v1747 = vpop.xlane.xlu0 %1746
        %1748 = vadd.xlane.f32.xlu0 %v1621
        %v1749 = vpop.xlane.xlu0 %1748
        %1750 = vadd.xlane.f32.xlu0 %v1623
        %v1751 = vpop.xlane.xlu0 %1750
        %1752 = vadd.xlane.f32.xlu0 %v1625
        %v1753 = vpop.xlane.xlu0 %1752
        %1754 = vadd.xlane.f32.xlu0 %v1627
        %v1755 = vpop.xlane.xlu0 %1754
        %v1756 = vrcp.pop %v1629
        %v1757 = vrcp.pop %v1631
        %v1758 = vrcp.pop %v1633
        %v1759 = vrcp.pop %v1635
        %v1760 = vrcp.pop %v1637
        %v1761 = vrcp.pop %v1639
        %v1762 = vrcp.pop %v1641
        %v1763 = vrcp.pop %v1643
        %v1764 = vrcp.pop %v1645
        %v1765 = vrcp.pop %v1647
        %v1766 = vrcp.pop %v1649
        %v1767 = vrcp.pop %v1651
        %v1768 = vrcp.pop %v1653
        %v1769 = vrcp.pop %v1655
        %v1770 = vrcp.pop %v1657
        %v1771 = vrcp.pop %v1659
        %v1772 = vrcp.pop %v1661
        %v1773 = vrcp.pop %v1663
        %v1774 = vrcp.pop %v1665
        %v1775 = vrcp.pop %v1667
        %v1776 = vrcp.pop %v1669
        %v1777 = vrcp.pop %v1671
        %v1778 = vrcp.pop %v1673
        %v1779 = vrcp.pop %v1675
        %v1780 = vrcp.pop %v1677
        %v1781 = vrcp.pop %v1679
        %v1782 = vrcp.pop %v1681
        %v1783 = vrcp.pop %v1683
        %v1784 = vrcp.pop %v1685
        %v1785 = vrcp.pop %v1687
        %v1786 = vrcp.pop %v1689
        %v1787 = vrcp.pop %v1691
        %v1788 = vrcp.pop %v1693
        %v1789 = vrcp.pop %v1695
        %v1790 = vrcp.pop %v1697
        %v1791 = vrcp.pop %v1699
        %v1792 = vrcp.pop %v1701
        %v1793 = vrcp.pop %v1703
        %v1794 = vrcp.pop %v1705
        %v1795 = vrcp.pop %v1707
        %v1796 = vrcp.pop %v1709
        %v1797 = vrcp.pop %v1711
        %v1798 = vrcp.pop %v1713
        %v1799 = vrcp.pop %v1715
        %v1800 = vrcp.pop %v1717
        %v1801 = vrcp.pop %v1719
        %v1802 = vrcp.pop %v1721
        %v1803 = vrcp.pop %v1723
        %v1804 = vrcp.pop %v1725
        %v1805 = vrcp.pop %v1727
        %v1806 = vrcp.pop %v1729
        %v1807 = vrcp.pop %v1731
        %v1808 = vrcp.pop %v1733
        %v1809 = vrcp.pop %v1735
        %v1810 = vrcp.pop %v1737
        %v1811 = vrcp.pop %v1739
        %v1812 = vrcp.pop %v1741
        %v1813 = vrcp.pop %v1743
        %v1814 = vrcp.pop %v1745
        %v1815 = vrcp.pop %v1747
        %v1816 = vrcp.pop %v1749
        %v1817 = vrcp.pop %v1751
        %v1818 = vrcp.pop %v1753
        %v1819 = vrcp.pop %v1755
        %v1820 = vmul.f32 %v1501, %v1756
        %v1821 = vmul.f32 %v1503, %v1757
        %v1822 = vmul.f32 %v1505, %v1758
        %v1823 = vmul.f32 %v1507, %v1759
        %v1824 = vmul.f32 %v1509, %v1760
        %v1825 = vmul.f32 %v1511, %v1761
        %v1826 = vmul.f32 %v1513, %v1762
        %v1827 = vmul.f32 %v1515, %v1763
        %v1828 = vmul.f32 %v1517, %v1764
        %v1829 = vmul.f32 %v1519, %v1765
        %v1830 = vmul.f32 %v1521, %v1766
        %v1831 = vmul.f32 %v1523, %v1767
        %v1832 = vmul.f32 %v1525, %v1768
        %v1833 = vmul.f32 %v1527, %v1769
        %v1834 = vmul.f32 %v1529, %v1770
        %v1835 = vmul.f32 %v1531, %v1771
        %v1836 = vmul.f32 %v1533, %v1772
        %v1837 = vmul.f32 %v1535, %v1773
        %v1838 = vmul.f32 %v1537, %v1774
        %v1839 = vmul.f32 %v1539, %v1775
        %v1840 = vmul.f32 %v1541, %v1776
        %v1841 = vmul.f32 %v1543, %v1777
        %v1842 = vmul.f32 %v1545, %v1778
        %v1843 = vmul.f32 %v1547, %v1779
        %v1844 = vmul.f32 %v1549, %v1780
        %v1845 = vmul.f32 %v1551, %v1781
        %v1846 = vmul.f32 %v1553, %v1782
        %v1847 = vmul.f32 %v1555, %v1783
        %v1848 = vmul.f32 %v1557, %v1784
        %v1849 = vmul.f32 %v1559, %v1785
        %v1850 = vmul.f32 %v1561, %v1786
        %v1851 = vmul.f32 %v1563, %v1787
        %v1852 = vmul.f32 %v1565, %v1788
        %v1853 = vmul.f32 %v1567, %v1789
        %v1854 = vmul.f32 %v1569, %v1790
        %v1855 = vmul.f32 %v1571, %v1791
        %v1856 = vmul.f32 %v1573, %v1792
        %v1857 = vmul.f32 %v1575, %v1793
        %v1858 = vmul.f32 %v1577, %v1794
        %v1859 = vmul.f32 %v1579, %v1795
        %v1860 = vmul.f32 %v1581, %v1796
        %v1861 = vmul.f32 %v1583, %v1797
        %v1862 = vmul.f32 %v1585, %v1798
        %v1863 = vmul.f32 %v1587, %v1799
        %v1864 = vmul.f32 %v1589, %v1800
        %v1865 = vmul.f32 %v1591, %v1801
        %v1866 = vmul.f32 %v1593, %v1802
        %v1867 = vmul.f32 %v1595, %v1803
        %v1868 = vmul.f32 %v1597, %v1804
        %v1869 = vmul.f32 %v1599, %v1805
        %v1870 = vmul.f32 %v1601, %v1806
        %v1871 = vmul.f32 %v1603, %v1807
        %v1872 = vmul.f32 %v1605, %v1808
        %v1873 = vmul.f32 %v1607, %v1809
        %v1874 = vmul.f32 %v1609, %v1810
        %v1875 = vmul.f32 %v1611, %v1811
        %v1876 = vmul.f32 %v1613, %v1812
        %v1877 = vmul.f32 %v1615, %v1813
        %v1878 = vmul.f32 %v1617, %v1814
        %v1879 = vmul.f32 %v1619, %v1815
        %v1880 = vmul.f32 %v1621, %v1816
        %v1881 = vmul.f32 %v1623, %v1817
        %v1882 = vmul.f32 %v1625, %v1818
        %v1883 = vmul.f32 %v1627, %v1819
        %v1884 = vpack.c.bf16 %v1820, %v1820
        %v1885 = vpack.c.bf16 %v1821, %v1821
        %v1886 = vpack.c.bf16 %v1822, %v1822
        %v1887 = vpack.c.bf16 %v1823, %v1823
        %v1888 = vpack.c.bf16 %v1824, %v1824
        %v1889 = vpack.c.bf16 %v1825, %v1825
        %v1890 = vpack.c.bf16 %v1826, %v1826
        %v1891 = vpack.c.bf16 %v1827, %v1827
        %v1892 = vpack.c.bf16 %v1828, %v1828
        %v1893 = vpack.c.bf16 %v1829, %v1829
        %v1894 = vpack.c.bf16 %v1830, %v1830
        %v1895 = vpack.c.bf16 %v1831, %v1831
        %v1896 = vpack.c.bf16 %v1832, %v1832
        %v1897 = vpack.c.bf16 %v1833, %v1833
        %v1898 = vpack.c.bf16 %v1834, %v1834
        %v1899 = vpack.c.bf16 %v1835, %v1835
        %v1900 = vpack.c.bf16 %v1836, %v1836
        %v1901 = vpack.c.bf16 %v1837, %v1837
        %v1902 = vpack.c.bf16 %v1838, %v1838
        %v1903 = vpack.c.bf16 %v1839, %v1839
        %v1904 = vpack.c.bf16 %v1840, %v1840
        %v1905 = vpack.c.bf16 %v1841, %v1841
        %v1906 = vpack.c.bf16 %v1842, %v1842
        %v1907 = vpack.c.bf16 %v1843, %v1843
        %v1908 = vpack.c.bf16 %v1844, %v1844
        %v1909 = vpack.c.bf16 %v1845, %v1845
        %v1910 = vpack.c.bf16 %v1846, %v1846
        %v1911 = vpack.c.bf16 %v1847, %v1847
        %v1912 = vpack.c.bf16 %v1848, %v1848
        %v1913 = vpack.c.bf16 %v1849, %v1849
        %v1914 = vpack.c.bf16 %v1850, %v1850
        %v1915 = vpack.c.bf16 %v1851, %v1851
        %v1916 = vpack.c.bf16 %v1852, %v1852
        %v1917 = vpack.c.bf16 %v1853, %v1853
        %v1918 = vpack.c.bf16 %v1854, %v1854
        %v1919 = vpack.c.bf16 %v1855, %v1855
        %v1920 = vpack.c.bf16 %v1856, %v1856
        %v1921 = vpack.c.bf16 %v1857, %v1857
        %v1922 = vpack.c.bf16 %v1858, %v1858
        %v1923 = vpack.c.bf16 %v1859, %v1859
        %v1924 = vpack.c.bf16 %v1860, %v1860
        %v1925 = vpack.c.bf16 %v1861, %v1861
        %v1926 = vpack.c.bf16 %v1862, %v1862
        %v1927 = vpack.c.bf16 %v1863, %v1863
        %v1928 = vpack.c.bf16 %v1864, %v1864
        %v1929 = vpack.c.bf16 %v1865, %v1865
        %v1930 = vpack.c.bf16 %v1866, %v1866
        %v1931 = vpack.c.bf16 %v1867, %v1867
        %v1932 = vpack.c.bf16 %v1868, %v1868
        %v1933 = vpack.c.bf16 %v1869, %v1869
        %v1934 = vpack.c.bf16 %v1870, %v1870
        %v1935 = vpack.c.bf16 %v1871, %v1871
        %v1936 = vpack.c.bf16 %v1872, %v1872
        %v1937 = vpack.c.bf16 %v1873, %v1873
        %v1938 = vpack.c.bf16 %v1874, %v1874
        %v1939 = vpack.c.bf16 %v1875, %v1875
        %v1940 = vpack.c.bf16 %v1876, %v1876
        %v1941 = vpack.c.bf16 %v1877, %v1877
        %v1942 = vpack.c.bf16 %v1878, %v1878
        %v1943 = vpack.c.bf16 %v1879, %v1879
        %v1944 = vpack.c.bf16 %v1880, %v1880
        %v1945 = vpack.c.bf16 %v1881, %v1881
        %v1946 = vpack.c.bf16 %v1882, %v1882
        %v1947 = vpack.c.bf16 %v1883, %v1883
        %v1950 = vunpack.c.l.b16 %v895
        %v1951 = vunpack.c.l.b16 %v896
        %v1952 = vpack.c.b16 %v1951, %v1950
        %v1970 = vunpack.c.l.b16 %v1884
        %v1971 = vunpack.c.l.b16 %v1885
        %v1972 = vunpack.c.l.b16 %v1886
        %v1973 = vunpack.c.l.b16 %v1887
        %v1974 = vunpack.c.l.b16 %v1888
        %v1975 = vunpack.c.l.b16 %v1889
        %v1976 = vunpack.c.l.b16 %v1890
        %v1977 = vunpack.c.l.b16 %v1891
        %v1978 = vunpack.c.l.b16 %v1892
        %v1979 = vunpack.c.l.b16 %v1893
        %v1980 = vunpack.c.l.b16 %v1894
        %v1981 = vunpack.c.l.b16 %v1895
        %v1982 = vunpack.c.l.b16 %v1896
        %v1983 = vunpack.c.l.b16 %v1897
        %v1984 = vunpack.c.l.b16 %v1898
        %v1985 = vunpack.c.l.b16 %v1899
        %v1986 = vpack.c.b16 %v1971, %v1970
        %v1987 = vpack.c.b16 %v1973, %v1972
        %v1988 = vpack.c.b16 %v1975, %v1974
        %v1989 = vpack.c.b16 %v1977, %v1976
        %v1990 = vpack.c.b16 %v1979, %v1978
        %v1991 = vpack.c.b16 %v1981, %v1980
        %v1992 = vpack.c.b16 %v1983, %v1982
        %v1993 = vpack.c.b16 %v1985, %v1984
        %2002 = vmatpush.bf16.xpose.msra.mxu0 %v1993
        %2003 = vmatpush.bf16.xpose.msra.mxu0 %v1992
        %2004 = vmatpush.bf16.xpose.msra.mxu0 %v1991
        %2005 = vmatpush.bf16.xpose.msra.mxu0 %v1990
        %2006 = vmatpush.bf16.xpose.msra.mxu0 %v1989
        %2007 = vmatpush.bf16.xpose.msra.mxu0 %v1988
        %2008 = vmatpush.bf16.xpose.msra.mxu0 %v1987
        %2009 = vmatpush.bf16.xpose.msra.mxu0 %v1986
        %2010 = vmatmul.bf16.gmra.mxu0 %v1952
        %v2011 = vpop.f32.mrf.mxu0
        %v2012 = vadd.f32 0.0, %v2011
        %v2013 = vpop.f32.mrf.mxu0
        %v2014 = vadd.f32 0.0, %v2013
        %2015 = vdwg.mxu0
        %v2018 = vunpack.c.l.b16 %v897
        %v2019 = vunpack.c.l.b16 %v898
        %v2020 = vpack.c.b16 %v2019, %v2018
        %v2038 = vunpack.c.l.b16 %v1900
        %v2039 = vunpack.c.l.b16 %v1901
        %v2040 = vunpack.c.l.b16 %v1902
        %v2041 = vunpack.c.l.b16 %v1903
        %v2042 = vunpack.c.l.b16 %v1904
        %v2043 = vunpack.c.l.b16 %v1905
        %v2044 = vunpack.c.l.b16 %v1906
        %v2045 = vunpack.c.l.b16 %v1907
        %v2046 = vunpack.c.l.b16 %v1908
        %v2047 = vunpack.c.l.b16 %v1909
        %v2048 = vunpack.c.l.b16 %v1910
        %v2049 = vunpack.c.l.b16 %v1911
        %v2050 = vunpack.c.l.b16 %v1912
        %v2051 = vunpack.c.l.b16 %v1913
        %v2052 = vunpack.c.l.b16 %v1914
        %v2053 = vunpack.c.l.b16 %v1915
        %v2054 = vpack.c.b16 %v2039, %v2038
        %v2055 = vpack.c.b16 %v2041, %v2040
        %v2056 = vpack.c.b16 %v2043, %v2042
        %v2057 = vpack.c.b16 %v2045, %v2044
        %v2058 = vpack.c.b16 %v2047, %v2046
        %v2059 = vpack.c.b16 %v2049, %v2048
        %v2060 = vpack.c.b16 %v2051, %v2050
        %v2061 = vpack.c.b16 %v2053, %v2052
        %2070 = vmatpush.bf16.xpose.msra.mxu0 %v2061
        %2071 = vmatpush.bf16.xpose.msra.mxu0 %v2060
        %2072 = vmatpush.bf16.xpose.msra.mxu0 %v2059
        %2073 = vmatpush.bf16.xpose.msra.mxu0 %v2058
        %2074 = vmatpush.bf16.xpose.msra.mxu0 %v2057
        %2075 = vmatpush.bf16.xpose.msra.mxu0 %v2056
        %2076 = vmatpush.bf16.xpose.msra.mxu0 %v2055
        %2077 = vmatpush.bf16.xpose.msra.mxu0 %v2054
        %2078 = vmatmul.bf16.gmra.mxu0 %v2020
        %v2079 = vpop.f32.mrf.mxu0
        %v2080 = vadd.f32 0.0, %v2079
        %v2081 = vpop.f32.mrf.mxu0
        %v2082 = vadd.f32 0.0, %v2081
        %2083 = vdwg.mxu0
        %v2086 = vunpack.c.l.b16 %v899
        %v2087 = vunpack.c.l.b16 %v900
        %v2088 = vpack.c.b16 %v2087, %v2086
        %v2106 = vunpack.c.l.b16 %v1916
        %v2107 = vunpack.c.l.b16 %v1917
        %v2108 = vunpack.c.l.b16 %v1918
        %v2109 = vunpack.c.l.b16 %v1919
        %v2110 = vunpack.c.l.b16 %v1920
        %v2111 = vunpack.c.l.b16 %v1921
        %v2112 = vunpack.c.l.b16 %v1922
        %v2113 = vunpack.c.l.b16 %v1923
        %v2114 = vunpack.c.l.b16 %v1924
        %v2115 = vunpack.c.l.b16 %v1925
        %v2116 = vunpack.c.l.b16 %v1926
        %v2117 = vunpack.c.l.b16 %v1927
        %v2118 = vunpack.c.l.b16 %v1928
        %v2119 = vunpack.c.l.b16 %v1929
        %v2120 = vunpack.c.l.b16 %v1930
        %v2121 = vunpack.c.l.b16 %v1931
        %v2122 = vpack.c.b16 %v2107, %v2106
        %v2123 = vpack.c.b16 %v2109, %v2108
        %v2124 = vpack.c.b16 %v2111, %v2110
        %v2125 = vpack.c.b16 %v2113, %v2112
        %v2126 = vpack.c.b16 %v2115, %v2114
        %v2127 = vpack.c.b16 %v2117, %v2116
        %v2128 = vpack.c.b16 %v2119, %v2118
        %v2129 = vpack.c.b16 %v2121, %v2120
        %2138 = vmatpush.bf16.xpose.msra.mxu0 %v2129
        %2139 = vmatpush.bf16.xpose.msra.mxu0 %v2128
        %2140 = vmatpush.bf16.xpose.msra.mxu0 %v2127
        %2141 = vmatpush.bf16.xpose.msra.mxu0 %v2126
        %2142 = vmatpush.bf16.xpose.msra.mxu0 %v2125
        %2143 = vmatpush.bf16.xpose.msra.mxu0 %v2124
        %2144 = vmatpush.bf16.xpose.msra.mxu0 %v2123
        %2145 = vmatpush.bf16.xpose.msra.mxu0 %v2122
        %2146 = vmatmul.bf16.gmra.mxu0 %v2088
        %v2147 = vpop.f32.mrf.mxu0
        %v2148 = vadd.f32 0.0, %v2147
        %v2149 = vpop.f32.mrf.mxu0
        %v2150 = vadd.f32 0.0, %v2149
        %2151 = vdwg.mxu0
        %v2154 = vunpack.c.l.b16 %v901
        %v2155 = vunpack.c.l.b16 %v902
        %v2156 = vpack.c.b16 %v2155, %v2154
        %v2174 = vunpack.c.l.b16 %v1932
        %v2175 = vunpack.c.l.b16 %v1933
        %v2176 = vunpack.c.l.b16 %v1934
        %v2177 = vunpack.c.l.b16 %v1935
        %v2178 = vunpack.c.l.b16 %v1936
        %v2179 = vunpack.c.l.b16 %v1937
        %v2180 = vunpack.c.l.b16 %v1938
        %v2181 = vunpack.c.l.b16 %v1939
        %v2182 = vunpack.c.l.b16 %v1940
        %v2183 = vunpack.c.l.b16 %v1941
        %v2184 = vunpack.c.l.b16 %v1942
        %v2185 = vunpack.c.l.b16 %v1943
        %v2186 = vunpack.c.l.b16 %v1944
        %v2187 = vunpack.c.l.b16 %v1945
        %v2188 = vunpack.c.l.b16 %v1946
        %v2189 = vunpack.c.l.b16 %v1947
        %v2190 = vpack.c.b16 %v2175, %v2174
        %v2191 = vpack.c.b16 %v2177, %v2176
        %v2192 = vpack.c.b16 %v2179, %v2178
        %v2193 = vpack.c.b16 %v2181, %v2180
        %v2194 = vpack.c.b16 %v2183, %v2182
        %v2195 = vpack.c.b16 %v2185, %v2184
        %v2196 = vpack.c.b16 %v2187, %v2186
        %v2197 = vpack.c.b16 %v2189, %v2188
        %2206 = vmatpush.bf16.xpose.msra.mxu0 %v2197
        %2207 = vmatpush.bf16.xpose.msra.mxu0 %v2196
        %2208 = vmatpush.bf16.xpose.msra.mxu0 %v2195
        %2209 = vmatpush.bf16.xpose.msra.mxu0 %v2194
        %2210 = vmatpush.bf16.xpose.msra.mxu0 %v2193
        %2211 = vmatpush.bf16.xpose.msra.mxu0 %v2192
        %2212 = vmatpush.bf16.xpose.msra.mxu0 %v2191
        %2213 = vmatpush.bf16.xpose.msra.mxu0 %v2190
        %2214 = vmatmul.bf16.gmra.mxu0 %v2156
        %v2215 = vpop.f32.mrf.mxu0
        %v2216 = vadd.f32 0.0, %v2215
        %v2217 = vpop.f32.mrf.mxu0
        %v2218 = vadd.f32 0.0, %v2217
        %2219 = vdwg.mxu0
        %v2220 = vpack.c.bf16 %v2014, %v2012
        %v2221 = vpack.c.bf16 %v2082, %v2080
        %v2222 = vpack.c.bf16 %v2150, %v2148
        %v2223 = vpack.c.bf16 %v2218, %v2216
        %v2224 = vld [vmem:[%s4] sm:$0xf]
        %v2225 = vld [vmem:[%s4 + $0x4] sm:$0xf]
        %v2226 = vld [vmem:[%s4 + $0x8] sm:$0xf]
        %v2227 = vld [vmem:[%s4 + $0xc] sm:$0xf]
        %v2228 = vld [vmem:[%s4 + $0x10] sm:$0xf]
        %v2229 = vld [vmem:[%s4 + $0x14] sm:$0xf]
        %v2230 = vld [vmem:[%s4 + $0x18] sm:$0xf]
        %v2231 = vld [vmem:[%s4 + $0x1c] sm:$0xf]
        %2232 = vset.pattern.permute.xlu0 4
        %2233 = vperm.xlu0 %2232, %v364
        %v2234 = vpop.permute.xlu0 %2233
        %2236 = vset.pattern.permute.xlu0 4
        %2237 = vperm.xlu0 %2236, %v365
        %v2238 = vpop.permute.xlu0 %2237
        %2240 = vset.pattern.permute.xlu0 4
        %2241 = vperm.xlu0 %2240, %v366
        %v2242 = vpop.permute.xlu0 %2241
        %2244 = vset.pattern.permute.xlu0 4
        %2245 = vperm.xlu0 %2244, %v367
        %v2246 = vpop.permute.xlu0 %2245
        %2248 = vset.pattern.permute.xlu0 4
        %2249 = vperm.xlu0 %2248, %v368
        %v2250 = vpop.permute.xlu0 %2249
        %2252 = vset.pattern.permute.xlu0 4
        %2253 = vperm.xlu0 %2252, %v369
        %v2254 = vpop.permute.xlu0 %2253
        %2256 = vset.pattern.permute.xlu0 4
        %2257 = vperm.xlu0 %2256, %v370
        %v2258 = vpop.permute.xlu0 %2257
        %2260 = vset.pattern.permute.xlu0 4
        %2261 = vperm.xlu0 %2260, %v371
        %v2262 = vpop.permute.xlu0 %2261
        %v2272 = vunpack.c.l.b16 %v2224
        %v2273 = vunpack.c.l.b16 %v2225
        %v2274 = vunpack.c.l.b16 %v2226
        %v2275 = vunpack.c.l.b16 %v2227
        %v2276 = vunpack.c.l.b16 %v2228
        %v2277 = vunpack.c.l.b16 %v2229
        %v2278 = vunpack.c.l.b16 %v2230
        %v2279 = vunpack.c.l.b16 %v2231
        %v2280 = vpack.c.b16 %v2273, %v2272
        %v2281 = vpack.c.b16 %v2275, %v2274
        %v2282 = vpack.c.b16 %v2277, %v2276
        %v2283 = vpack.c.b16 %v2279, %v2278
        %v2285 = vsel %vm773, %v2280, 0
        %v2288 = vsel %vm773, %v2281, 0
        %v2291 = vsel %vm773, %v2282, 0
        %v2294 = vsel %vm773, %v2283, 0
        %2296 = vmatpush.bf16.msra.mxu0 0
        %2297 = vmatpush.bf16.msra.mxu0 0
        %2298 = vmatpush.bf16.msra.mxu0 0
        %2299 = vmatpush.bf16.msra.mxu0 0
        %2300 = vmatpush.bf16.msra.mxu0 %v2223
        %2301 = vmatpush.bf16.msra.mxu0 %v2222
        %2302 = vmatpush.bf16.msra.mxu0 %v2221
        %2303 = vmatpush.bf16.msra.mxu0 %v2220
        %2304 = vmatmul.bf16.gmra.mxu0 %v2285
        %v2305 = vpop.f32.mrf.mxu0
        %v2306 = vadd.f32 %v2234, %v2305
        %v2307 = vpop.f32.mrf.mxu0
        %v2308 = vadd.f32 %v2238, %v2307
        %2309 = vmatmul.bf16.gmra.mxu0 %v2288
        %v2310 = vpop.f32.mrf.mxu0
        %v2311 = vadd.f32 %v2242, %v2310
        %v2312 = vpop.f32.mrf.mxu0
        %v2313 = vadd.f32 %v2246, %v2312
        %2314 = vmatmul.bf16.gmra.mxu0 %v2291
        %v2315 = vpop.f32.mrf.mxu0
        %v2316 = vadd.f32 %v2250, %v2315
        %v2317 = vpop.f32.mrf.mxu0
        %v2318 = vadd.f32 %v2254, %v2317
        %2319 = vmatmul.bf16.gmra.mxu0 %v2294
        %v2320 = vpop.f32.mrf.mxu0
        %v2321 = vadd.f32 %v2258, %v2320
        %v2322 = vpop.f32.mrf.mxu0
        %v2323 = vadd.f32 %v2262, %v2322
        %2324 = vdwg.mxu0
        %v2325 = vadd.f32 %v2306, %v356
        %v2326 = vadd.f32 %v2308, %v357
        %v2327 = vadd.f32 %v2311, %v358
        %v2328 = vadd.f32 %v2313, %v359
        %v2329 = vadd.f32 %v2316, %v360
        %v2330 = vadd.f32 %v2318, %v361
        %v2331 = vadd.f32 %v2321, %v362
        %v2332 = vadd.f32 %v2323, %v363
        %v2333 = vadd.f32 %v2325, %v2326
        %v2334 = vadd.f32 %v2333, %v2327
        %v2335 = vadd.f32 %v2334, %v2328
        %v2336 = vadd.f32 %v2335, %v2329
        %v2337 = vadd.f32 %v2336, %v2330
        %v2338 = vadd.f32 %v2337, %v2331
        %v2339 = vadd.f32 %v2338, %v2332
        %2340 = vadd.xlane.f32.xlu0 %v2339
        %v2341 = vpop.xlane.xlu0 %2340
        %v2342 = vrot.slane %v2341, 4
        %v2343 = vadd.f32 %v2341, %v2342
        %v2344 = vrot.slane %v2343, 2
        %v2345 = vadd.f32 %v2343, %v2344
        %v2346 = vrot.slane %v2345, 1
        %v2347 = vadd.f32 %v2345, %v2346
        %s2348 = vtos %v2347
        %v2349 = vstv %s2348
        %v2350 = vmul.f32 %v2349, %v395
        %v2351 = vmul.f32 %v2325, %v2325
        %v2352 = vmul.f32 %v2326, %v2326
        %v2353 = vmul.f32 %v2327, %v2327
        %v2354 = vmul.f32 %v2328, %v2328
        %v2355 = vmul.f32 %v2329, %v2329
        %v2356 = vmul.f32 %v2330, %v2330
        %v2357 = vmul.f32 %v2331, %v2331
        %v2358 = vmul.f32 %v2332, %v2332
        %v2359 = vadd.f32 %v2351, %v2352
        %v2360 = vadd.f32 %v2359, %v2353
        %v2361 = vadd.f32 %v2360, %v2354
        %v2362 = vadd.f32 %v2361, %v2355
        %v2363 = vadd.f32 %v2362, %v2356
        %v2364 = vadd.f32 %v2363, %v2357
        %v2365 = vadd.f32 %v2364, %v2358
        %2366 = vadd.xlane.f32.xlu0 %v2365
        %v2367 = vpop.xlane.xlu0 %2366
        %v2368 = vrot.slane %v2367, 4
        %v2369 = vadd.f32 %v2367, %v2368
        %v2370 = vrot.slane %v2369, 2
        %v2371 = vadd.f32 %v2369, %v2370
        %v2372 = vrot.slane %v2371, 1
        %v2373 = vadd.f32 %v2371, %v2372
        %s2374 = vtos %v2373
        %v2375 = vstv %s2374
        %v2376 = vmul.f32 %v2375, %v395
        %v2377 = vmul.f32 %v2350, %v2350
        %v2378 = vsub.f32 %v2376, %v2377
        %v2379 = vmax.f32 %v2378, 0.0
        %v2380 = vsub.f32 %v2325, %v2350
        %v2381 = vsub.f32 %v2326, %v2350
        %v2382 = vsub.f32 %v2327, %v2350
        %v2383 = vsub.f32 %v2328, %v2350
        %v2384 = vsub.f32 %v2329, %v2350
        %v2385 = vsub.f32 %v2330, %v2350
        %v2386 = vsub.f32 %v2331, %v2350
        %v2387 = vsub.f32 %v2332, %v2350
        %v2388 = vadd.f32 %v2379, 1e-08
        %v2389 = vrsqrt.pop %v2388
        %v2390 = vmul.f32 %v2389, %v2388
        %v2391 = vmul.f32 %v2390, %v2389
        %v2392 = vmul.f32 0.5, %v2391
        %v2393 = vsub.f32 1.5, %v2392
        %v2394 = vmul.f32 %v2389, %v2393
        %vm2395 = vweird.f32 %v2388
        %vm2396 = vweird.f32 %v2389
        %vm2397 = vmor %vm2395, %vm2396
        %v2398 = vsel %vm2397, %v2389, %v2394
        %v2399 = vmul.f32 %v2380, %v2398
        %v2400 = vmul.f32 %v2381, %v2398
        %v2401 = vmul.f32 %v2382, %v2398
        %v2402 = vmul.f32 %v2383, %v2398
        %v2403 = vmul.f32 %v2384, %v2398
        %v2404 = vmul.f32 %v2385, %v2398
        %v2405 = vmul.f32 %v2386, %v2398
        %v2406 = vmul.f32 %v2387, %v2398
        %2407 = vset.pattern.permute.xlu0 2
        %2408 = vperm.xlu0 %2407, %v364
        %v2409 = vpop.permute.xlu0 %2408
        %2411 = vset.pattern.permute.xlu0 2
        %2412 = vperm.xlu0 %2411, %v365
        %v2413 = vpop.permute.xlu0 %2412
        %2415 = vset.pattern.permute.xlu0 2
        %2416 = vperm.xlu0 %2415, %v366
        %v2417 = vpop.permute.xlu0 %2416
        %2419 = vset.pattern.permute.xlu0 2
        %2420 = vperm.xlu0 %2419, %v367
        %v2421 = vpop.permute.xlu0 %2420
        %2423 = vset.pattern.permute.xlu0 2
        %2424 = vperm.xlu0 %2423, %v368
        %v2425 = vpop.permute.xlu0 %2424
        %2427 = vset.pattern.permute.xlu0 2
        %2428 = vperm.xlu0 %2427, %v369
        %v2429 = vpop.permute.xlu0 %2428
        %2431 = vset.pattern.permute.xlu0 2
        %2432 = vperm.xlu0 %2431, %v370
        %v2433 = vpop.permute.xlu0 %2432
        %2435 = vset.pattern.permute.xlu0 2
        %2436 = vperm.xlu0 %2435, %v371
        %v2437 = vpop.permute.xlu0 %2436
        %v2439 = vmul.f32 %v2399, %v2409
        %v2440 = vmul.f32 %v2400, %v2413
        %v2441 = vmul.f32 %v2401, %v2417
        %v2442 = vmul.f32 %v2402, %v2421
        %v2443 = vmul.f32 %v2403, %v2425
        %v2444 = vmul.f32 %v2404, %v2429
        %v2445 = vmul.f32 %v2405, %v2433
        %v2446 = vmul.f32 %v2406, %v2437
        %2447 = vset.pattern.permute.xlu0 3
        %2448 = vperm.xlu0 %2447, %v364
        %v2449 = vpop.permute.xlu0 %2448
        %2451 = vset.pattern.permute.xlu0 3
        %2452 = vperm.xlu0 %2451, %v365
        %v2453 = vpop.permute.xlu0 %2452
        %2455 = vset.pattern.permute.xlu0 3
        %2456 = vperm.xlu0 %2455, %v366
        %v2457 = vpop.permute.xlu0 %2456
        %2459 = vset.pattern.permute.xlu0 3
        %2460 = vperm.xlu0 %2459, %v367
        %v2461 = vpop.permute.xlu0 %2460
        %2463 = vset.pattern.permute.xlu0 3
        %2464 = vperm.xlu0 %2463, %v368
        %v2465 = vpop.permute.xlu0 %2464
        %2467 = vset.pattern.permute.xlu0 3
        %2468 = vperm.xlu0 %2467, %v369
        %v2469 = vpop.permute.xlu0 %2468
        %2471 = vset.pattern.permute.xlu0 3
        %2472 = vperm.xlu0 %2471, %v370
        %v2473 = vpop.permute.xlu0 %2472
        %2475 = vset.pattern.permute.xlu0 3
        %2476 = vperm.xlu0 %2475, %v371
        %v2477 = vpop.permute.xlu0 %2476
        %v2479 = vadd.f32 %v2439, %v2449
        %v2480 = vadd.f32 %v2440, %v2453
        %v2481 = vadd.f32 %v2441, %v2457
        %v2482 = vadd.f32 %v2442, %v2461
        %v2483 = vadd.f32 %v2443, %v2465
        %v2484 = vadd.f32 %v2444, %v2469
        %v2485 = vadd.f32 %v2445, %v2473
        %v2486 = vadd.f32 %v2446, %v2477
        %v2487 = vpack.c.bf16 %v2480, %v2479
        %v2488 = vpack.c.bf16 %v2482, %v2481
        %v2489 = vpack.c.bf16 %v2484, %v2483
        %v2490 = vpack.c.bf16 %v2486, %v2485
        %v2491 = vld [vmem:[%s6] sm:$0xf]
        %v2492 = vld [vmem:[%s6 + $0x4] sm:$0xf]
        %v2493 = vld [vmem:[%s6 + $0x8] sm:$0xf]
        %v2494 = vld [vmem:[%s6 + $0xc] sm:$0xf]
        %v2495 = vld [vmem:[%s6 + $0x10] sm:$0xf]
        %v2496 = vld [vmem:[%s6 + $0x14] sm:$0xf]
        %v2497 = vld [vmem:[%s6 + $0x18] sm:$0xf]
        %v2498 = vld [vmem:[%s6 + $0x1c] sm:$0xf]
        %v2499 = vld [vmem:[%s6 + $0x20] sm:$0xf]
        %v2500 = vld [vmem:[%s6 + $0x24] sm:$0xf]
        %v2501 = vld [vmem:[%s6 + $0x28] sm:$0xf]
        %v2502 = vld [vmem:[%s6 + $0x2c] sm:$0xf]
        %v2503 = vld [vmem:[%s6 + $0x30] sm:$0xf]
        %v2504 = vld [vmem:[%s6 + $0x34] sm:$0xf]
        %v2505 = vld [vmem:[%s6 + $0x38] sm:$0xf]
        %v2506 = vld [vmem:[%s6 + $0x3c] sm:$0xf]
        %v2507 = vld [vmem:[%s7] sm:$0xff]
        %v2508 = vld [vmem:[%s7 + $0x8] sm:$0xff]
        %v2509 = vld [vmem:[%s7 + $0x10] sm:$0xff]
        %v2510 = vld [vmem:[%s7 + $0x18] sm:$0xff]
        %v2511 = vld [vmem:[%s7 + $0x20] sm:$0xff]
        %v2512 = vld [vmem:[%s7 + $0x28] sm:$0xff]
        %v2513 = vld [vmem:[%s7 + $0x30] sm:$0xff]
        %v2514 = vld [vmem:[%s7 + $0x38] sm:$0xff]
        %v2515 = vld [vmem:[%s7 + $0x40] sm:$0xff]
        %v2516 = vld [vmem:[%s7 + $0x48] sm:$0xff]
        %v2517 = vld [vmem:[%s7 + $0x50] sm:$0xff]
        %v2518 = vld [vmem:[%s7 + $0x58] sm:$0xff]
        %v2519 = vld [vmem:[%s7 + $0x60] sm:$0xff]
        %v2520 = vld [vmem:[%s7 + $0x68] sm:$0xff]
        %v2521 = vld [vmem:[%s7 + $0x70] sm:$0xff]
        %v2522 = vld [vmem:[%s7 + $0x78] sm:$0xff]
        %2524 = vset.pattern.permute.xlu0 0
        %2525 = vperm.xlu0 %2524, %v2507
        %v2526 = vpop.permute.xlu0 %2525
        %2529 = vset.pattern.permute.xlu0 0
        %2530 = vperm.xlu0 %2529, %v2508
        %v2531 = vpop.permute.xlu0 %2530
        %2534 = vset.pattern.permute.xlu0 0
        %2535 = vperm.xlu0 %2534, %v2509
        %v2536 = vpop.permute.xlu0 %2535
        %2539 = vset.pattern.permute.xlu0 0
        %2540 = vperm.xlu0 %2539, %v2510
        %v2541 = vpop.permute.xlu0 %2540
        %2544 = vset.pattern.permute.xlu0 0
        %2545 = vperm.xlu0 %2544, %v2511
        %v2546 = vpop.permute.xlu0 %2545
        %2549 = vset.pattern.permute.xlu0 0
        %2550 = vperm.xlu0 %2549, %v2512
        %v2551 = vpop.permute.xlu0 %2550
        %2554 = vset.pattern.permute.xlu0 0
        %2555 = vperm.xlu0 %2554, %v2513
        %v2556 = vpop.permute.xlu0 %2555
        %2559 = vset.pattern.permute.xlu0 0
        %2560 = vperm.xlu0 %2559, %v2514
        %v2561 = vpop.permute.xlu0 %2560
        %2564 = vset.pattern.permute.xlu0 0
        %2565 = vperm.xlu0 %2564, %v2515
        %v2566 = vpop.permute.xlu0 %2565
        %2569 = vset.pattern.permute.xlu0 0
        %2570 = vperm.xlu0 %2569, %v2516
        %v2571 = vpop.permute.xlu0 %2570
        %2574 = vset.pattern.permute.xlu0 0
        %2575 = vperm.xlu0 %2574, %v2517
        %v2576 = vpop.permute.xlu0 %2575
        %2579 = vset.pattern.permute.xlu0 0
        %2580 = vperm.xlu0 %2579, %v2518
        %v2581 = vpop.permute.xlu0 %2580
        %2584 = vset.pattern.permute.xlu0 0
        %2585 = vperm.xlu0 %2584, %v2519
        %v2586 = vpop.permute.xlu0 %2585
        %2589 = vset.pattern.permute.xlu0 0
        %2590 = vperm.xlu0 %2589, %v2520
        %v2591 = vpop.permute.xlu0 %2590
        %2594 = vset.pattern.permute.xlu0 0
        %2595 = vperm.xlu0 %2594, %v2521
        %v2596 = vpop.permute.xlu0 %2595
        %2599 = vset.pattern.permute.xlu0 0
        %2600 = vperm.xlu0 %2599, %v2522
        %v2601 = vpop.permute.xlu0 %2600
        %v2619 = vunpack.c.l.b16 %v2491
        %v2620 = vunpack.c.l.b16 %v2492
        %v2621 = vunpack.c.l.b16 %v2493
        %v2622 = vunpack.c.l.b16 %v2494
        %v2623 = vunpack.c.l.b16 %v2495
        %v2624 = vunpack.c.l.b16 %v2496
        %v2625 = vunpack.c.l.b16 %v2497
        %v2626 = vunpack.c.l.b16 %v2498
        %v2627 = vunpack.c.l.b16 %v2499
        %v2628 = vunpack.c.l.b16 %v2500
        %v2629 = vunpack.c.l.b16 %v2501
        %v2630 = vunpack.c.l.b16 %v2502
        %v2631 = vunpack.c.l.b16 %v2503
        %v2632 = vunpack.c.l.b16 %v2504
        %v2633 = vunpack.c.l.b16 %v2505
        %v2634 = vunpack.c.l.b16 %v2506
        %v2635 = vpack.c.b16 %v2620, %v2619
        %v2636 = vpack.c.b16 %v2622, %v2621
        %v2637 = vpack.c.b16 %v2624, %v2623
        %v2638 = vpack.c.b16 %v2626, %v2625
        %v2639 = vpack.c.b16 %v2628, %v2627
        %v2640 = vpack.c.b16 %v2630, %v2629
        %v2641 = vpack.c.b16 %v2632, %v2631
        %v2642 = vpack.c.b16 %v2634, %v2633
        %v2644 = vsel %vm773, %v2635, 0
        %v2647 = vsel %vm773, %v2636, 0
        %v2650 = vsel %vm773, %v2637, 0
        %v2653 = vsel %vm773, %v2638, 0
        %v2656 = vsel %vm773, %v2639, 0
        %v2659 = vsel %vm773, %v2640, 0
        %v2662 = vsel %vm773, %v2641, 0
        %v2665 = vsel %vm773, %v2642, 0
        %2667 = vmatpush.bf16.msra.mxu0 0
        %2668 = vmatpush.bf16.msra.mxu0 0
        %2669 = vmatpush.bf16.msra.mxu0 0
        %2670 = vmatpush.bf16.msra.mxu0 0
        %2671 = vmatpush.bf16.msra.mxu0 %v2490
        %2672 = vmatpush.bf16.msra.mxu0 %v2489
        %2673 = vmatpush.bf16.msra.mxu0 %v2488
        %2674 = vmatpush.bf16.msra.mxu0 %v2487
        %2675 = vmatmul.bf16.gmra.mxu0 %v2644
        %v2676 = vpop.f32.mrf.mxu0
        %v2677 = vadd.f32 %v2526, %v2676
        %v2678 = vpop.f32.mrf.mxu0
        %v2679 = vadd.f32 %v2531, %v2678
        %2680 = vmatmul.bf16.gmra.mxu0 %v2647
        %v2681 = vpop.f32.mrf.mxu0
        %v2682 = vadd.f32 %v2536, %v2681
        %v2683 = vpop.f32.mrf.mxu0
        %v2684 = vadd.f32 %v2541, %v2683
        %2685 = vmatmul.bf16.gmra.mxu0 %v2650
        %v2686 = vpop.f32.mrf.mxu0
        %v2687 = vadd.f32 %v2546, %v2686
        %v2688 = vpop.f32.mrf.mxu0
        %v2689 = vadd.f32 %v2551, %v2688
        %2690 = vmatmul.bf16.gmra.mxu0 %v2653
        %v2691 = vpop.f32.mrf.mxu0
        %v2692 = vadd.f32 %v2556, %v2691
        %v2693 = vpop.f32.mrf.mxu0
        %v2694 = vadd.f32 %v2561, %v2693
        %2695 = vmatmul.bf16.gmra.mxu0 %v2656
        %v2696 = vpop.f32.mrf.mxu0
        %v2697 = vadd.f32 %v2566, %v2696
        %v2698 = vpop.f32.mrf.mxu0
        %v2699 = vadd.f32 %v2571, %v2698
        %2700 = vmatmul.bf16.gmra.mxu0 %v2659
        %v2701 = vpop.f32.mrf.mxu0
        %v2702 = vadd.f32 %v2576, %v2701
        %v2703 = vpop.f32.mrf.mxu0
        %v2704 = vadd.f32 %v2581, %v2703
        %2705 = vmatmul.bf16.gmra.mxu0 %v2662
        %v2706 = vpop.f32.mrf.mxu0
        %v2707 = vadd.f32 %v2586, %v2706
        %v2708 = vpop.f32.mrf.mxu0
        %v2709 = vadd.f32 %v2591, %v2708
        %2710 = vmatmul.bf16.gmra.mxu0 %v2665
        %v2711 = vpop.f32.mrf.mxu0
        %v2712 = vadd.f32 %v2596, %v2711
        %v2713 = vpop.f32.mrf.mxu0
        %v2714 = vadd.f32 %v2601, %v2713
        %2715 = vdwg.mxu0
        %v2716 = vmax.f32 %v2677, 0.0
        %v2717 = vmax.f32 %v2679, 0.0
        %v2718 = vmax.f32 %v2682, 0.0
        %v2719 = vmax.f32 %v2684, 0.0
        %v2720 = vmax.f32 %v2687, 0.0
        %v2721 = vmax.f32 %v2689, 0.0
        %v2722 = vmax.f32 %v2692, 0.0
        %v2723 = vmax.f32 %v2694, 0.0
        %v2724 = vmax.f32 %v2697, 0.0
        %v2725 = vmax.f32 %v2699, 0.0
        %v2726 = vmax.f32 %v2702, 0.0
        %v2727 = vmax.f32 %v2704, 0.0
        %v2728 = vmax.f32 %v2707, 0.0
        %v2729 = vmax.f32 %v2709, 0.0
        %v2730 = vmax.f32 %v2712, 0.0
        %v2731 = vmax.f32 %v2714, 0.0
        %v2732 = vpack.c.bf16 %v2717, %v2716
        %v2733 = vpack.c.bf16 %v2719, %v2718
        %v2734 = vpack.c.bf16 %v2721, %v2720
        %v2735 = vpack.c.bf16 %v2723, %v2722
        %v2736 = vpack.c.bf16 %v2725, %v2724
        %v2737 = vpack.c.bf16 %v2727, %v2726
        %v2738 = vpack.c.bf16 %v2729, %v2728
        %v2739 = vpack.c.bf16 %v2731, %v2730
        %v2740 = vld [vmem:[%s8] sm:$0xf]
        %v2741 = vld [vmem:[%s8 + $0x4] sm:$0xf]
        %v2742 = vld [vmem:[%s8 + $0x8] sm:$0xf]
        %v2743 = vld [vmem:[%s8 + $0xc] sm:$0xf]
        %v2744 = vld [vmem:[%s8 + $0x10] sm:$0xf]
        %v2745 = vld [vmem:[%s8 + $0x14] sm:$0xf]
        %v2746 = vld [vmem:[%s8 + $0x18] sm:$0xf]
        %v2747 = vld [vmem:[%s8 + $0x1c] sm:$0xf]
        %2748 = vset.pattern.permute.xlu0 5
        %2749 = vperm.xlu0 %2748, %v364
        %v2750 = vpop.permute.xlu0 %2749
        %2752 = vset.pattern.permute.xlu0 5
        %2753 = vperm.xlu0 %2752, %v365
        %v2754 = vpop.permute.xlu0 %2753
        %2756 = vset.pattern.permute.xlu0 5
        %2757 = vperm.xlu0 %2756, %v366
        %v2758 = vpop.permute.xlu0 %2757
        %2760 = vset.pattern.permute.xlu0 5
        %2761 = vperm.xlu0 %2760, %v367
        %v2762 = vpop.permute.xlu0 %2761
        %2764 = vset.pattern.permute.xlu0 5
        %2765 = vperm.xlu0 %2764, %v368
        %v2766 = vpop.permute.xlu0 %2765
        %2768 = vset.pattern.permute.xlu0 5
        %2769 = vperm.xlu0 %2768, %v369
        %v2770 = vpop.permute.xlu0 %2769
        %2772 = vset.pattern.permute.xlu0 5
        %2773 = vperm.xlu0 %2772, %v370
        %v2774 = vpop.permute.xlu0 %2773
        %2776 = vset.pattern.permute.xlu0 5
        %2777 = vperm.xlu0 %2776, %v371
        %v2778 = vpop.permute.xlu0 %2777
        %v2788 = vunpack.c.l.b16 %v2740
        %v2789 = vunpack.c.l.b16 %v2741
        %v2790 = vunpack.c.l.b16 %v2742
        %v2791 = vunpack.c.l.b16 %v2743
        %v2792 = vunpack.c.l.b16 %v2744
        %v2793 = vunpack.c.l.b16 %v2745
        %v2794 = vunpack.c.l.b16 %v2746
        %v2795 = vunpack.c.l.b16 %v2747
        %v2796 = vpack.c.b16 %v2789, %v2788
        %v2797 = vpack.c.b16 %v2791, %v2790
        %v2798 = vpack.c.b16 %v2793, %v2792
        %v2799 = vpack.c.b16 %v2795, %v2794
        %2804 = vmatpush.bf16.msra.mxu0 %v2739
        %2805 = vmatpush.bf16.msra.mxu0 %v2738
        %2806 = vmatpush.bf16.msra.mxu0 %v2737
        %2807 = vmatpush.bf16.msra.mxu0 %v2736
        %2808 = vmatpush.bf16.msra.mxu0 %v2735
        %2809 = vmatpush.bf16.msra.mxu0 %v2734
        %2810 = vmatpush.bf16.msra.mxu0 %v2733
        %2811 = vmatpush.bf16.msra.mxu0 %v2732
        %2812 = vmatmul.bf16.gmra.mxu0 %v2796
        %v2813 = vpop.f32.mrf.mxu0
        %v2814 = vadd.f32 %v2750, %v2813
        %v2815 = vpop.f32.mrf.mxu0
        %v2816 = vadd.f32 %v2754, %v2815
        %2817 = vmatmul.bf16.gmra.mxu0 %v2797
        %v2818 = vpop.f32.mrf.mxu0
        %v2819 = vadd.f32 %v2758, %v2818
        %v2820 = vpop.f32.mrf.mxu0
        %v2821 = vadd.f32 %v2762, %v2820
        %2822 = vmatmul.bf16.gmra.mxu0 %v2798
        %v2823 = vpop.f32.mrf.mxu0
        %v2824 = vadd.f32 %v2766, %v2823
        %v2825 = vpop.f32.mrf.mxu0
        %v2826 = vadd.f32 %v2770, %v2825
        %2827 = vmatmul.bf16.gmra.mxu0 %v2799
        %v2828 = vpop.f32.mrf.mxu0
        %v2829 = vadd.f32 %v2774, %v2828
        %v2830 = vpop.f32.mrf.mxu0
        %v2831 = vadd.f32 %v2778, %v2830
        %2832 = vdwg.mxu0
        %v2833 = vadd.f32 %v2814, %v2325
        %v2834 = vadd.f32 %v2816, %v2326
        %v2835 = vadd.f32 %v2819, %v2327
        %v2836 = vadd.f32 %v2821, %v2328
        %v2837 = vadd.f32 %v2824, %v2329
        %v2838 = vadd.f32 %v2826, %v2330
        %v2839 = vadd.f32 %v2829, %v2331
        %v2840 = vadd.f32 %v2831, %v2332
        %v2841 = vadd.f32 %v2833, %v340
        %v2842 = vadd.f32 %v2834, %v341
        %v2843 = vadd.f32 %v2835, %v342
        %v2844 = vadd.f32 %v2836, %v343
        %v2845 = vadd.f32 %v2837, %v344
        %v2846 = vadd.f32 %v2838, %v345
        %v2847 = vadd.f32 %v2839, %v346
        %v2848 = vadd.f32 %v2840, %v347
        %v2849 = vpack.c.bf16 %v2841, %v2841
        %v2850 = vpack.c.bf16 %v2842, %v2842
        %v2851 = vpack.c.bf16 %v2843, %v2843
        %v2852 = vpack.c.bf16 %v2844, %v2844
        %v2853 = vpack.c.bf16 %v2845, %v2845
        %v2854 = vpack.c.bf16 %v2846, %v2846
        %v2855 = vpack.c.bf16 %v2847, %v2847
        %v2856 = vpack.c.bf16 %v2848, %v2848
        %2857 = vst [vmem:[%s325] sm:$0xf] %v2849
        %2858 = vst [vmem:[%s325 + $0x4] sm:$0xf] %v2850
        %2859 = vst [vmem:[%s325 + $0x8] sm:$0xf] %v2851
        %2860 = vst [vmem:[%s325 + $0xc] sm:$0xf] %v2852
        %2861 = vst [vmem:[%s325 + $0x10] sm:$0xf] %v2853
        %2862 = vst [vmem:[%s325 + $0x14] sm:$0xf] %v2854
        %2863 = vst [vmem:[%s325 + $0x18] sm:$0xf] %v2855
        %2864 = vst [vmem:[%s325 + $0x1c] sm:$0xf] %v2856
        %s2865 = sand.u32 %s225, 1
        %s2866 = scalar_lea.sflag [#allocation3], %s2865
        %s2867 = sand.u32 %s225, 1
        %s2868 = smul.addr %s2867, 32
        %s2869 = scalar_lea.vmem [#allocation2], %s2868
        // Predicated region
        $region57: #{tpu_custom_call.1} parent=55 // pred_check
          %p2870 = pneg %p235
        $region58: #{tpu_custom_call.1} parent=55 // pred_check_branch
          %2872 = sbr.rel (%p2870) target = $region60
        $region59: #{tpu_custom_call.1} parent=55 // pred_region
          %2874 = vsyncadd %s2866, 0
          %s2875 = smul.addr %s23, 8
          %s2876 = smul.addr %s2875, 4
          %s2877 = scalar_lea.hbm %s9, %s2876
          %s2878 = sshll.u32 %s2869, 4
          %s2879 = int_to_ptr.vmem [resolvable:$true] %s2878
          %s2880 = sshll.u32 %s2877, 4
          %s2881 = int_to_ptr.hbm [resolvable:$true] %s2880
          %2886 = dma.vmem_to_hbm [thread:$0]  %s2879, 512, %s2881, %s2866, 64, 64, 4
        $region60: #{tpu_custom_call.1} parent=55 // pred_fallthru
          _
      $region56: #{tpu_custom_call.1} parent=5 // pred_fallthru
        _
      %p2887 = scmp.le.s32.totalorder 2, %s18
      // Predicated region
      $region61: #{tpu_custom_call.1} parent=5 // pred_check
        %p2888 = pneg %p2887
      $region62: #{tpu_custom_call.1} parent=5 // pred_check_branch
        %2890 = sbr.rel (%p2888) target = $region64
      $region63: #{tpu_custom_call.1} parent=5 // pred_region
        %s2891 = ssub.s32 %s18, 2
        // Predicated region
        $region65: #{tpu_custom_call.1} parent=63 // pred_check
          %p2892 = pneg %p241
        $region66: #{tpu_custom_call.1} parent=63 // pred_check_branch
          %2894 = sbr.rel (%p2892) target = $region68
        $region67: #{tpu_custom_call.1} parent=63 // pred_region
          %s2895 = sand.u32 %s226, 1
          %s2896 = scalar_lea.sflag [#allocation3], %s2895
          %s2897 = sand.u32 %s226, 1
          %s2898 = smul.addr %s2897, 32
          %s2899 = scalar_lea.vmem [#allocation2], %s2898
          %2901 = dma.done %s2896, 512
        $region68: #{tpu_custom_call.1} parent=63 // pred_fallthru
          _
      $region64: #{tpu_custom_call.1} parent=5 // pred_fallthru
        _
    $region6: #{tpu_custom_call.1} parent=1 // loop_footer
      %s22 = sadd.s32 1, %s18
    $region7: #{tpu_custom_call.1} parent=1 // loop_footer_branch
      %17 = sbr.rel target = $region3
    $region8: #{tpu_custom_call.1} parent=1 // loop_exit
      _
    %2902 = vsyncpa [#allocation3], 1
    %s2903 = scalar_lea.sflag [#allocation3], 1
    %2904 = vsyncpa %s2903, 1

// kernel: tpu_custom_call.1
$region0: #{tpu_custom_call.1}
  #allocation0 [shape = 'u32[]', space=smem, size = 0x4, offset = 0x4, fixed_abs, tag = 'smem constant byte address 0x4 - core index']
  #allocation1 [shape = 'u32[72,128]{1,0:T(1,128)}', space=vmem, size = 0x9000, scoped, tag = 'internal scratch']
  %s0 = inlined_call_operand.vmem [shape: bf16[2,64,128], index: 0, kind: input, shape index: {}]
  %s1 = inlined_call_operand.vmem [shape: f32[64,128], index: 1, kind: input, shape index: {}]
  %s2 = inlined_call_operand.vmem [shape: bf16[192,64], index: 2, kind: input, shape index: {}]
  %s3 = inlined_call_operand.vmem [shape: f32[192,1], index: 3, kind: input, shape index: {}]
  %s4 = inlined_call_operand.vmem [shape: bf16[64,64], index: 4, kind: input, shape index: {}]
  %s5 = inlined_call_operand.vmem [shape: f32[64,6], index: 5, kind: input, shape index: {}]
  %s6 = inlined_call_operand.vmem [shape: bf16[128,64], index: 6, kind: input, shape index: {}]
  %s7 = inlined_call_operand.vmem [shape: f32[128,1], index: 7, kind: input, shape index: {}]
  %s8 = inlined_call_operand.vmem [shape: bf16[64,128], index: 8, kind: input, shape index: {}]
  %s9 = inlined_call_operand.hbm [shape: bf16[2,64,128], index: 9, kind: output, shape index: {}]
  %s10 = sld [smem:[#allocation0]]
  $region69: #{tpu_custom_call.1} parent=0
    _
  %s12 = ssub.s32 1, %s10
  %s13 = scalar_select 0, %s12, %s10
  $region1: #{tpu_custom_call.1} parent=0
    #allocation2 [shape = 'u8[32768]{0}', space=vmem, size = 0x8000, scoped, tag = 'output window, operand 0']
    #allocation3 [shape = 's32[2]{0}', space=sflag, size = 0x8, scoped, tag = 'scoped memory for tpu_custom_call.1']
    %14 = vsyncpa [#allocation3], 0
    %s15 = scalar_lea.sflag [#allocation3], 1
    %16 = vsyncpa %s15, 0
    loop: start=0, step=1, limit=4
    $region2: #{tpu_custom_call.1} parent=1 // loop_pre_header
      _
    $region3: #{tpu_custom_call.1} parent=1 // loop_header
      %s18 = sphi 0, %s22
      %p19 = scmp.ge.s32.totalorder %s18, 4
      %s28 = sphi 0, %s30
      %s31 = sphi 0, %s28
      %s32 = sphi 0, %s31
      %s48 = sphi 0, %s32
      %s52 = sphi 0, %s52
      %s54 = sphi 0, %s52
      %s55 = sphi 0, %s54
      %s69 = sphi 0, %s55
      %s73 = sphi 0, %s73
      %s75 = sphi 0, %s73
      %s76 = sphi 0, %s75
      %s90 = sphi 0, %s76
      %s94 = sphi 0, %s94
      %s96 = sphi 0, %s94
      %s97 = sphi 0, %s96
      %s111 = sphi 0, %s97
      %s115 = sphi 0, %s115
      %s117 = sphi 0, %s115
      %s118 = sphi 0, %s117
      %s132 = sphi 0, %s118
      %s136 = sphi 0, %s136
      %s138 = sphi 0, %s136
      %s139 = sphi 0, %s138
      %s153 = sphi 0, %s139
      %s157 = sphi 0, %s157
      %s159 = sphi 0, %s157
      %s160 = sphi 0, %s159
      %s174 = sphi 0, %s160
      %s178 = sphi 0, %s178
      %s180 = sphi 0, %s178
      %s181 = sphi 0, %s180
      %s195 = sphi 0, %s181
      %s199 = sphi 0, %s199
      %s201 = sphi 0, %s199
      %s202 = sphi 0, %s201
      %s216 = sphi 0, %s202
      %s222 = sphi 0, %s224
      %s225 = sphi 0, %s222
      %s226 = sphi 0, %s225
      %s242 = sphi 0, %s226
    $region4: #{tpu_custom_call.1} parent=1 // loop_header_branch
      %21 = sbr.rel (%p19) target = $region8
    $region5: #{tpu_custom_call.1} parent=1 // loop_body
      %s23 = ssub.s32 %s18, 1
      %s24 = ssub.s32 %s18, 2
      %s25 = sadd.s32 %s18, 1
      %s26 = ssub.s32 %s18, %s25
      %p27 = scmp.eq.s32.totalorder %s26, 0
      %s29 = sadd.s32 %s28, 1
      %s30 = scalar_select %p27, %s28, %s29
      %p33 = pneg %p27
      %p34 = scmp.eq.s32.totalorder %s18, 1
      %p35 = por %p33, %p34
      %p36 = scmp.ne.s32.totalorder %s28, %s31
      %p37 = scmp.eq.s32.totalorder %s18, 0
      %p38 = por %p36, %p37
      %p39 = scmp.ne.s32.totalorder %s28, %s31
      %p40 = scmp.eq.s32.totalorder %s23, 1
      %p41 = por %p39, %p40
      %p42 = scmp.ne.s32.totalorder %s31, %s32
      %p43 = scmp.eq.s32.totalorder %s23, 0
      %p44 = por %p42, %p43
      %p45 = scmp.ne.s32.totalorder %s31, %s32
      %p46 = scmp.eq.s32.totalorder %s24, 1
      %p47 = por %p45, %p46
      %p49 = scmp.ne.s32.totalorder %s32, %s48
      %p50 = scmp.eq.s32.totalorder %s24, 0
      %p51 = por %p49, %p50
      %s53 = sadd.s32 %s52, 1
      %p56 = scmp.eq.s32.totalorder %s18, 1
      %p57 = scmp.ne.s32.totalorder %s52, %s54
      %p58 = scmp.eq.s32.totalorder %s18, 0
      %p59 = por %p57, %p58
      %p60 = scmp.ne.s32.totalorder %s52, %s54
      %p61 = scmp.eq.s32.totalorder %s23, 1
      %p62 = por %p60, %p61
      %p63 = scmp.ne.s32.totalorder %s54, %s55
      %p64 = scmp.eq.s32.totalorder %s23, 0
      %p65 = por %p63, %p64
      %p66 = scmp.ne.s32.totalorder %s54, %s55
      %p67 = scmp.eq.s32.totalorder %s24, 1
      %p68 = por %p66, %p67
      %p70 = scmp.ne.s32.totalorder %s55, %s69
      %p71 = scmp.eq.s32.totalorder %s24, 0
      %p72 = por %p70, %p71
      %s74 = sadd.s32 %s73, 1
      %p77 = scmp.eq.s32.totalorder %s18, 1
      %p78 = scmp.ne.s32.totalorder %s73, %s75
      %p79 = scmp.eq.s32.totalorder %s18, 0
      %p80 = por %p78, %p79
      %p81 = scmp.ne.s32.totalorder %s73, %s75
      %p82 = scmp.eq.s32.totalorder %s23, 1
      %p83 = por %p81, %p82
      %p84 = scmp.ne.s32.totalorder %s75, %s76
      %p85 = scmp.eq.s32.totalorder %s23, 0
      %p86 = por %p84, %p85
      %p87 = scmp.ne.s32.totalorder %s75, %s76
      %p88 = scmp.eq.s32.totalorder %s24, 1
      %p89 = por %p87, %p88
      %p91 = scmp.ne.s32.totalorder %s76, %s90
      %p92 = scmp.eq.s32.totalorder %s24, 0
      %p93 = por %p91, %p92
      %s95 = sadd.s32 %s94, 1
      %p98 = scmp.eq.s32.totalorder %s18, 1
      %p99 = scmp.ne.s32.totalorder %s94, %s96
      %p100 = scmp.eq.s32.totalorder %s18, 0
      %p101 = por %p99, %p100
      %p102 = scmp.ne.s32.totalorder %s94, %s96
      %p103 = scmp.eq.s32.totalorder %s23, 1
      %p104 = por %p102, %p103
      %p105 = scmp.ne.s32.totalorder %s96, %s97
      %p106 = scmp.eq.s32.totalorder %s23, 0
      %p107 = por %p105, %p106
      %p108 = scmp.ne.s32.totalorder %s96, %s97
      %p109 = scmp.eq.s32.totalorder %s24, 1
      %p110 = por %p108, %p109
      %p112 = scmp.ne.s32.totalorder %s97, %s111
      %p113 = scmp.eq.s32.totalorder %s24, 0
      %p114 = por %p112, %p113
      %s116 = sadd.s32 %s115, 1
      %p119 = scmp.eq.s32.totalorder %s18, 1
      %p120 = scmp.ne.s32.totalorder %s115, %s117
      %p121 = scmp.eq.s32.totalorder %s18, 0
      %p122 = por %p120, %p121
      %p123 = scmp.ne.s32.totalorder %s115, %s117
      %p124 = scmp.eq.s32.totalorder %s23, 1
      %p125 = por %p123, %p124
      %p126 = scmp.ne.s32.totalorder %s117, %s118
      %p127 = scmp.eq.s32.totalorder %s23, 0
      %p128 = por %p126, %p127
      %p129 = scmp.ne.s32.totalorder %s117, %s118
      %p130 = scmp.eq.s32.totalorder %s24, 1
      %p131 = por %p129, %p130
      %p133 = scmp.ne.s32.totalorder %s118, %s132
      %p134 = scmp.eq.s32.totalorder %s24, 0
      %p135 = por %p133, %p134
      %s137 = sadd.s32 %s136, 1
      %p140 = scmp.eq.s32.totalorder %s18, 1
      %p141 = scmp.ne.s32.totalorder %s136, %s138
      %p142 = scmp.eq.s32.totalorder %s18, 0
      %p143 = por %p141, %p142
      %p144 = scmp.ne.s32.totalorder %s136, %s138
      %p145 = scmp.eq.s32.totalorder %s23, 1
      %p146 = por %p144, %p145
      %p147 = scmp.ne.s32.totalorder %s138, %s139
      %p148 = scmp.eq.s32.totalorder %s23, 0
      %p149 = por %p147, %p148
      %p150 = scmp.ne.s32.totalorder %s138, %s139
      %p151 = scmp.eq.s32.totalorder %s24, 1
      %p152 = por %p150, %p151
      %p154 = scmp.ne.s32.totalorder %s139, %s153
      %p155 = scmp.eq.s32.totalorder %s24, 0
      %p156 = por %p154, %p155
      %s158 = sadd.s32 %s157, 1
      %p161 = scmp.eq.s32.totalorder %s18, 1
      %p162 = scmp.ne.s32.totalorder %s157, %s159
      %p163 = scmp.eq.s32.totalorder %s18, 0
      %p164 = por %p162, %p163
      %p165 = scmp.ne.s32.totalorder %s157, %s159
      %p166 = scmp.eq.s32.totalorder %s23, 1
      %p167 = por %p165, %p166
      %p168 = scmp.ne.s32.totalorder %s159, %s160
      %p169 = scmp.eq.s32.totalorder %s23, 0
      %p170 = por %p168, %p169
      %p171 = scmp.ne.s32.totalorder %s159, %s160
      %p172 = scmp.eq.s32.totalorder %s24, 1
      %p173 = por %p171, %p172
      %p175 = scmp.ne.s32.totalorder %s160, %s174
      %p176 = scmp.eq.s32.totalorder %s24, 0
      %p177 = por %p175, %p176
      %s179 = sadd.s32 %s178, 1
      %p182 = scmp.eq.s32.totalorder %s18, 1
      %p183 = scmp.ne.s32.totalorder %s178, %s180
      %p184 = scmp.eq.s32.totalorder %s18, 0
      %p185 = por %p183, %p184
      %p186 = scmp.ne.s32.totalorder %s178, %s180
      %p187 = scmp.eq.s32.totalorder %s23, 1
      %p188 = por %p186, %p187
      %p189 = scmp.ne.s32.totalorder %s180, %s181
      %p190 = scmp.eq.s32.totalorder %s23, 0
      %p191 = por %p189, %p190
      %p192 = scmp.ne.s32.totalorder %s180, %s181
      %p193 = scmp.eq.s32.totalorder %s24, 1
      %p194 = por %p192, %p193
      %p196 = scmp.ne.s32.totalorder %s181, %s195
      %p197 = scmp.eq.s32.totalorder %s24, 0
      %p198 = por %p196, %p197
      %s200 = sadd.s32 %s199, 1
      %p203 = scmp.eq.s32.totalorder %s18, 1
      %p204 = scmp.ne.s32.totalorder %s199, %s201
      %p205 = scmp.eq.s32.totalorder %s18, 0
      %p206 = por %p204, %p205
      %p207 = scmp.ne.s32.totalorder %s199, %s201
      %p208 = scmp.eq.s32.totalorder %s23, 1
      %p209 = por %p207, %p208
      %p210 = scmp.ne.s32.totalorder %s201, %s202
      %p211 = scmp.eq.s32.totalorder %s23, 0
      %p212 = por %p210, %p211
      %p213 = scmp.ne.s32.totalorder %s201, %s202
      %p214 = scmp.eq.s32.totalorder %s24, 1
      %p215 = por %p213, %p214
      %p217 = scmp.ne.s32.totalorder %s202, %s216
      %p218 = scmp.eq.s32.totalorder %s24, 0
      %p219 = por %p217, %p218
      %s220 = ssub.s32 %s18, %s25
      %p221 = scmp.eq.s32.totalorder %s220, 0
      %s223 = sadd.s32 %s222, 1
      %s224 = scalar_select %p221, %s222, %s223
      %p227 = pneg %p221
      %p228 = scmp.eq.s32.totalorder %s18, 1
      %p229 = por %p227, %p228
      %p230 = scmp.ne.s32.totalorder %s222, %s225
      %p231 = scmp.eq.s32.totalorder %s18, 0
      %p232 = por %p230, %p231
      %p233 = scmp.ne.s32.totalorder %s222, %s225
      %p234 = scmp.eq.s32.totalorder %s23, 1
      %p235 = por %p233, %p234
      %p236 = scmp.ne.s32.totalorder %s225, %s226
      %p237 = scmp.eq.s32.totalorder %s23, 0
      %p238 = por %p236, %p237
      %p239 = scmp.ne.s32.totalorder %s225, %s226
      %p240 = scmp.eq.s32.totalorder %s24, 1
      %p241 = por %p239, %p240
      %p243 = scmp.ne.s32.totalorder %s226, %s242
      %p244 = scmp.eq.s32.totalorder %s24, 0
      %p245 = por %p243, %p244
      %p246 = scmp.le.s32.totalorder 1, %s18
      %p247 = scmp.lt.s32.totalorder %s18, 3
      %p248 = pnand %p246, %p247
      %p249 = pneg %p248
      // Predicated region
      $region9: #{tpu_custom_call.1} parent=5 // pred_check
        _
      $region10: #{tpu_custom_call.1} parent=5 // pred_check_branch
        %251 = sbr.rel (%p248) target = $region12
      $region11: #{tpu_custom_call.1} parent=5 // pred_region
        %s252 = ssub.s32 %s18, 1
        // Predicated region
        $region13: #{tpu_custom_call.1} parent=11 // pred_check
          %p253 = pneg %p65
        $region14: #{tpu_custom_call.1} parent=11 // pred_check_branch
          %255 = sbr.rel (%p253) target = $region16
        $region15: #{tpu_custom_call.1} parent=11 // pred_region
          _
        $region16: #{tpu_custom_call.1} parent=11 // pred_fallthru
          _
        // Predicated region
        $region17: #{tpu_custom_call.1} parent=11 // pred_check
          %p256 = pneg %p86
        $region18: #{tpu_custom_call.1} parent=11 // pred_check_branch
          %258 = sbr.rel (%p256) target = $region20
        $region19: #{tpu_custom_call.1} parent=11 // pred_region
          _
        $region20: #{tpu_custom_call.1} parent=11 // pred_fallthru
          _
        // Predicated region
        $region21: #{tpu_custom_call.1} parent=11 // pred_check
          %p259 = pneg %p107
        $region22: #{tpu_custom_call.1} parent=11 // pred_check_branch
          %261 = sbr.rel (%p259) target = $region24
        $region23: #{tpu_custom_call.1} parent=11 // pred_region
          _
        $region24: #{tpu_custom_call.1} parent=11 // pred_fallthru
          _
        // Predicated region
        $region25: #{tpu_custom_call.1} parent=11 // pred_check
          %p262 = pneg %p128
        $region26: #{tpu_custom_call.1} parent=11 // pred_check_branch
          %264 = sbr.rel (%p262) target = $region28
        $region27: #{tpu_custom_call.1} parent=11 // pred_region
          _
        $region28: #{tpu_custom_call.1} parent=11 // pred_fallthru
          _
        // Predicated region
        $region29: #{tpu_custom_call.1} parent=11 // pred_check
          %p265 = pneg %p149
        $region30: #{tpu_custom_call.1} parent=11 // pred_check_branch
          %267 = sbr.rel (%p265) target = $region32
        $region31: #{tpu_custom_call.1} parent=11 // pred_region
          _
        $region32: #{tpu_custom_call.1} parent=11 // pred_fallthru
          _
        // Predicated region
        $region33: #{tpu_custom_call.1} parent=11 // pred_check
          %p268 = pneg %p170
        $region34: #{tpu_custom_call.1} parent=11 // pred_check_branch
          %270 = sbr.rel (%p268) target = $region36
        $region35: #{tpu_custom_call.1} parent=11 // pred_region
          _
        $region36: #{tpu_custom_call.1} parent=11 // pred_fallthru
          _
        // Predicated region
        $region37: #{tpu_custom_call.1} parent=11 // pred_check
          %p271 = pneg %p191
        $region38: #{tpu_custom_call.1} parent=11 // pred_check_branch
          %273 = sbr.rel (%p271) target = $region40
        $region39: #{tpu_custom_call.1} parent=11 // pred_region
          _
        $region40: #{tpu_custom_call.1} parent=11 // pred_fallthru
          _
        // Predicated region
        $region41: #{tpu_custom_call.1} parent=11 // pred_check
          %p274 = pneg %p212
        $region42: #{tpu_custom_call.1} parent=11 // pred_check_branch
          %276 = sbr.rel (%p274) target = $region44
        $region43: #{tpu_custom_call.1} parent=11 // pred_region
          _
        $region44: #{tpu_custom_call.1} parent=11 // pred_fallthru
          _
      $region12: #{tpu_custom_call.1} parent=5 // pred_fallthru
        _
      %p277 = scmp.lt.s32.totalorder %s18, 2
      // Predicated region
      $region45: #{tpu_custom_call.1} parent=5 // pred_check
        %p278 = pneg %p277
      $region46: #{tpu_custom_call.1} parent=5 // pred_check_branch
        %280 = sbr.rel (%p278) target = $region48
      $region47: #{tpu_custom_call.1} parent=5 // pred_region
        // Predicated region
        $region49: #{tpu_custom_call.1} parent=47 // pred_check
          %p281 = pneg %p38
        $region50: #{tpu_custom_call.1} parent=47 // pred_check_branch
          %283 = sbr.rel (%p281) target = $region52
        $region51: #{tpu_custom_call.1} parent=47 // pred_region
          %p284 = scmp.lt.s32.totalorder %s18, 1
          %s285 = scalar_select %p284, %s18, 1
          %s286 = smul.addr %s285, 8
          %s287 = smul.addr %s286, 4
          %s288 = scalar_lea.vmem %s0, %s287
        $region52: #{tpu_custom_call.1} parent=47 // pred_fallthru
          _
      $region48: #{tpu_custom_call.1} parent=5 // pred_fallthru
        _
      %p289 = scmp.le.s32.totalorder 1, %s18
      %p290 = scmp.lt.s32.totalorder %s18, 3
      %p291 = pnand %p289, %p290
      %p292 = pneg %p291
      // Predicated region
      $region53: #{tpu_custom_call.1} parent=5 // pred_check
        _
      $region54: #{tpu_custom_call.1} parent=5 // pred_check_branch
        %294 = sbr.rel (%p291) target = $region56
      $region55: #{tpu_custom_call.1} parent=5 // pred_region
        %s295 = ssub.s32 %s18, 1
        %p296 = scmp.lt.s32.totalorder %s23, 1
        %s297 = scalar_select %p296, %s23, 1
        %s298 = smul.addr %s297, 8
        %s299 = smul.addr %s298, 4
        %s300 = scalar_lea.vmem %s0, %s299
        %p301 = pneg %p44
        %p302 = pneg %p41
        %p303 = pneg %p65
        %p304 = pneg %p62
        %p305 = pneg %p86
        %p306 = pneg %p83
        %p307 = pneg %p107
        %p308 = pneg %p104
        %p309 = pneg %p128
        %p310 = pneg %p125
        %p311 = pneg %p149
        %p312 = pneg %p146
        %p313 = pneg %p170
        %p314 = pneg %p167
        %p315 = pneg %p191
        %p316 = pneg %p188
        %p317 = pneg %p212
        %p318 = pneg %p209
        %p319 = pneg %p238
        %p320 = pneg %p235
        %s321 = sand.u32 %s225, 1
        %s322 = scalar_lea.sflag [#allocation3], %s321
        %s323 = sand.u32 %s225, 1
        %s324 = smul.addr %s323, 32
        %s325 = scalar_lea.vmem [#allocation2], %s324
        %p326 = scmp.lt.s32.totalorder %s23, 1
        %s327 = scalar_select %p326, %s23, 1
        %s328 = smul.addr %s327, 8
        %s329 = smul.addr %s328, 4
        %s330 = scalar_lea.vmem %s0, %s329
        %v332 = vld [vmem:[%s330] sm:$0xf]
        %v333 = vld [vmem:[%s330 + $0x4] sm:$0xf]
        %v334 = vld [vmem:[%s330 + $0x8] sm:$0xf]
        %v335 = vld [vmem:[%s330 + $0xc] sm:$0xf]
        %v336 = vld [vmem:[%s330 + $0x10] sm:$0xf]
        %v337 = vld [vmem:[%s330 + $0x14] sm:$0xf]
        %v338 = vld [vmem:[%s330 + $0x18] sm:$0xf]
        %v339 = vld [vmem:[%s330 + $0x1c] sm:$0xf]
        %v340 = vunpack.c.l.bf16 %v332
        %v341 = vunpack.c.l.bf16 %v333
        %v342 = vunpack.c.l.bf16 %v334
        %v343 = vunpack.c.l.bf16 %v335
        %v344 = vunpack.c.l.bf16 %v336
        %v345 = vunpack.c.l.bf16 %v337
        %v346 = vunpack.c.l.bf16 %v338
        %v347 = vunpack.c.l.bf16 %v339
        %v348 = vld [vmem:[%s1] sm:$0xff]
        %v349 = vld [vmem:[%s1 + $0x8] sm:$0xff]
        %v350 = vld [vmem:[%s1 + $0x10] sm:$0xff]
        %v351 = vld [vmem:[%s1 + $0x18] sm:$0xff]
        %v352 = vld [vmem:[%s1 + $0x20] sm:$0xff]
        %v353 = vld [vmem:[%s1 + $0x28] sm:$0xff]
        %v354 = vld [vmem:[%s1 + $0x30] sm:$0xff]
        %v355 = vld [vmem:[%s1 + $0x38] sm:$0xff]
        %v356 = vadd.f32 %v340, %v348
        %v357 = vadd.f32 %v341, %v349
        %v358 = vadd.f32 %v342, %v350
        %v359 = vadd.f32 %v343, %v351
        %v360 = vadd.f32 %v344, %v352
        %v361 = vadd.f32 %v345, %v353
        %v362 = vadd.f32 %v346, %v354
        %v363 = vadd.f32 %v347, %v355
        %v364 = vld [vmem:[%s5] sm:$0xff]
        %v365 = vld [vmem:[%s5 + $0x8] sm:$0xff]
        %v366 = vld [vmem:[%s5 + $0x10] sm:$0xff]
        %v367 = vld [vmem:[%s5 + $0x18] sm:$0xff]
        %v368 = vld [vmem:[%s5 + $0x20] sm:$0xff]
        %v369 = vld [vmem:[%s5 + $0x28] sm:$0xff]
        %v370 = vld [vmem:[%s5 + $0x30] sm:$0xff]
        %v371 = vld [vmem:[%s5 + $0x38] sm:$0xff]
        %v372 = vadd.f32 %v356, %v357
        %v373 = vadd.f32 %v372, %v358
        %v374 = vadd.f32 %v373, %v359
        %v375 = vadd.f32 %v374, %v360
        %v376 = vadd.f32 %v375, %v361
        %v377 = vadd.f32 %v376, %v362
        %v378 = vadd.f32 %v377, %v363
        %379 = vadd.xlane.f32.xlu0 %v378
        %v380 = vpop.xlane.xlu0 %379
        %v381 = vrot.slane %v380, 4
        %v382 = vadd.f32 %v380, %v381
        %v383 = vrot.slane %v382, 2
        %v384 = vadd.f32 %v382, %v383
        %v385 = vrot.slane %v384, 1
        %v386 = vadd.f32 %v384, %v385
        %s387 = vtos %v386
        %v388 = vstv %s387
        %v389 = vrcp.pop 8192.0
        %v390 = vmul.f32 8192.0, %v389
        %v391 = vsub.f32 1.0, %v390
        %v392 = vmul.f32 %v389, %v391
        %v393 = vadd.f32 %v389, %v392
        %vm394 = vweird.f32 %v389
        %v395 = vsel %vm394, %v389, %v393
        %v396 = vmul.f32 %v388, %v395
        %v397 = vmul.f32 %v356, %v356
        %v398 = vmul.f32 %v357, %v357
        %v399 = vmul.f32 %v358, %v358
        %v400 = vmul.f32 %v359, %v359
        %v401 = vmul.f32 %v360, %v360
        %v402 = vmul.f32 %v361, %v361
        %v403 = vmul.f32 %v362, %v362
        %v404 = vmul.f32 %v363, %v363
        %v405 = vadd.f32 %v397, %v398
        %v406 = vadd.f32 %v405, %v399
        %v407 = vadd.f32 %v406, %v400
        %v408 = vadd.f32 %v407, %v401
        %v409 = vadd.f32 %v408, %v402
        %v410 = vadd.f32 %v409, %v403
        %v411 = vadd.f32 %v410, %v404
        %412 = vadd.xlane.f32.xlu0 %v411
        %v413 = vpop.xlane.xlu0 %412
        %v414 = vrot.slane %v413, 4
        %v415 = vadd.f32 %v413, %v414
        %v416 = vrot.slane %v415, 2
        %v417 = vadd.f32 %v415, %v416
        %v418 = vrot.slane %v417, 1
        %v419 = vadd.f32 %v417, %v418
        %s420 = vtos %v419
        %v421 = vstv %s420
        %v422 = vmul.f32 %v421, %v395
        %v423 = vmul.f32 %v396, %v396
        %v424 = vsub.f32 %v422, %v423
        %v425 = vmax.f32 %v424, 0.0
        %v426 = vsub.f32 %v356, %v396
        %v427 = vsub.f32 %v357, %v396
        %v428 = vsub.f32 %v358, %v396
        %v429 = vsub.f32 %v359, %v396
        %v430 = vsub.f32 %v360, %v396
        %v431 = vsub.f32 %v361, %v396
        %v432 = vsub.f32 %v362, %v396
        %v433 = vsub.f32 %v363, %v396
        %v434 = vadd.f32 %v425, 1e-08
        %v435 = vrsqrt.pop %v434
        %v436 = vmul.f32 %v435, %v434
        %v437 = vmul.f32 %v436, %v435
        %v438 = vmul.f32 0.5, %v437
        %v439 = vsub.f32 1.5, %v438
        %v440 = vmul.f32 %v435, %v439
        %vm441 = vweird.f32 %v434
        %vm442 = vweird.f32 %v435
        %vm443 = vmor %vm441, %vm442
        %v444 = vsel %vm443, %v435, %v440
        %v445 = vmul.f32 %v426, %v444
        %v446 = vmul.f32 %v427, %v444
        %v447 = vmul.f32 %v428, %v444
        %v448 = vmul.f32 %v429, %v444
        %v449 = vmul.f32 %v430, %v444
        %v450 = vmul.f32 %v431, %v444
        %v451 = vmul.f32 %v432, %v444
        %v452 = vmul.f32 %v433, %v444
        %454 = vset.pattern.permute.xlu0 0
        %455 = vperm.xlu0 %454, %v364
        %v456 = vpop.permute.xlu0 %455
        %459 = vset.pattern.permute.xlu0 0
        %460 = vperm.xlu0 %459, %v365
        %v461 = vpop.permute.xlu0 %460
        %464 = vset.pattern.permute.xlu0 0
        %465 = vperm.xlu0 %464, %v366
        %v466 = vpop.permute.xlu0 %465
        %469 = vset.pattern.permute.xlu0 0
        %470 = vperm.xlu0 %469, %v367
        %v471 = vpop.permute.xlu0 %470
        %474 = vset.pattern.permute.xlu0 0
        %475 = vperm.xlu0 %474, %v368
        %v476 = vpop.permute.xlu0 %475
        %479 = vset.pattern.permute.xlu0 0
        %480 = vperm.xlu0 %479, %v369
        %v481 = vpop.permute.xlu0 %480
        %484 = vset.pattern.permute.xlu0 0
        %485 = vperm.xlu0 %484, %v370
        %v486 = vpop.permute.xlu0 %485
        %489 = vset.pattern.permute.xlu0 0
        %490 = vperm.xlu0 %489, %v371
        %v491 = vpop.permute.xlu0 %490
        %v493 = vmul.f32 %v445, %v456
        %v494 = vmul.f32 %v446, %v461
        %v495 = vmul.f32 %v447, %v466
        %v496 = vmul.f32 %v448, %v471
        %v497 = vmul.f32 %v449, %v476
        %v498 = vmul.f32 %v450, %v481
        %v499 = vmul.f32 %v451, %v486
        %v500 = vmul.f32 %v452, %v491
        %501 = vset.pattern.permute.xlu0 1
        %502 = vperm.xlu0 %501, %v364
        %v503 = vpop.permute.xlu0 %502
        %505 = vset.pattern.permute.xlu0 1
        %506 = vperm.xlu0 %505, %v365
        %v507 = vpop.permute.xlu0 %506
        %509 = vset.pattern.permute.xlu0 1
        %510 = vperm.xlu0 %509, %v366
        %v511 = vpop.permute.xlu0 %510
        %513 = vset.pattern.permute.xlu0 1
        %514 = vperm.xlu0 %513, %v367
        %v515 = vpop.permute.xlu0 %514
        %517 = vset.pattern.permute.xlu0 1
        %518 = vperm.xlu0 %517, %v368
        %v519 = vpop.permute.xlu0 %518
        %521 = vset.pattern.permute.xlu0 1
        %522 = vperm.xlu0 %521, %v369
        %v523 = vpop.permute.xlu0 %522
        %525 = vset.pattern.permute.xlu0 1
        %526 = vperm.xlu0 %525, %v370
        %v527 = vpop.permute.xlu0 %526
        %529 = vset.pattern.permute.xlu0 1
        %530 = vperm.xlu0 %529, %v371
        %v531 = vpop.permute.xlu0 %530
        %v533 = vadd.f32 %v493, %v503
        %v534 = vadd.f32 %v494, %v507
        %v535 = vadd.f32 %v495, %v511
        %v536 = vadd.f32 %v496, %v515
        %v537 = vadd.f32 %v497, %v519
        %v538 = vadd.f32 %v498, %v523
        %v539 = vadd.f32 %v499, %v527
        %v540 = vadd.f32 %v500, %v531
        %v541 = vpack.c.bf16 %v534, %v533
        %v542 = vpack.c.bf16 %v536, %v535
        %v543 = vpack.c.bf16 %v538, %v537
        %v544 = vpack.c.bf16 %v540, %v539
        %v545 = vld [vmem:[%s2] sm:$0xf]
        %v546 = vld [vmem:[%s2 + $0x4] sm:$0xf]
        %v547 = vld [vmem:[%s2 + $0x8] sm:$0xf]
        %v548 = vld [vmem:[%s2 + $0xc] sm:$0xf]
        %v549 = vld [vmem:[%s2 + $0x10] sm:$0xf]
        %v550 = vld [vmem:[%s2 + $0x14] sm:$0xf]
        %v551 = vld [vmem:[%s2 + $0x18] sm:$0xf]
        %v552 = vld [vmem:[%s2 + $0x1c] sm:$0xf]
        %v553 = vld [vmem:[%s2 + $0x20] sm:$0xf]
        %v554 = vld [vmem:[%s2 + $0x24] sm:$0xf]
        %v555 = vld [vmem:[%s2 + $0x28] sm:$0xf]
        %v556 = vld [vmem:[%s2 + $0x2c] sm:$0xf]
        %v557 = vld [vmem:[%s2 + $0x30] sm:$0xf]
        %v558 = vld [vmem:[%s2 + $0x34] sm:$0xf]
        %v559 = vld [vmem:[%s2 + $0x38] sm:$0xf]
        %v560 = vld [vmem:[%s2 + $0x3c] sm:$0xf]
        %v561 = vld [vmem:[%s2 + $0x40] sm:$0xf]
        %v562 = vld [vmem:[%s2 + $0x44] sm:$0xf]
        %v563 = vld [vmem:[%s2 + $0x48] sm:$0xf]
        %v564 = vld [vmem:[%s2 + $0x4c] sm:$0xf]
        %v565 = vld [vmem:[%s2 + $0x50] sm:$0xf]
        %v566 = vld [vmem:[%s2 + $0x54] sm:$0xf]
        %v567 = vld [vmem:[%s2 + $0x58] sm:$0xf]
        %v568 = vld [vmem:[%s2 + $0x5c] sm:$0xf]
        %v569 = vld [vmem:[%s3] sm:$0xff]
        %v570 = vld [vmem:[%s3 + $0x8] sm:$0xff]
        %v571 = vld [vmem:[%s3 + $0x10] sm:$0xff]
        %v572 = vld [vmem:[%s3 + $0x18] sm:$0xff]
        %v573 = vld [vmem:[%s3 + $0x20] sm:$0xff]
        %v574 = vld [vmem:[%s3 + $0x28] sm:$0xff]
        %v575 = vld [vmem:[%s3 + $0x30] sm:$0xff]
        %v576 = vld [vmem:[%s3 + $0x38] sm:$0xff]
        %v577 = vld [vmem:[%s3 + $0x40] sm:$0xff]
        %v578 = vld [vmem:[%s3 + $0x48] sm:$0xff]
        %v579 = vld [vmem:[%s3 + $0x50] sm:$0xff]
        %v580 = vld [vmem:[%s3 + $0x58] sm:$0xff]
        %v581 = vld [vmem:[%s3 + $0x60] sm:$0xff]
        %v582 = vld [vmem:[%s3 + $0x68] sm:$0xff]
        %v583 = vld [vmem:[%s3 + $0x70] sm:$0xff]
        %v584 = vld [vmem:[%s3 + $0x78] sm:$0xff]
        %v585 = vld [vmem:[%s3 + $0x80] sm:$0xff]
        %v586 = vld [vmem:[%s3 + $0x88] sm:$0xff]
        %v587 = vld [vmem:[%s3 + $0x90] sm:$0xff]
        %v588 = vld [vmem:[%s3 + $0x98] sm:$0xff]
        %v589 = vld [vmem:[%s3 + $0xa0] sm:$0xff]
        %v590 = vld [vmem:[%s3 + $0xa8] sm:$0xff]
        %v591 = vld [vmem:[%s3 + $0xb0] sm:$0xff]
        %v592 = vld [vmem:[%s3 + $0xb8] sm:$0xff]
        %594 = vset.pattern.permute.xlu0 0
        %595 = vperm.xlu0 %594, %v569
        %v596 = vpop.permute.xlu0 %595
        %599 = vset.pattern.permute.xlu0 0
        %600 = vperm.xlu0 %599, %v570
        %v601 = vpop.permute.xlu0 %600
        %604 = vset.pattern.permute.xlu0 0
        %605 = vperm.xlu0 %604, %v571
        %v606 = vpop.permute.xlu0 %605
        %609 = vset.pattern.permute.xlu0 0
        %610 = vperm.xlu0 %609, %v572
        %v611 = vpop.permute.xlu0 %610
        %614 = vset.pattern.permute.xlu0 0
        %615 = vperm.xlu0 %614, %v573
        %v616 = vpop.permute.xlu0 %615
        %619 = vset.pattern.permute.xlu0 0
        %620 = vperm.xlu0 %619, %v574
        %v621 = vpop.permute.xlu0 %620
        %624 = vset.pattern.permute.xlu0 0
        %625 = vperm.xlu0 %624, %v575
        %v626 = vpop.permute.xlu0 %625
        %629 = vset.pattern.permute.xlu0 0
        %630 = vperm.xlu0 %629, %v576
        %v631 = vpop.permute.xlu0 %630
        %634 = vset.pattern.permute.xlu0 0
        %635 = vperm.xlu0 %634, %v577
        %v636 = vpop.permute.xlu0 %635
        %639 = vset.pattern.permute.xlu0 0
        %640 = vperm.xlu0 %639, %v578
        %v641 = vpop.permute.xlu0 %640
        %644 = vset.pattern.permute.xlu0 0
        %645 = vperm.xlu0 %644, %v579
        %v646 = vpop.permute.xlu0 %645
        %649 = vset.pattern.permute.xlu0 0
        %650 = vperm.xlu0 %649, %v580
        %v651 = vpop.permute.xlu0 %650
        %654 = vset.pattern.permute.xlu0 0
        %655 = vperm.xlu0 %654, %v581
        %v656 = vpop.permute.xlu0 %655
        %659 = vset.pattern.permute.xlu0 0
        %660 = vperm.xlu0 %659, %v582
        %v661 = vpop.permute.xlu0 %660
        %664 = vset.pattern.permute.xlu0 0
        %665 = vperm.xlu0 %664, %v583
        %v666 = vpop.permute.xlu0 %665
        %669 = vset.pattern.permute.xlu0 0
        %670 = vperm.xlu0 %669, %v584
        %v671 = vpop.permute.xlu0 %670
        %674 = vset.pattern.permute.xlu0 0
        %675 = vperm.xlu0 %674, %v585
        %v676 = vpop.permute.xlu0 %675
        %679 = vset.pattern.permute.xlu0 0
        %680 = vperm.xlu0 %679, %v586
        %v681 = vpop.permute.xlu0 %680
        %684 = vset.pattern.permute.xlu0 0
        %685 = vperm.xlu0 %684, %v587
        %v686 = vpop.permute.xlu0 %685
        %689 = vset.pattern.permute.xlu0 0
        %690 = vperm.xlu0 %689, %v588
        %v691 = vpop.permute.xlu0 %690
        %694 = vset.pattern.permute.xlu0 0
        %695 = vperm.xlu0 %694, %v589
        %v696 = vpop.permute.xlu0 %695
        %699 = vset.pattern.permute.xlu0 0
        %700 = vperm.xlu0 %699, %v590
        %v701 = vpop.permute.xlu0 %700
        %704 = vset.pattern.permute.xlu0 0
        %705 = vperm.xlu0 %704, %v591
        %v706 = vpop.permute.xlu0 %705
        %709 = vset.pattern.permute.xlu0 0
        %710 = vperm.xlu0 %709, %v592
        %v711 = vpop.permute.xlu0 %710
        %v737 = vunpack.c.l.b16 %v545
        %v738 = vunpack.c.l.b16 %v546
        %v739 = vunpack.c.l.b16 %v547
        %v740 = vunpack.c.l.b16 %v548
        %v741 = vunpack.c.l.b16 %v549
        %v742 = vunpack.c.l.b16 %v550
        %v743 = vunpack.c.l.b16 %v551
        %v744 = vunpack.c.l.b16 %v552
        %v745 = vunpack.c.l.b16 %v553
        %v746 = vunpack.c.l.b16 %v554
        %v747 = vunpack.c.l.b16 %v555
        %v748 = vunpack.c.l.b16 %v556
        %v749 = vunpack.c.l.b16 %v557
        %v750 = vunpack.c.l.b16 %v558
        %v751 = vunpack.c.l.b16 %v559
        %v752 = vunpack.c.l.b16 %v560
        %v753 = vunpack.c.l.b16 %v561
        %v754 = vunpack.c.l.b16 %v562
        %v755 = vunpack.c.l.b16 %v563
        %v756 = vunpack.c.l.b16 %v564
        %v757 = vunpack.c.l.b16 %v565
        %v758 = vunpack.c.l.b16 %v566
        %v759 = vunpack.c.l.b16 %v567
        %v760 = vunpack.c.l.b16 %v568
        %v761 = vpack.c.b16 %v738, %v737
        %v762 = vpack.c.b16 %v740, %v739
        %v763 = vpack.c.b16 %v742, %v741
        %v764 = vpack.c.b16 %v744, %v743
        %v765 = vpack.c.b16 %v746, %v745
        %v766 = vpack.c.b16 %v748, %v747
        %v767 = vpack.c.b16 %v750, %v749
        %v768 = vpack.c.b16 %v752, %v751
        %v769 = vpack.c.b16 %v754, %v753
        %v770 = vpack.c.b16 %v756, %v755
        %v771 = vpack.c.b16 %v758, %v757
        %v772 = vpack.c.b16 %v760, %v759
        %vm773 = vcmask 523264
        %v775 = vsel %vm773, %v761, 0
        %v778 = vsel %vm773, %v762, 0
        %v781 = vsel %vm773, %v763, 0
        %v784 = vsel %vm773, %v764, 0
        %v787 = vsel %vm773, %v765, 0
        %v790 = vsel %vm773, %v766, 0
        %v793 = vsel %vm773, %v767, 0
        %v796 = vsel %vm773, %v768, 0
        %v799 = vsel %vm773, %v769, 0
        %v802 = vsel %vm773, %v770, 0
        %v805 = vsel %vm773, %v771, 0
        %v808 = vsel %vm773, %v772, 0
        %810 = vmatpush.bf16.msra.mxu0 0
        %811 = vmatpush.bf16.msra.mxu0 0
        %812 = vmatpush.bf16.msra.mxu0 0
        %813 = vmatpush.bf16.msra.mxu0 0
        %814 = vmatpush.bf16.msra.mxu0 %v544
        %815 = vmatpush.bf16.msra.mxu0 %v543
        %816 = vmatpush.bf16.msra.mxu0 %v542
        %817 = vmatpush.bf16.msra.mxu0 %v541
        %818 = vmatmul.bf16.gmra.mxu0 %v775
        %v819 = vpop.f32.mrf.mxu0
        %v820 = vadd.f32 %v596, %v819
        %v821 = vpop.f32.mrf.mxu0
        %v822 = vadd.f32 %v601, %v821
        %823 = vmatmul.bf16.gmra.mxu0 %v778
        %v824 = vpop.f32.mrf.mxu0
        %v825 = vadd.f32 %v606, %v824
        %v826 = vpop.f32.mrf.mxu0
        %v827 = vadd.f32 %v611, %v826
        %828 = vmatmul.bf16.gmra.mxu0 %v781
        %v829 = vpop.f32.mrf.mxu0
        %v830 = vadd.f32 %v616, %v829
        %v831 = vpop.f32.mrf.mxu0
        %v832 = vadd.f32 %v621, %v831
        %833 = vmatmul.bf16.gmra.mxu0 %v784
        %v834 = vpop.f32.mrf.mxu0
        %v835 = vadd.f32 %v626, %v834
        %v836 = vpop.f32.mrf.mxu0
        %v837 = vadd.f32 %v631, %v836
        %838 = vmatmul.bf16.gmra.mxu0 %v787
        %v839 = vpop.f32.mrf.mxu0
        %v840 = vadd.f32 %v636, %v839
        %v841 = vpop.f32.mrf.mxu0
        %v842 = vadd.f32 %v641, %v841
        %843 = vmatmul.bf16.gmra.mxu0 %v790
        %v844 = vpop.f32.mrf.mxu0
        %v845 = vadd.f32 %v646, %v844
        %v846 = vpop.f32.mrf.mxu0
        %v847 = vadd.f32 %v651, %v846
        %848 = vmatmul.bf16.gmra.mxu0 %v793
        %v849 = vpop.f32.mrf.mxu0
        %v850 = vadd.f32 %v656, %v849
        %v851 = vpop.f32.mrf.mxu0
        %v852 = vadd.f32 %v661, %v851
        %853 = vmatmul.bf16.gmra.mxu0 %v796
        %v854 = vpop.f32.mrf.mxu0
        %v855 = vadd.f32 %v666, %v854
        %v856 = vpop.f32.mrf.mxu0
        %v857 = vadd.f32 %v671, %v856
        %858 = vmatmul.bf16.gmra.mxu0 %v799
        %v859 = vpop.f32.mrf.mxu0
        %v860 = vadd.f32 %v676, %v859
        %v861 = vpop.f32.mrf.mxu0
        %v862 = vadd.f32 %v681, %v861
        %863 = vmatmul.bf16.gmra.mxu0 %v802
        %v864 = vpop.f32.mrf.mxu0
        %v865 = vadd.f32 %v686, %v864
        %v866 = vpop.f32.mrf.mxu0
        %v867 = vadd.f32 %v691, %v866
        %868 = vmatmul.bf16.gmra.mxu0 %v805
        %v869 = vpop.f32.mrf.mxu0
        %v870 = vadd.f32 %v696, %v869
        %v871 = vpop.f32.mrf.mxu0
        %v872 = vadd.f32 %v701, %v871
        %873 = vmatmul.bf16.gmra.mxu0 %v808
        %v874 = vpop.f32.mrf.mxu0
        %v875 = vadd.f32 %v706, %v874
        %v876 = vpop.f32.mrf.mxu0
        %v877 = vadd.f32 %v711, %v876
        %878 = vdwg.mxu0
        %v879 = vpack.c.bf16 %v820, %v820
        %v880 = vpack.c.bf16 %v822, %v822
        %v881 = vpack.c.bf16 %v825, %v825
        %v882 = vpack.c.bf16 %v827, %v827
        %v883 = vpack.c.bf16 %v830, %v830
        %v884 = vpack.c.bf16 %v832, %v832
        %v885 = vpack.c.bf16 %v835, %v835
        %v886 = vpack.c.bf16 %v837, %v837
        %v887 = vpack.c.bf16 %v840, %v840
        %v888 = vpack.c.bf16 %v842, %v842
        %v889 = vpack.c.bf16 %v845, %v845
        %v890 = vpack.c.bf16 %v847, %v847
        %v891 = vpack.c.bf16 %v850, %v850
        %v892 = vpack.c.bf16 %v852, %v852
        %v893 = vpack.c.bf16 %v855, %v855
        %v894 = vpack.c.bf16 %v857, %v857
        %v895 = vpack.c.bf16 %v860, %v860
        %v896 = vpack.c.bf16 %v862, %v862
        %v897 = vpack.c.bf16 %v865, %v865
        %v898 = vpack.c.bf16 %v867, %v867
        %v899 = vpack.c.bf16 %v870, %v870
        %v900 = vpack.c.bf16 %v872, %v872
        %v901 = vpack.c.bf16 %v875, %v875
        %v902 = vpack.c.bf16 %v877, %v877
        %v905 = vunpack.c.l.b16 %v879
        %v906 = vunpack.c.l.b16 %v880
        %v907 = vpack.c.b16 %v906, %v905
        %909 = vxpose.xlu0.c.b16.start [1/8] %v907, 128
        %910 = vxpose.xlu0.c.b16.cont [2/8] 0, 128
        %911 = vxpose.xlu0.c.b16.cont [3/8] 0, 128
        %912 = vxpose.xlu0.c.b16.cont [4/8] 0, 128
        %913 = vxpose.xlu0.c.b16.cont [5/8] 0, 128
        %914 = vxpose.xlu0.c.b16.cont [6/8] 0, 128
        %915 = vxpose.xlu0.c.b16.cont [7/8] 0, 128
        %916 = vxpose.xlu0.c.b16.end [8/8] 0, 128
        %v917 = vpop.trf.xlu0
        %v918 = vpop.trf.xlu0
        %v919 = vpop.trf.xlu0
        %v920 = vpop.trf.xlu0
        %v921 = vpop.trf.xlu0
        %v922 = vpop.trf.xlu0
        %v923 = vpop.trf.xlu0
        %v924 = vpop.trf.xlu0
        %v927 = vunpack.c.l.b16 %v887
        %v928 = vunpack.c.l.b16 %v888
        %v929 = vpack.c.b16 %v928, %v927
        %vm931 = vcmask 130048
        %v933 = vsel %vm931, %v917, 0
        %v936 = vsel %vm931, %v918, 0
        %v939 = vsel %vm931, %v919, 0
        %v942 = vsel %vm931, %v920, 0
        %v945 = vsel %vm931, %v921, 0
        %v948 = vsel %vm931, %v922, 0
        %v951 = vsel %vm931, %v923, 0
        %v954 = vsel %vm931, %v924, 0
        %956 = vmatpush.bf16.msra.mxu0 0
        %957 = vmatpush.bf16.msra.mxu0 0
        %958 = vmatpush.bf16.msra.mxu0 0
        %959 = vmatpush.bf16.msra.mxu0 0
        %960 = vmatpush.bf16.msra.mxu0 0
        %961 = vmatpush.bf16.msra.mxu0 0
        %962 = vmatpush.bf16.msra.mxu0 0
        %963 = vmatpush.bf16.msra.mxu0 %v929
        %964 = vmatmul.bf16.gmra.mxu0 %v933
        %v965 = vpop.f32.mrf.mxu0
        %v966 = vadd.f32 0.0, %v965
        %v967 = vpop.f32.mrf.mxu0
        %v968 = vadd.f32 0.0, %v967
        %969 = vmatmul.bf16.gmra.mxu0 %v936
        %v970 = vpop.f32.mrf.mxu0
        %v971 = vadd.f32 0.0, %v970
        %v972 = vpop.f32.mrf.mxu0
        %v973 = vadd.f32 0.0, %v972
        %974 = vmatmul.bf16.gmra.mxu0 %v939
        %v975 = vpop.f32.mrf.mxu0
        %v976 = vadd.f32 0.0, %v975
        %v977 = vpop.f32.mrf.mxu0
        %v978 = vadd.f32 0.0, %v977
        %979 = vmatmul.bf16.gmra.mxu0 %v942
        %v980 = vpop.f32.mrf.mxu0
        %v981 = vadd.f32 0.0, %v980
        %v982 = vpop.f32.mrf.mxu0
        %v983 = vadd.f32 0.0, %v982
        %984 = vmatmul.bf16.gmra.mxu0 %v945
        %v985 = vpop.f32.mrf.mxu0
        %v986 = vadd.f32 0.0, %v985
        %v987 = vpop.f32.mrf.mxu0
        %v988 = vadd.f32 0.0, %v987
        %989 = vmatmul.bf16.gmra.mxu0 %v948
        %v990 = vpop.f32.mrf.mxu0
        %v991 = vadd.f32 0.0, %v990
        %v992 = vpop.f32.mrf.mxu0
        %v993 = vadd.f32 0.0, %v992
        %994 = vmatmul.bf16.gmra.mxu0 %v951
        %v995 = vpop.f32.mrf.mxu0
        %v996 = vadd.f32 0.0, %v995
        %v997 = vpop.f32.mrf.mxu0
        %v998 = vadd.f32 0.0, %v997
        %999 = vmatmul.bf16.gmra.mxu0 %v954
        %v1000 = vpop.f32.mrf.mxu0
        %v1001 = vadd.f32 0.0, %v1000
        %v1002 = vpop.f32.mrf.mxu0
        %v1003 = vadd.f32 0.0, %v1002
        %1004 = vdwg.mxu0
        %v1007 = vunpack.c.l.b16 %v881
        %v1008 = vunpack.c.l.b16 %v882
        %v1009 = vpack.c.b16 %v1008, %v1007
        %1011 = vxpose.xlu0.c.b16.start [1/8] %v1009, 128
        %1012 = vxpose.xlu0.c.b16.cont [2/8] 0, 128
        %1013 = vxpose.xlu0.c.b16.cont [3/8] 0, 128
        %1014 = vxpose.xlu0.c.b16.cont [4/8] 0, 128
        %1015 = vxpose.xlu0.c.b16.cont [5/8] 0, 128
        %1016 = vxpose.xlu0.c.b16.cont [6/8] 0, 128
        %1017 = vxpose.xlu0.c.b16.cont [7/8] 0, 128
        %1018 = vxpose.xlu0.c.b16.end [8/8] 0, 128
        %v1019 = vpop.trf.xlu0
        %v1020 = vpop.trf.xlu0
        %v1021 = vpop.trf.xlu0
        %v1022 = vpop.trf.xlu0
        %v1023 = vpop.trf.xlu0
        %v1024 = vpop.trf.xlu0
        %v1025 = vpop.trf.xlu0
        %v1026 = vpop.trf.xlu0
        %v1029 = vunpack.c.l.b16 %v889
        %v1030 = vunpack.c.l.b16 %v890
        %v1031 = vpack.c.b16 %v1030, %v1029
        %v1034 = vsel %vm931, %v1019, 0
        %v1037 = vsel %vm931, %v1020, 0
        %v1040 = vsel %vm931, %v1021, 0
        %v1043 = vsel %vm931, %v1022, 0
        %v1046 = vsel %vm931, %v1023, 0
        %v1049 = vsel %vm931, %v1024, 0
        %v1052 = vsel %vm931, %v1025, 0
        %v1055 = vsel %vm931, %v1026, 0
        %1057 = vmatpush.bf16.msra.mxu0 0
        %1058 = vmatpush.bf16.msra.mxu0 0
        %1059 = vmatpush.bf16.msra.mxu0 0
        %1060 = vmatpush.bf16.msra.mxu0 0
        %1061 = vmatpush.bf16.msra.mxu0 0
        %1062 = vmatpush.bf16.msra.mxu0 0
        %1063 = vmatpush.bf16.msra.mxu0 0
        %1064 = vmatpush.bf16.msra.mxu0 %v1031
        %1065 = vmatmul.bf16.gmra.mxu0 %v1034
        %v1066 = vpop.f32.mrf.mxu0
        %v1067 = vadd.f32 0.0, %v1066
        %v1068 = vpop.f32.mrf.mxu0
        %v1069 = vadd.f32 0.0, %v1068
        %1070 = vmatmul.bf16.gmra.mxu0 %v1037
        %v1071 = vpop.f32.mrf.mxu0
        %v1072 = vadd.f32 0.0, %v1071
        %v1073 = vpop.f32.mrf.mxu0
        %v1074 = vadd.f32 0.0, %v1073
        %1075 = vmatmul.bf16.gmra.mxu0 %v1040
        %v1076 = vpop.f32.mrf.mxu0
        %v1077 = vadd.f32 0.0, %v1076
        %v1078 = vpop.f32.mrf.mxu0
        %v1079 = vadd.f32 0.0, %v1078
        %1080 = vmatmul.bf16.gmra.mxu0 %v1043
        %v1081 = vpop.f32.mrf.mxu0
        %v1082 = vadd.f32 0.0, %v1081
        %v1083 = vpop.f32.mrf.mxu0
        %v1084 = vadd.f32 0.0, %v1083
        %1085 = vmatmul.bf16.gmra.mxu0 %v1046
        %v1086 = vpop.f32.mrf.mxu0
        %v1087 = vadd.f32 0.0, %v1086
        %v1088 = vpop.f32.mrf.mxu0
        %v1089 = vadd.f32 0.0, %v1088
        %1090 = vmatmul.bf16.gmra.mxu0 %v1049
        %v1091 = vpop.f32.mrf.mxu0
        %v1092 = vadd.f32 0.0, %v1091
        %v1093 = vpop.f32.mrf.mxu0
        %v1094 = vadd.f32 0.0, %v1093
        %1095 = vmatmul.bf16.gmra.mxu0 %v1052
        %v1096 = vpop.f32.mrf.mxu0
        %v1097 = vadd.f32 0.0, %v1096
        %v1098 = vpop.f32.mrf.mxu0
        %v1099 = vadd.f32 0.0, %v1098
        %1100 = vmatmul.bf16.gmra.mxu0 %v1055
        %v1101 = vpop.f32.mrf.mxu0
        %v1102 = vadd.f32 0.0, %v1101
        %v1103 = vpop.f32.mrf.mxu0
        %v1104 = vadd.f32 0.0, %v1103
        %1105 = vdwg.mxu0
        %v1108 = vunpack.c.l.b16 %v883
        %v1109 = vunpack.c.l.b16 %v884
        %v1110 = vpack.c.b16 %v1109, %v1108
        %1112 = vxpose.xlu0.c.b16.start [1/8] %v1110, 128
        %1113 = vxpose.xlu0.c.b16.cont [2/8] 0, 128
        %1114 = vxpose.xlu0.c.b16.cont [3/8] 0, 128
        %1115 = vxpose.xlu0.c.b16.cont [4/8] 0, 128
        %1116 = vxpose.xlu0.c.b16.cont [5/8] 0, 128
        %1117 = vxpose.xlu0.c.b16.cont [6/8] 0, 128
        %1118 = vxpose.xlu0.c.b16.cont [7/8] 0, 128
        %1119 = vxpose.xlu0.c.b16.end [8/8] 0, 128
        %v1120 = vpop.trf.xlu0
        %v1121 = vpop.trf.xlu0
        %v1122 = vpop.trf.xlu0
        %v1123 = vpop.trf.xlu0
        %v1124 = vpop.trf.xlu0
        %v1125 = vpop.trf.xlu0
        %v1126 = vpop.trf.xlu0
        %v1127 = vpop.trf.xlu0
        %v1130 = vunpack.c.l.b16 %v891
        %v1131 = vunpack.c.l.b16 %v892
        %v1132 = vpack.c.b16 %v1131, %v1130
        %v1135 = vsel %vm931, %v1120, 0
        %v1138 = vsel %vm931, %v1121, 0
        %v1141 = vsel %vm931, %v1122, 0
        %v1144 = vsel %vm931, %v1123, 0
        %v1147 = vsel %vm931, %v1124, 0
        %v1150 = vsel %vm931, %v1125, 0
        %v1153 = vsel %vm931, %v1126, 0
        %v1156 = vsel %vm931, %v1127, 0
        %1158 = vmatpush.bf16.msra.mxu0 0
        %1159 = vmatpush.bf16.msra.mxu0 0
        %1160 = vmatpush.bf16.msra.mxu0 0
        %1161 = vmatpush.bf16.msra.mxu0 0
        %1162 = vmatpush.bf16.msra.mxu0 0
        %1163 = vmatpush.bf16.msra.mxu0 0
        %1164 = vmatpush.bf16.msra.mxu0 0
        %1165 = vmatpush.bf16.msra.mxu0 %v1132
        %1166 = vmatmul.bf16.gmra.mxu0 %v1135
        %v1167 = vpop.f32.mrf.mxu0
        %v1168 = vadd.f32 0.0, %v1167
        %v1169 = vpop.f32.mrf.mxu0
        %v1170 = vadd.f32 0.0, %v1169
        %1171 = vmatmul.bf16.gmra.mxu0 %v1138
        %v1172 = vpop.f32.mrf.mxu0
        %v1173 = vadd.f32 0.0, %v1172
        %v1174 = vpop.f32.mrf.mxu0
        %v1175 = vadd.f32 0.0, %v1174
        %1176 = vmatmul.bf16.gmra.mxu0 %v1141
        %v1177 = vpop.f32.mrf.mxu0
        %v1178 = vadd.f32 0.0, %v1177
        %v1179 = vpop.f32.mrf.mxu0
        %v1180 = vadd.f32 0.0, %v1179
        %1181 = vmatmul.bf16.gmra.mxu0 %v1144
        %v1182 = vpop.f32.mrf.mxu0
        %v1183 = vadd.f32 0.0, %v1182
        %v1184 = vpop.f32.mrf.mxu0
        %v1185 = vadd.f32 0.0, %v1184
        %1186 = vmatmul.bf16.gmra.mxu0 %v1147
        %v1187 = vpop.f32.mrf.mxu0
        %v1188 = vadd.f32 0.0, %v1187
        %v1189 = vpop.f32.mrf.mxu0
        %v1190 = vadd.f32 0.0, %v1189
        %1191 = vmatmul.bf16.gmra.mxu0 %v1150
        %v1192 = vpop.f32.mrf.mxu0
        %v1193 = vadd.f32 0.0, %v1192
        %v1194 = vpop.f32.mrf.mxu0
        %v1195 = vadd.f32 0.0, %v1194
        %1196 = vmatmul.bf16.gmra.mxu0 %v1153
        %v1197 = vpop.f32.mrf.mxu0
        %v1198 = vadd.f32 0.0, %v1197
        %v1199 = vpop.f32.mrf.mxu0
        %v1200 = vadd.f32 0.0, %v1199
        %1201 = vmatmul.bf16.gmra.mxu0 %v1156
        %v1202 = vpop.f32.mrf.mxu0
        %v1203 = vadd.f32 0.0, %v1202
        %v1204 = vpop.f32.mrf.mxu0
        %v1205 = vadd.f32 0.0, %v1204
        %1206 = vdwg.mxu0
        %v1209 = vunpack.c.l.b16 %v885
        %v1210 = vunpack.c.l.b16 %v886
        %v1211 = vpack.c.b16 %v1210, %v1209
        %1213 = vxpose.xlu0.c.b16.start [1/8] %v1211, 128
        %1214 = vxpose.xlu0.c.b16.cont [2/8] 0, 128
        %1215 = vxpose.xlu0.c.b16.cont [3/8] 0, 128
        %1216 = vxpose.xlu0.c.b16.cont [4/8] 0, 128
        %1217 = vxpose.xlu0.c.b16.cont [5/8] 0, 128
        %1218 = vxpose.xlu0.c.b16.cont [6/8] 0, 128
        %1219 = vxpose.xlu0.c.b16.cont [7/8] 0, 128
        %1220 = vxpose.xlu0.c.b16.end [8/8] 0, 128
        %v1221 = vpop.trf.xlu0
        %v1222 = vpop.trf.xlu0
        %v1223 = vpop.trf.xlu0
        %v1224 = vpop.trf.xlu0
        %v1225 = vpop.trf.xlu0
        %v1226 = vpop.trf.xlu0
        %v1227 = vpop.trf.xlu0
        %v1228 = vpop.trf.xlu0
        %v1231 = vunpack.c.l.b16 %v893
        %v1232 = vunpack.c.l.b16 %v894
        %v1233 = vpack.c.b16 %v1232, %v1231
        %v1236 = vsel %vm931, %v1221, 0
        %v1239 = vsel %vm931, %v1222, 0
        %v1242 = vsel %vm931, %v1223, 0
        %v1245 = vsel %vm931, %v1224, 0
        %v1248 = vsel %vm931, %v1225, 0
        %v1251 = vsel %vm931, %v1226, 0
        %v1254 = vsel %vm931, %v1227, 0
        %v1257 = vsel %vm931, %v1228, 0
        %1259 = vmatpush.bf16.msra.mxu0 0
        %1260 = vmatpush.bf16.msra.mxu0 0
        %1261 = vmatpush.bf16.msra.mxu0 0
        %1262 = vmatpush.bf16.msra.mxu0 0
        %1263 = vmatpush.bf16.msra.mxu0 0
        %1264 = vmatpush.bf16.msra.mxu0 0
        %1265 = vmatpush.bf16.msra.mxu0 0
        %1266 = vmatpush.bf16.msra.mxu0 %v1233
        %1267 = vmatmul.bf16.gmra.mxu0 %v1236
        %v1268 = vpop.f32.mrf.mxu0
        %v1269 = vadd.f32 0.0, %v1268
        %v1270 = vpop.f32.mrf.mxu0
        %v1271 = vadd.f32 0.0, %v1270
        %1272 = vmatmul.bf16.gmra.mxu0 %v1239
        %v1273 = vpop.f32.mrf.mxu0
        %v1274 = vadd.f32 0.0, %v1273
        %v1275 = vpop.f32.mrf.mxu0
        %v1276 = vadd.f32 0.0, %v1275
        %1277 = vmatmul.bf16.gmra.mxu0 %v1242
        %v1278 = vpop.f32.mrf.mxu0
        %v1279 = vadd.f32 0.0, %v1278
        %v1280 = vpop.f32.mrf.mxu0
        %v1281 = vadd.f32 0.0, %v1280
        %1282 = vmatmul.bf16.gmra.mxu0 %v1245
        %v1283 = vpop.f32.mrf.mxu0
        %v1284 = vadd.f32 0.0, %v1283
        %v1285 = vpop.f32.mrf.mxu0
        %v1286 = vadd.f32 0.0, %v1285
        %1287 = vmatmul.bf16.gmra.mxu0 %v1248
        %v1288 = vpop.f32.mrf.mxu0
        %v1289 = vadd.f32 0.0, %v1288
        %v1290 = vpop.f32.mrf.mxu0
        %v1291 = vadd.f32 0.0, %v1290
        %1292 = vmatmul.bf16.gmra.mxu0 %v1251
        %v1293 = vpop.f32.mrf.mxu0
        %v1294 = vadd.f32 0.0, %v1293
        %v1295 = vpop.f32.mrf.mxu0
        %v1296 = vadd.f32 0.0, %v1295
        %1297 = vmatmul.bf16.gmra.mxu0 %v1254
        %v1298 = vpop.f32.mrf.mxu0
        %v1299 = vadd.f32 0.0, %v1298
        %v1300 = vpop.f32.mrf.mxu0
        %v1301 = vadd.f32 0.0, %v1300
        %1302 = vmatmul.bf16.gmra.mxu0 %v1257
        %v1303 = vpop.f32.mrf.mxu0
        %v1304 = vadd.f32 0.0, %v1303
        %v1305 = vpop.f32.mrf.mxu0
        %v1306 = vadd.f32 0.0, %v1305
        %1307 = vdwg.mxu0
        %1308 = vmax.xlane.f32.xlu0 %v966
        %v1309 = vpop.xlane.xlu0 %1308
        %1310 = vmax.xlane.f32.xlu0 %v968
        %v1311 = vpop.xlane.xlu0 %1310
        %1312 = vmax.xlane.f32.xlu0 %v971
        %v1313 = vpop.xlane.xlu0 %1312
        %1314 = vmax.xlane.f32.xlu0 %v973
        %v1315 = vpop.xlane.xlu0 %1314
        %1316 = vmax.xlane.f32.xlu0 %v976
        %v1317 = vpop.xlane.xlu0 %1316
        %1318 = vmax.xlane.f32.xlu0 %v978
        %v1319 = vpop.xlane.xlu0 %1318
        %1320 = vmax.xlane.f32.xlu0 %v981
        %v1321 = vpop.xlane.xlu0 %1320
        %1322 = vmax.xlane.f32.xlu0 %v983
        %v1323 = vpop.xlane.xlu0 %1322
        %1324 = vmax.xlane.f32.xlu0 %v986
        %v1325 = vpop.xlane.xlu0 %1324
        %1326 = vmax.xlane.f32.xlu0 %v988
        %v1327 = vpop.xlane.xlu0 %1326
        %1328 = vmax.xlane.f32.xlu0 %v991
        %v1329 = vpop.xlane.xlu0 %1328
        %1330 = vmax.xlane.f32.xlu0 %v993
        %v1331 = vpop.xlane.xlu0 %1330
        %1332 = vmax.xlane.f32.xlu0 %v996
        %v1333 = vpop.xlane.xlu0 %1332
        %1334 = vmax.xlane.f32.xlu0 %v998
        %v1335 = vpop.xlane.xlu0 %1334
        %1336 = vmax.xlane.f32.xlu0 %v1001
        %v1337 = vpop.xlane.xlu0 %1336
        %1338 = vmax.xlane.f32.xlu0 %v1003
        %v1339 = vpop.xlane.xlu0 %1338
        %1340 = vmax.xlane.f32.xlu0 %v1067
        %v1341 = vpop.xlane.xlu0 %1340
        %1342 = vmax.xlane.f32.xlu0 %v1069
        %v1343 = vpop.xlane.xlu0 %1342
        %1344 = vmax.xlane.f32.xlu0 %v1072
        %v1345 = vpop.xlane.xlu0 %1344
        %1346 = vmax.xlane.f32.xlu0 %v1074
        %v1347 = vpop.xlane.xlu0 %1346
        %1348 = vmax.xlane.f32.xlu0 %v1077
        %v1349 = vpop.xlane.xlu0 %1348
        %1350 = vmax.xlane.f32.xlu0 %v1079
        %v1351 = vpop.xlane.xlu0 %1350
        %1352 = vmax.xlane.f32.xlu0 %v1082
        %v1353 = vpop.xlane.xlu0 %1352
        %1354 = vmax.xlane.f32.xlu0 %v1084
        %v1355 = vpop.xlane.xlu0 %1354
        %1356 = vmax.xlane.f32.xlu0 %v1087
        %v1357 = vpop.xlane.xlu0 %1356
        %1358 = vmax.xlane.f32.xlu0 %v1089
        %v1359 = vpop.xlane.xlu0 %1358
        %1360 = vmax.xlane.f32.xlu0 %v1092
        %v1361 = vpop.xlane.xlu0 %1360
        %1362 = vmax.xlane.f32.xlu0 %v1094
        %v1363 = vpop.xlane.xlu0 %1362
        %1364 = vmax.xlane.f32.xlu0 %v1097
        %v1365 = vpop.xlane.xlu0 %1364
        %1366 = vmax.xlane.f32.xlu0 %v1099
        %v1367 = vpop.xlane.xlu0 %1366
        %1368 = vmax.xlane.f32.xlu0 %v1102
        %v1369 = vpop.xlane.xlu0 %1368
        %1370 = vmax.xlane.f32.xlu0 %v1104
        %v1371 = vpop.xlane.xlu0 %1370
        %1372 = vmax.xlane.f32.xlu0 %v1168
        %v1373 = vpop.xlane.xlu0 %1372
        %1374 = vmax.xlane.f32.xlu0 %v1170
        %v1375 = vpop.xlane.xlu0 %1374
        %1376 = vmax.xlane.f32.xlu0 %v1173
        %v1377 = vpop.xlane.xlu0 %1376
        %1378 = vmax.xlane.f32.xlu0 %v1175
        %v1379 = vpop.xlane.xlu0 %1378
        %1380 = vmax.xlane.f32.xlu0 %v1178
        %v1381 = vpop.xlane.xlu0 %1380
        %1382 = vmax.xlane.f32.xlu0 %v1180
        %v1383 = vpop.xlane.xlu0 %1382
        %1384 = vmax.xlane.f32.xlu0 %v1183
        %v1385 = vpop.xlane.xlu0 %1384
        %1386 = vmax.xlane.f32.xlu0 %v1185
        %v1387 = vpop.xlane.xlu0 %1386
        %1388 = vmax.xlane.f32.xlu0 %v1188
        %v1389 = vpop.xlane.xlu0 %1388
        %1390 = vmax.xlane.f32.xlu0 %v1190
        %v1391 = vpop.xlane.xlu0 %1390
        %1392 = vmax.xlane.f32.xlu0 %v1193
        %v1393 = vpop.xlane.xlu0 %1392
        %1394 = vmax.xlane.f32.xlu0 %v1195
        %v1395 = vpop.xlane.xlu0 %1394
        %1396 = vmax.xlane.f32.xlu0 %v1198
        %v1397 = vpop.xlane.xlu0 %1396
        %1398 = vmax.xlane.f32.xlu0 %v1200
        %v1399 = vpop.xlane.xlu0 %1398
        %1400 = vmax.xlane.f32.xlu0 %v1203
        %v1401 = vpop.xlane.xlu0 %1400
        %1402 = vmax.xlane.f32.xlu0 %v1205
        %v1403 = vpop.xlane.xlu0 %1402
        %1404 = vmax.xlane.f32.xlu0 %v1269
        %v1405 = vpop.xlane.xlu0 %1404
        %1406 = vmax.xlane.f32.xlu0 %v1271
        %v1407 = vpop.xlane.xlu0 %1406
        %1408 = vmax.xlane.f32.xlu0 %v1274
        %v1409 = vpop.xlane.xlu0 %1408
        %1410 = vmax.xlane.f32.xlu0 %v1276
        %v1411 = vpop.xlane.xlu0 %1410
        %1412 = vmax.xlane.f32.xlu0 %v1279
        %v1413 = vpop.xlane.xlu0 %1412
        %1414 = vmax.xlane.f32.xlu0 %v1281
        %v1415 = vpop.xlane.xlu0 %1414
        %1416 = vmax.xlane.f32.xlu0 %v1284
        %v1417 = vpop.xlane.xlu0 %1416
        %1418 = vmax.xlane.f32.xlu0 %v1286
        %v1419 = vpop.xlane.xlu0 %1418
        %1420 = vmax.xlane.f32.xlu0 %v1289
        %v1421 = vpop.xlane.xlu0 %1420
        %1422 = vmax.xlane.f32.xlu0 %v1291
        %v1423 = vpop.xlane.xlu0 %1422
        %1424 = vmax.xlane.f32.xlu0 %v1294
        %v1425 = vpop.xlane.xlu0 %1424
        %1426 = vmax.xlane.f32.xlu0 %v1296
        %v1427 = vpop.xlane.xlu0 %1426
        %1428 = vmax.xlane.f32.xlu0 %v1299
        %v1429 = vpop.xlane.xlu0 %1428
        %1430 = vmax.xlane.f32.xlu0 %v1301
        %v1431 = vpop.xlane.xlu0 %1430
        %1432 = vmax.xlane.f32.xlu0 %v1304
        %v1433 = vpop.xlane.xlu0 %1432
        %1434 = vmax.xlane.f32.xlu0 %v1306
        %v1435 = vpop.xlane.xlu0 %1434
        %v1436 = vsub.f32 %v966, %v1309
        %v1437 = vsub.f32 %v968, %v1311
        %v1438 = vsub.f32 %v971, %v1313
        %v1439 = vsub.f32 %v973, %v1315
        %v1440 = vsub.f32 %v976, %v1317
        %v1441 = vsub.f32 %v978, %v1319
        %v1442 = vsub.f32 %v981, %v1321
        %v1443 = vsub.f32 %v983, %v1323
        %v1444 = vsub.f32 %v986, %v1325
        %v1445 = vsub.f32 %v988, %v1327
        %v1446 = vsub.f32 %v991, %v1329
        %v1447 = vsub.f32 %v993, %v1331
        %v1448 = vsub.f32 %v996, %v1333
        %v1449 = vsub.f32 %v998, %v1335
        %v1450 = vsub.f32 %v1001, %v1337
        %v1451 = vsub.f32 %v1003, %v1339
        %v1452 = vsub.f32 %v1067, %v1341
        %v1453 = vsub.f32 %v1069, %v1343
        %v1454 = vsub.f32 %v1072, %v1345
        %v1455 = vsub.f32 %v1074, %v1347
        %v1456 = vsub.f32 %v1077, %v1349
        %v1457 = vsub.f32 %v1079, %v1351
        %v1458 = vsub.f32 %v1082, %v1353
        %v1459 = vsub.f32 %v1084, %v1355
        %v1460 = vsub.f32 %v1087, %v1357
        %v1461 = vsub.f32 %v1089, %v1359
        %v1462 = vsub.f32 %v1092, %v1361
        %v1463 = vsub.f32 %v1094, %v1363
        %v1464 = vsub.f32 %v1097, %v1365
        %v1465 = vsub.f32 %v1099, %v1367
        %v1466 = vsub.f32 %v1102, %v1369
        %v1467 = vsub.f32 %v1104, %v1371
        %v1468 = vsub.f32 %v1168, %v1373
        %v1469 = vsub.f32 %v1170, %v1375
        %v1470 = vsub.f32 %v1173, %v1377
        %v1471 = vsub.f32 %v1175, %v1379
        %v1472 = vsub.f32 %v1178, %v1381
        %v1473 = vsub.f32 %v1180, %v1383
        %v1474 = vsub.f32 %v1183, %v1385
        %v1475 = vsub.f32 %v1185, %v1387
        %v1476 = vsub.f32 %v1188, %v1389
        %v1477 = vsub.f32 %v1190, %v1391
        %v1478 = vsub.f32 %v1193, %v1393
        %v1479 = vsub.f32 %v1195, %v1395
        %v1480 = vsub.f32 %v1198, %v1397
        %v1481 = vsub.f32 %v1200, %v1399
        %v1482 = vsub.f32 %v1203, %v1401
        %v1483 = vsub.f32 %v1205, %v1403
        %v1484 = vsub.f32 %v1269, %v1405
        %v1485 = vsub.f32 %v1271, %v1407
        %v1486 = vsub.f32 %v1274, %v1409
        %v1487 = vsub.f32 %v1276, %v1411
        %v1488 = vsub.f32 %v1279, %v1413
        %v1489 = vsub.f32 %v1281, %v1415
        %v1490 = vsub.f32 %v1284, %v1417
        %v1491 = vsub.f32 %v1286, %v1419
        %v1492 = vsub.f32 %v1289, %v1421
        %v1493 = vsub.f32 %v1291, %v1423
        %v1494 = vsub.f32 %v1294, %v1425
        %v1495 = vsub.f32 %v1296, %v1427
        %v1496 = vsub.f32 %v1299, %v1429
        %v1497 = vsub.f32 %v1301, %v1431
        %v1498 = vsub.f32 %v1304, %v1433
        %v1499 = vsub.f32 %v1306, %v1435
        %v1500 = vmul.f32 %v1436, 1.442695
        %v1501 = vpow.pop %v1500
        %v1502 = vmul.f32 %v1437, 1.442695
        %v1503 = vpow.pop %v1502
        %v1504 = vmul.f32 %v1438, 1.442695
        %v1505 = vpow.pop %v1504
        %v1506 = vmul.f32 %v1439, 1.442695
        %v1507 = vpow.pop %v1506
        %v1508 = vmul.f32 %v1440, 1.442695
        %v1509 = vpow.pop %v1508
        %v1510 = vmul.f32 %v1441, 1.442695
        %v1511 = vpow.pop %v1510
        %v1512 = vmul.f32 %v1442, 1.442695
        %v1513 = vpow.pop %v1512
        %v1514 = vmul.f32 %v1443, 1.442695
        %v1515 = vpow.pop %v1514
        %v1516 = vmul.f32 %v1444, 1.442695
        %v1517 = vpow.pop %v1516
        %v1518 = vmul.f32 %v1445, 1.442695
        %v1519 = vpow.pop %v1518
        %v1520 = vmul.f32 %v1446, 1.442695
        %v1521 = vpow.pop %v1520
        %v1522 = vmul.f32 %v1447, 1.442695
        %v1523 = vpow.pop %v1522
        %v1524 = vmul.f32 %v1448, 1.442695
        %v1525 = vpow.pop %v1524
        %v1526 = vmul.f32 %v1449, 1.442695
        %v1527 = vpow.pop %v1526
        %v1528 = vmul.f32 %v1450, 1.442695
        %v1529 = vpow.pop %v1528
        %v1530 = vmul.f32 %v1451, 1.442695
        %v1531 = vpow.pop %v1530
        %v1532 = vmul.f32 %v1452, 1.442695
        %v1533 = vpow.pop %v1532
        %v1534 = vmul.f32 %v1453, 1.442695
        %v1535 = vpow.pop %v1534
        %v1536 = vmul.f32 %v1454, 1.442695
        %v1537 = vpow.pop %v1536
        %v1538 = vmul.f32 %v1455, 1.442695
        %v1539 = vpow.pop %v1538
        %v1540 = vmul.f32 %v1456, 1.442695
        %v1541 = vpow.pop %v1540
        %v1542 = vmul.f32 %v1457, 1.442695
        %v1543 = vpow.pop %v1542
        %v1544 = vmul.f32 %v1458, 1.442695
        %v1545 = vpow.pop %v1544
        %v1546 = vmul.f32 %v1459, 1.442695
        %v1547 = vpow.pop %v1546
        %v1548 = vmul.f32 %v1460, 1.442695
        %v1549 = vpow.pop %v1548
        %v1550 = vmul.f32 %v1461, 1.442695
        %v1551 = vpow.pop %v1550
        %v1552 = vmul.f32 %v1462, 1.442695
        %v1553 = vpow.pop %v1552
        %v1554 = vmul.f32 %v1463, 1.442695
        %v1555 = vpow.pop %v1554
        %v1556 = vmul.f32 %v1464, 1.442695
        %v1557 = vpow.pop %v1556
        %v1558 = vmul.f32 %v1465, 1.442695
        %v1559 = vpow.pop %v1558
        %v1560 = vmul.f32 %v1466, 1.442695
        %v1561 = vpow.pop %v1560
        %v1562 = vmul.f32 %v1467, 1.442695
        %v1563 = vpow.pop %v1562
        %v1564 = vmul.f32 %v1468, 1.442695
        %v1565 = vpow.pop %v1564
        %v1566 = vmul.f32 %v1469, 1.442695
        %v1567 = vpow.pop %v1566
        %v1568 = vmul.f32 %v1470, 1.442695
        %v1569 = vpow.pop %v1568
        %v1570 = vmul.f32 %v1471, 1.442695
        %v1571 = vpow.pop %v1570
        %v1572 = vmul.f32 %v1472, 1.442695
        %v1573 = vpow.pop %v1572
        %v1574 = vmul.f32 %v1473, 1.442695
        %v1575 = vpow.pop %v1574
        %v1576 = vmul.f32 %v1474, 1.442695
        %v1577 = vpow.pop %v1576
        %v1578 = vmul.f32 %v1475, 1.442695
        %v1579 = vpow.pop %v1578
        %v1580 = vmul.f32 %v1476, 1.442695
        %v1581 = vpow.pop %v1580
        %v1582 = vmul.f32 %v1477, 1.442695
        %v1583 = vpow.pop %v1582
        %v1584 = vmul.f32 %v1478, 1.442695
        %v1585 = vpow.pop %v1584
        %v1586 = vmul.f32 %v1479, 1.442695
        %v1587 = vpow.pop %v1586
        %v1588 = vmul.f32 %v1480, 1.442695
        %v1589 = vpow.pop %v1588
        %v1590 = vmul.f32 %v1481, 1.442695
        %v1591 = vpow.pop %v1590
        %v1592 = vmul.f32 %v1482, 1.442695
        %v1593 = vpow.pop %v1592
        %v1594 = vmul.f32 %v1483, 1.442695
        %v1595 = vpow.pop %v1594
        %v1596 = vmul.f32 %v1484, 1.442695
        %v1597 = vpow.pop %v1596
        %v1598 = vmul.f32 %v1485, 1.442695
        %v1599 = vpow.pop %v1598
        %v1600 = vmul.f32 %v1486, 1.442695
        %v1601 = vpow.pop %v1600
        %v1602 = vmul.f32 %v1487, 1.442695
        %v1603 = vpow.pop %v1602
        %v1604 = vmul.f32 %v1488, 1.442695
        %v1605 = vpow.pop %v1604
        %v1606 = vmul.f32 %v1489, 1.442695
        %v1607 = vpow.pop %v1606
        %v1608 = vmul.f32 %v1490, 1.442695
        %v1609 = vpow.pop %v1608
        %v1610 = vmul.f32 %v1491, 1.442695
        %v1611 = vpow.pop %v1610
        %v1612 = vmul.f32 %v1492, 1.442695
        %v1613 = vpow.pop %v1612
        %v1614 = vmul.f32 %v1493, 1.442695
        %v1615 = vpow.pop %v1614
        %v1616 = vmul.f32 %v1494, 1.442695
        %v1617 = vpow.pop %v1616
        %v1618 = vmul.f32 %v1495, 1.442695
        %v1619 = vpow.pop %v1618
        %v1620 = vmul.f32 %v1496, 1.442695
        %v1621 = vpow.pop %v1620
        %v1622 = vmul.f32 %v1497, 1.442695
        %v1623 = vpow.pop %v1622
        %v1624 = vmul.f32 %v1498, 1.442695
        %v1625 = vpow.pop %v1624
        %v1626 = vmul.f32 %v1499, 1.442695
        %v1627 = vpow.pop %v1626
        %1628 = vadd.xlane.f32.xlu0 %v1501
        %v1629 = vpop.xlane.xlu0 %1628
        %1630 = vadd.xlane.f32.xlu0 %v1503
        %v1631 = vpop.xlane.xlu0 %1630
        %1632 = vadd.xlane.f32.xlu0 %v1505
        %v1633 = vpop.xlane.xlu0 %1632
        %1634 = vadd.xlane.f32.xlu0 %v1507
        %v1635 = vpop.xlane.xlu0 %1634
        %1636 = vadd.xlane.f32.xlu0 %v1509
        %v1637 = vpop.xlane.xlu0 %1636
        %1638 = vadd.xlane.f32.xlu0 %v1511
        %v1639 = vpop.xlane.xlu0 %1638
        %1640 = vadd.xlane.f32.xlu0 %v1513
        %v1641 = vpop.xlane.xlu0 %1640
        %1642 = vadd.xlane.f32.xlu0 %v1515
        %v1643 = vpop.xlane.xlu0 %1642
        %1644 = vadd.xlane.f32.xlu0 %v1517
        %v1645 = vpop.xlane.xlu0 %1644
        %1646 = vadd.xlane.f32.xlu0 %v1519
        %v1647 = vpop.xlane.xlu0 %1646
        %1648 = vadd.xlane.f32.xlu0 %v1521
        %v1649 = vpop.xlane.xlu0 %1648
        %1650 = vadd.xlane.f32.xlu0 %v1523
        %v1651 = vpop.xlane.xlu0 %1650
        %1652 = vadd.xlane.f32.xlu0 %v1525
        %v1653 = vpop.xlane.xlu0 %1652
        %1654 = vadd.xlane.f32.xlu0 %v1527
        %v1655 = vpop.xlane.xlu0 %1654
        %1656 = vadd.xlane.f32.xlu0 %v1529
        %v1657 = vpop.xlane.xlu0 %1656
        %1658 = vadd.xlane.f32.xlu0 %v1531
        %v1659 = vpop.xlane.xlu0 %1658
        %1660 = vadd.xlane.f32.xlu0 %v1533
        %v1661 = vpop.xlane.xlu0 %1660
        %1662 = vadd.xlane.f32.xlu0 %v1535
        %v1663 = vpop.xlane.xlu0 %1662
        %1664 = vadd.xlane.f32.xlu0 %v1537
        %v1665 = vpop.xlane.xlu0 %1664
        %1666 = vadd.xlane.f32.xlu0 %v1539
        %v1667 = vpop.xlane.xlu0 %1666
        %1668 = vadd.xlane.f32.xlu0 %v1541
        %v1669 = vpop.xlane.xlu0 %1668
        %1670 = vadd.xlane.f32.xlu0 %v1543
        %v1671 = vpop.xlane.xlu0 %1670
        %1672 = vadd.xlane.f32.xlu0 %v1545
        %v1673 = vpop.xlane.xlu0 %1672
        %1674 = vadd.xlane.f32.xlu0 %v1547
        %v1675 = vpop.xlane.xlu0 %1674
        %1676 = vadd.xlane.f32.xlu0 %v1549
        %v1677 = vpop.xlane.xlu0 %1676
        %1678 = vadd.xlane.f32.xlu0 %v1551
        %v1679 = vpop.xlane.xlu0 %1678
        %1680 = vadd.xlane.f32.xlu0 %v1553
        %v1681 = vpop.xlane.xlu0 %1680
        %1682 = vadd.xlane.f32.xlu0 %v1555
        %v1683 = vpop.xlane.xlu0 %1682
        %1684 = vadd.xlane.f32.xlu0 %v1557
        %v1685 = vpop.xlane.xlu0 %1684
        %1686 = vadd.xlane.f32.xlu0 %v1559
        %v1687 = vpop.xlane.xlu0 %1686
        %1688 = vadd.xlane.f32.xlu0 %v1561
        %v1689 = vpop.xlane.xlu0 %1688
        %1690 = vadd.xlane.f32.xlu0 %v1563
        %v1691 = vpop.xlane.xlu0 %1690
        %1692 = vadd.xlane.f32.xlu0 %v1565
        %v1693 = vpop.xlane.xlu0 %1692
        %1694 = vadd.xlane.f32.xlu0 %v1567
        %v1695 = vpop.xlane.xlu0 %1694
        %1696 = vadd.xlane.f32.xlu0 %v1569
        %v1697 = vpop.xlane.xlu0 %1696
        %1698 = vadd.xlane.f32.xlu0 %v1571
        %v1699 = vpop.xlane.xlu0 %1698
        %1700 = vadd.xlane.f32.xlu0 %v1573
        %v1701 = vpop.xlane.xlu0 %1700
        %1702 = vadd.xlane.f32.xlu0 %v1575
        %v1703 = vpop.xlane.xlu0 %1702
        %1704 = vadd.xlane.f32.xlu0 %v1577
        %v1705 = vpop.xlane.xlu0 %1704
        %1706 = vadd.xlane.f32.xlu0 %v1579
        %v1707 = vpop.xlane.xlu0 %1706
        %1708 = vadd.xlane.f32.xlu0 %v1581
        %v1709 = vpop.xlane.xlu0 %1708
        %1710 = vadd.xlane.f32.xlu0 %v1583
        %v1711 = vpop.xlane.xlu0 %1710
        %1712 = vadd.xlane.f32.xlu0 %v1585
        %v1713 = vpop.xlane.xlu0 %1712
        %1714 = vadd.xlane.f32.xlu0 %v1587
        %v1715 = vpop.xlane.xlu0 %1714
        %1716 = vadd.xlane.f32.xlu0 %v1589
        %v1717 = vpop.xlane.xlu0 %1716
        %1718 = vadd.xlane.f32.xlu0 %v1591
        %v1719 = vpop.xlane.xlu0 %1718
        %1720 = vadd.xlane.f32.xlu0 %v1593
        %v1721 = vpop.xlane.xlu0 %1720
        %1722 = vadd.xlane.f32.xlu0 %v1595
        %v1723 = vpop.xlane.xlu0 %1722
        %1724 = vadd.xlane.f32.xlu0 %v1597
        %v1725 = vpop.xlane.xlu0 %1724
        %1726 = vadd.xlane.f32.xlu0 %v1599
        %v1727 = vpop.xlane.xlu0 %1726
        %1728 = vadd.xlane.f32.xlu0 %v1601
        %v1729 = vpop.xlane.xlu0 %1728
        %1730 = vadd.xlane.f32.xlu0 %v1603
        %v1731 = vpop.xlane.xlu0 %1730
        %1732 = vadd.xlane.f32.xlu0 %v1605
        %v1733 = vpop.xlane.xlu0 %1732
        %1734 = vadd.xlane.f32.xlu0 %v1607
        %v1735 = vpop.xlane.xlu0 %1734
        %1736 = vadd.xlane.f32.xlu0 %v1609
        %v1737 = vpop.xlane.xlu0 %1736
        %1738 = vadd.xlane.f32.xlu0 %v1611
        %v1739 = vpop.xlane.xlu0 %1738
        %1740 = vadd.xlane.f32.xlu0 %v1613
        %v1741 = vpop.xlane.xlu0 %1740
        %1742 = vadd.xlane.f32.xlu0 %v1615
        %v1743 = vpop.xlane.xlu0 %1742
        %1744 = vadd.xlane.f32.xlu0 %v1617
        %v1745 = vpop.xlane.xlu0 %1744
        %1746 = vadd.xlane.f32.xlu0 %v1619
        %v1747 = vpop.xlane.xlu0 %1746
        %1748 = vadd.xlane.f32.xlu0 %v1621
        %v1749 = vpop.xlane.xlu0 %1748
        %1750 = vadd.xlane.f32.xlu0 %v1623
        %v1751 = vpop.xlane.xlu0 %1750
        %1752 = vadd.xlane.f32.xlu0 %v1625
        %v1753 = vpop.xlane.xlu0 %1752
        %1754 = vadd.xlane.f32.xlu0 %v1627
        %v1755 = vpop.xlane.xlu0 %1754
        %v1756 = vrcp.pop %v1629
        %v1757 = vrcp.pop %v1631
        %v1758 = vrcp.pop %v1633
        %v1759 = vrcp.pop %v1635
        %v1760 = vrcp.pop %v1637
        %v1761 = vrcp.pop %v1639
        %v1762 = vrcp.pop %v1641
        %v1763 = vrcp.pop %v1643
        %v1764 = vrcp.pop %v1645
        %v1765 = vrcp.pop %v1647
        %v1766 = vrcp.pop %v1649
        %v1767 = vrcp.pop %v1651
        %v1768 = vrcp.pop %v1653
        %v1769 = vrcp.pop %v1655
        %v1770 = vrcp.pop %v1657
        %v1771 = vrcp.pop %v1659
        %v1772 = vrcp.pop %v1661
        %v1773 = vrcp.pop %v1663
        %v1774 = vrcp.pop %v1665
        %v1775 = vrcp.pop %v1667
        %v1776 = vrcp.pop %v1669
        %v1777 = vrcp.pop %v1671
        %v1778 = vrcp.pop %v1673
        %v1779 = vrcp.pop %v1675
        %v1780 = vrcp.pop %v1677
        %v1781 = vrcp.pop %v1679
        %v1782 = vrcp.pop %v1681
        %v1783 = vrcp.pop %v1683
        %v1784 = vrcp.pop %v1685
        %v1785 = vrcp.pop %v1687
        %v1786 = vrcp.pop %v1689
        %v1787 = vrcp.pop %v1691
        %v1788 = vrcp.pop %v1693
        %v1789 = vrcp.pop %v1695
        %v1790 = vrcp.pop %v1697
        %v1791 = vrcp.pop %v1699
        %v1792 = vrcp.pop %v1701
        %v1793 = vrcp.pop %v1703
        %v1794 = vrcp.pop %v1705
        %v1795 = vrcp.pop %v1707
        %v1796 = vrcp.pop %v1709
        %v1797 = vrcp.pop %v1711
        %v1798 = vrcp.pop %v1713
        %v1799 = vrcp.pop %v1715
        %v1800 = vrcp.pop %v1717
        %v1801 = vrcp.pop %v1719
        %v1802 = vrcp.pop %v1721
        %v1803 = vrcp.pop %v1723
        %v1804 = vrcp.pop %v1725
        %v1805 = vrcp.pop %v1727
        %v1806 = vrcp.pop %v1729
        %v1807 = vrcp.pop %v1731
        %v1808 = vrcp.pop %v1733
        %v1809 = vrcp.pop %v1735
        %v1810 = vrcp.pop %v1737
        %v1811 = vrcp.pop %v1739
        %v1812 = vrcp.pop %v1741
        %v1813 = vrcp.pop %v1743
        %v1814 = vrcp.pop %v1745
        %v1815 = vrcp.pop %v1747
        %v1816 = vrcp.pop %v1749
        %v1817 = vrcp.pop %v1751
        %v1818 = vrcp.pop %v1753
        %v1819 = vrcp.pop %v1755
        %v1820 = vmul.f32 %v1501, %v1756
        %v1821 = vmul.f32 %v1503, %v1757
        %v1822 = vmul.f32 %v1505, %v1758
        %v1823 = vmul.f32 %v1507, %v1759
        %v1824 = vmul.f32 %v1509, %v1760
        %v1825 = vmul.f32 %v1511, %v1761
        %v1826 = vmul.f32 %v1513, %v1762
        %v1827 = vmul.f32 %v1515, %v1763
        %v1828 = vmul.f32 %v1517, %v1764
        %v1829 = vmul.f32 %v1519, %v1765
        %v1830 = vmul.f32 %v1521, %v1766
        %v1831 = vmul.f32 %v1523, %v1767
        %v1832 = vmul.f32 %v1525, %v1768
        %v1833 = vmul.f32 %v1527, %v1769
        %v1834 = vmul.f32 %v1529, %v1770
        %v1835 = vmul.f32 %v1531, %v1771
        %v1836 = vmul.f32 %v1533, %v1772
        %v1837 = vmul.f32 %v1535, %v1773
        %v1838 = vmul.f32 %v1537, %v1774
        %v1839 = vmul.f32 %v1539, %v1775
        %v1840 = vmul.f32 %v1541, %v1776
        %v1841 = vmul.f32 %v1543, %v1777
        %v1842 = vmul.f32 %v1545, %v1778
        %v1843 = vmul.f32 %v1547, %v1779
        %v1844 = vmul.f32 %v1549, %v1780
        %v1845 = vmul.f32 %v1551, %v1781
        %v1846 = vmul.f32 %v1553, %v1782
        %v1847 = vmul.f32 %v1555, %v1783
        %v1848 = vmul.f32 %v1557, %v1784
        %v1849 = vmul.f32 %v1559, %v1785
        %v1850 = vmul.f32 %v1561, %v1786
        %v1851 = vmul.f32 %v1563, %v1787
        %v1852 = vmul.f32 %v1565, %v1788
        %v1853 = vmul.f32 %v1567, %v1789
        %v1854 = vmul.f32 %v1569, %v1790
        %v1855 = vmul.f32 %v1571, %v1791
        %v1856 = vmul.f32 %v1573, %v1792
        %v1857 = vmul.f32 %v1575, %v1793
        %v1858 = vmul.f32 %v1577, %v1794
        %v1859 = vmul.f32 %v1579, %v1795
        %v1860 = vmul.f32 %v1581, %v1796
        %v1861 = vmul.f32 %v1583, %v1797
        %v1862 = vmul.f32 %v1585, %v1798
        %v1863 = vmul.f32 %v1587, %v1799
        %v1864 = vmul.f32 %v1589, %v1800
        %v1865 = vmul.f32 %v1591, %v1801
        %v1866 = vmul.f32 %v1593, %v1802
        %v1867 = vmul.f32 %v1595, %v1803
        %v1868 = vmul.f32 %v1597, %v1804
        %v1869 = vmul.f32 %v1599, %v1805
        %v1870 = vmul.f32 %v1601, %v1806
        %v1871 = vmul.f32 %v1603, %v1807
        %v1872 = vmul.f32 %v1605, %v1808
        %v1873 = vmul.f32 %v1607, %v1809
        %v1874 = vmul.f32 %v1609, %v1810
        %v1875 = vmul.f32 %v1611, %v1811
        %v1876 = vmul.f32 %v1613, %v1812
        %v1877 = vmul.f32 %v1615, %v1813
        %v1878 = vmul.f32 %v1617, %v1814
        %v1879 = vmul.f32 %v1619, %v1815
        %v1880 = vmul.f32 %v1621, %v1816
        %v1881 = vmul.f32 %v1623, %v1817
        %v1882 = vmul.f32 %v1625, %v1818
        %v1883 = vmul.f32 %v1627, %v1819
        %v1884 = vpack.c.bf16 %v1820, %v1820
        %v1885 = vpack.c.bf16 %v1821, %v1821
        %v1886 = vpack.c.bf16 %v1822, %v1822
        %v1887 = vpack.c.bf16 %v1823, %v1823
        %v1888 = vpack.c.bf16 %v1824, %v1824
        %v1889 = vpack.c.bf16 %v1825, %v1825
        %v1890 = vpack.c.bf16 %v1826, %v1826
        %v1891 = vpack.c.bf16 %v1827, %v1827
        %v1892 = vpack.c.bf16 %v1828, %v1828
        %v1893 = vpack.c.bf16 %v1829, %v1829
        %v1894 = vpack.c.bf16 %v1830, %v1830
        %v1895 = vpack.c.bf16 %v1831, %v1831
        %v1896 = vpack.c.bf16 %v1832, %v1832
        %v1897 = vpack.c.bf16 %v1833, %v1833
        %v1898 = vpack.c.bf16 %v1834, %v1834
        %v1899 = vpack.c.bf16 %v1835, %v1835
        %v1900 = vpack.c.bf16 %v1836, %v1836
        %v1901 = vpack.c.bf16 %v1837, %v1837
        %v1902 = vpack.c.bf16 %v1838, %v1838
        %v1903 = vpack.c.bf16 %v1839, %v1839
        %v1904 = vpack.c.bf16 %v1840, %v1840
        %v1905 = vpack.c.bf16 %v1841, %v1841
        %v1906 = vpack.c.bf16 %v1842, %v1842
        %v1907 = vpack.c.bf16 %v1843, %v1843
        %v1908 = vpack.c.bf16 %v1844, %v1844
        %v1909 = vpack.c.bf16 %v1845, %v1845
        %v1910 = vpack.c.bf16 %v1846, %v1846
        %v1911 = vpack.c.bf16 %v1847, %v1847
        %v1912 = vpack.c.bf16 %v1848, %v1848
        %v1913 = vpack.c.bf16 %v1849, %v1849
        %v1914 = vpack.c.bf16 %v1850, %v1850
        %v1915 = vpack.c.bf16 %v1851, %v1851
        %v1916 = vpack.c.bf16 %v1852, %v1852
        %v1917 = vpack.c.bf16 %v1853, %v1853
        %v1918 = vpack.c.bf16 %v1854, %v1854
        %v1919 = vpack.c.bf16 %v1855, %v1855
        %v1920 = vpack.c.bf16 %v1856, %v1856
        %v1921 = vpack.c.bf16 %v1857, %v1857
        %v1922 = vpack.c.bf16 %v1858, %v1858
        %v1923 = vpack.c.bf16 %v1859, %v1859
        %v1924 = vpack.c.bf16 %v1860, %v1860
        %v1925 = vpack.c.bf16 %v1861, %v1861
        %v1926 = vpack.c.bf16 %v1862, %v1862
        %v1927 = vpack.c.bf16 %v1863, %v1863
        %v1928 = vpack.c.bf16 %v1864, %v1864
        %v1929 = vpack.c.bf16 %v1865, %v1865
        %v1930 = vpack.c.bf16 %v1866, %v1866
        %v1931 = vpack.c.bf16 %v1867, %v1867
        %v1932 = vpack.c.bf16 %v1868, %v1868
        %v1933 = vpack.c.bf16 %v1869, %v1869
        %v1934 = vpack.c.bf16 %v1870, %v1870
        %v1935 = vpack.c.bf16 %v1871, %v1871
        %v1936 = vpack.c.bf16 %v1872, %v1872
        %v1937 = vpack.c.bf16 %v1873, %v1873
        %v1938 = vpack.c.bf16 %v1874, %v1874
        %v1939 = vpack.c.bf16 %v1875, %v1875
        %v1940 = vpack.c.bf16 %v1876, %v1876
        %v1941 = vpack.c.bf16 %v1877, %v1877
        %v1942 = vpack.c.bf16 %v1878, %v1878
        %v1943 = vpack.c.bf16 %v1879, %v1879
        %v1944 = vpack.c.bf16 %v1880, %v1880
        %v1945 = vpack.c.bf16 %v1881, %v1881
        %v1946 = vpack.c.bf16 %v1882, %v1882
        %v1947 = vpack.c.bf16 %v1883, %v1883
        %v1950 = vunpack.c.l.b16 %v895
        %v1951 = vunpack.c.l.b16 %v896
        %v1952 = vpack.c.b16 %v1951, %v1950
        %v1970 = vunpack.c.l.b16 %v1884
        %v1971 = vunpack.c.l.b16 %v1885
        %v1972 = vunpack.c.l.b16 %v1886
        %v1973 = vunpack.c.l.b16 %v1887
        %v1974 = vunpack.c.l.b16 %v1888
        %v1975 = vunpack.c.l.b16 %v1889
        %v1976 = vunpack.c.l.b16 %v1890
        %v1977 = vunpack.c.l.b16 %v1891
        %v1978 = vunpack.c.l.b16 %v1892
        %v1979 = vunpack.c.l.b16 %v1893
        %v1980 = vunpack.c.l.b16 %v1894
        %v1981 = vunpack.c.l.b16 %v1895
        %v1982 = vunpack.c.l.b16 %v1896
        %v1983 = vunpack.c.l.b16 %v1897
        %v1984 = vunpack.c.l.b16 %v1898
        %v1985 = vunpack.c.l.b16 %v1899
        %v1986 = vpack.c.b16 %v1971, %v1970
        %v1987 = vpack.c.b16 %v1973, %v1972
        %v1988 = vpack.c.b16 %v1975, %v1974
        %v1989 = vpack.c.b16 %v1977, %v1976
        %v1990 = vpack.c.b16 %v1979, %v1978
        %v1991 = vpack.c.b16 %v1981, %v1980
        %v1992 = vpack.c.b16 %v1983, %v1982
        %v1993 = vpack.c.b16 %v1985, %v1984
        %2002 = vmatpush.bf16.xpose.msra.mxu0 %v1993
        %2003 = vmatpush.bf16.xpose.msra.mxu0 %v1992
        %2004 = vmatpush.bf16.xpose.msra.mxu0 %v1991
        %2005 = vmatpush.bf16.xpose.msra.mxu0 %v1990
        %2006 = vmatpush.bf16.xpose.msra.mxu0 %v1989
        %2007 = vmatpush.bf16.xpose.msra.mxu0 %v1988
        %2008 = vmatpush.bf16.xpose.msra.mxu0 %v1987
        %2009 = vmatpush.bf16.xpose.msra.mxu0 %v1986
        %2010 = vmatmul.bf16.gmra.mxu0 %v1952
        %v2011 = vpop.f32.mrf.mxu0
        %v2012 = vadd.f32 0.0, %v2011
        %v2013 = vpop.f32.mrf.mxu0
        %v2014 = vadd.f32 0.0, %v2013
        %2015 = vdwg.mxu0
        %v2018 = vunpack.c.l.b16 %v897
        %v2019 = vunpack.c.l.b16 %v898
        %v2020 = vpack.c.b16 %v2019, %v2018
        %v2038 = vunpack.c.l.b16 %v1900
        %v2039 = vunpack.c.l.b16 %v1901
        %v2040 = vunpack.c.l.b16 %v1902
        %v2041 = vunpack.c.l.b16 %v1903
        %v2042 = vunpack.c.l.b16 %v1904
        %v2043 = vunpack.c.l.b16 %v1905
        %v2044 = vunpack.c.l.b16 %v1906
        %v2045 = vunpack.c.l.b16 %v1907
        %v2046 = vunpack.c.l.b16 %v1908
        %v2047 = vunpack.c.l.b16 %v1909
        %v2048 = vunpack.c.l.b16 %v1910
        %v2049 = vunpack.c.l.b16 %v1911
        %v2050 = vunpack.c.l.b16 %v1912
        %v2051 = vunpack.c.l.b16 %v1913
        %v2052 = vunpack.c.l.b16 %v1914
        %v2053 = vunpack.c.l.b16 %v1915
        %v2054 = vpack.c.b16 %v2039, %v2038
        %v2055 = vpack.c.b16 %v2041, %v2040
        %v2056 = vpack.c.b16 %v2043, %v2042
        %v2057 = vpack.c.b16 %v2045, %v2044
        %v2058 = vpack.c.b16 %v2047, %v2046
        %v2059 = vpack.c.b16 %v2049, %v2048
        %v2060 = vpack.c.b16 %v2051, %v2050
        %v2061 = vpack.c.b16 %v2053, %v2052
        %2070 = vmatpush.bf16.xpose.msra.mxu0 %v2061
        %2071 = vmatpush.bf16.xpose.msra.mxu0 %v2060
        %2072 = vmatpush.bf16.xpose.msra.mxu0 %v2059
        %2073 = vmatpush.bf16.xpose.msra.mxu0 %v2058
        %2074 = vmatpush.bf16.xpose.msra.mxu0 %v2057
        %2075 = vmatpush.bf16.xpose.msra.mxu0 %v2056
        %2076 = vmatpush.bf16.xpose.msra.mxu0 %v2055
        %2077 = vmatpush.bf16.xpose.msra.mxu0 %v2054
        %2078 = vmatmul.bf16.gmra.mxu0 %v2020
        %v2079 = vpop.f32.mrf.mxu0
        %v2080 = vadd.f32 0.0, %v2079
        %v2081 = vpop.f32.mrf.mxu0
        %v2082 = vadd.f32 0.0, %v2081
        %2083 = vdwg.mxu0
        %v2086 = vunpack.c.l.b16 %v899
        %v2087 = vunpack.c.l.b16 %v900
        %v2088 = vpack.c.b16 %v2087, %v2086
        %v2106 = vunpack.c.l.b16 %v1916
        %v2107 = vunpack.c.l.b16 %v1917
        %v2108 = vunpack.c.l.b16 %v1918
        %v2109 = vunpack.c.l.b16 %v1919
        %v2110 = vunpack.c.l.b16 %v1920
        %v2111 = vunpack.c.l.b16 %v1921
        %v2112 = vunpack.c.l.b16 %v1922
        %v2113 = vunpack.c.l.b16 %v1923
        %v2114 = vunpack.c.l.b16 %v1924
        %v2115 = vunpack.c.l.b16 %v1925
        %v2116 = vunpack.c.l.b16 %v1926
        %v2117 = vunpack.c.l.b16 %v1927
        %v2118 = vunpack.c.l.b16 %v1928
        %v2119 = vunpack.c.l.b16 %v1929
        %v2120 = vunpack.c.l.b16 %v1930
        %v2121 = vunpack.c.l.b16 %v1931
        %v2122 = vpack.c.b16 %v2107, %v2106
        %v2123 = vpack.c.b16 %v2109, %v2108
        %v2124 = vpack.c.b16 %v2111, %v2110
        %v2125 = vpack.c.b16 %v2113, %v2112
        %v2126 = vpack.c.b16 %v2115, %v2114
        %v2127 = vpack.c.b16 %v2117, %v2116
        %v2128 = vpack.c.b16 %v2119, %v2118
        %v2129 = vpack.c.b16 %v2121, %v2120
        %2138 = vmatpush.bf16.xpose.msra.mxu0 %v2129
        %2139 = vmatpush.bf16.xpose.msra.mxu0 %v2128
        %2140 = vmatpush.bf16.xpose.msra.mxu0 %v2127
        %2141 = vmatpush.bf16.xpose.msra.mxu0 %v2126
        %2142 = vmatpush.bf16.xpose.msra.mxu0 %v2125
        %2143 = vmatpush.bf16.xpose.msra.mxu0 %v2124
        %2144 = vmatpush.bf16.xpose.msra.mxu0 %v2123
        %2145 = vmatpush.bf16.xpose.msra.mxu0 %v2122
        %2146 = vmatmul.bf16.gmra.mxu0 %v2088
        %v2147 = vpop.f32.mrf.mxu0
        %v2148 = vadd.f32 0.0, %v2147
        %v2149 = vpop.f32.mrf.mxu0
        %v2150 = vadd.f32 0.0, %v2149
        %2151 = vdwg.mxu0
        %v2154 = vunpack.c.l.b16 %v901
        %v2155 = vunpack.c.l.b16 %v902
        %v2156 = vpack.c.b16 %v2155, %v2154
        %v2174 = vunpack.c.l.b16 %v1932
        %v2175 = vunpack.c.l.b16 %v1933
        %v2176 = vunpack.c.l.b16 %v1934
        %v2177 = vunpack.c.l.b16 %v1935
        %v2178 = vunpack.c.l.b16 %v1936
        %v2179 = vunpack.c.l.b16 %v1937
        %v2180 = vunpack.c.l.b16 %v1938
        %v2181 = vunpack.c.l.b16 %v1939
        %v2182 = vunpack.c.l.b16 %v1940
        %v2183 = vunpack.c.l.b16 %v1941
        %v2184 = vunpack.c.l.b16 %v1942
        %v2185 = vunpack.c.l.b16 %v1943
        %v2186 = vunpack.c.l.b16 %v1944
        %v2187 = vunpack.c.l.b16 %v1945
        %v2188 = vunpack.c.l.b16 %v1946
        %v2189 = vunpack.c.l.b16 %v1947
        %v2190 = vpack.c.b16 %v2175, %v2174
        %v2191 = vpack.c.b16 %v2177, %v2176
        %v2192 = vpack.c.b16 %v2179, %v2178
        %v2193 = vpack.c.b16 %v2181, %v2180
        %v2194 = vpack.c.b16 %v2183, %v2182
        %v2195 = vpack.c.b16 %v2185, %v2184
        %v2196 = vpack.c.b16 %v2187, %v2186
        %v2197 = vpack.c.b16 %v2189, %v2188
        %2206 = vmatpush.bf16.xpose.msra.mxu0 %v2197
        %2207 = vmatpush.bf16.xpose.msra.mxu0 %v2196
        %2208 = vmatpush.bf16.xpose.msra.mxu0 %v2195
        %2209 = vmatpush.bf16.xpose.msra.mxu0 %v2194
        %2210 = vmatpush.bf16.xpose.msra.mxu0 %v2193
        %2211 = vmatpush.bf16.xpose.msra.mxu0 %v2192
        %2212 = vmatpush.bf16.xpose.msra.mxu0 %v2191
        %2213 = vmatpush.bf16.xpose.msra.mxu0 %v2190
        %2214 = vmatmul.bf16.gmra.mxu0 %v2156
        %v2215 = vpop.f32.mrf.mxu0
        %v2216 = vadd.f32 0.0, %v2215
        %v2217 = vpop.f32.mrf.mxu0
        %v2218 = vadd.f32 0.0, %v2217
        %2219 = vdwg.mxu0
        %v2220 = vpack.c.bf16 %v2014, %v2012
        %v2221 = vpack.c.bf16 %v2082, %v2080
        %v2222 = vpack.c.bf16 %v2150, %v2148
        %v2223 = vpack.c.bf16 %v2218, %v2216
        %v2224 = vld [vmem:[%s4] sm:$0xf]
        %v2225 = vld [vmem:[%s4 + $0x4] sm:$0xf]
        %v2226 = vld [vmem:[%s4 + $0x8] sm:$0xf]
        %v2227 = vld [vmem:[%s4 + $0xc] sm:$0xf]
        %v2228 = vld [vmem:[%s4 + $0x10] sm:$0xf]
        %v2229 = vld [vmem:[%s4 + $0x14] sm:$0xf]
        %v2230 = vld [vmem:[%s4 + $0x18] sm:$0xf]
        %v2231 = vld [vmem:[%s4 + $0x1c] sm:$0xf]
        %2232 = vset.pattern.permute.xlu0 4
        %2233 = vperm.xlu0 %2232, %v364
        %v2234 = vpop.permute.xlu0 %2233
        %2236 = vset.pattern.permute.xlu0 4
        %2237 = vperm.xlu0 %2236, %v365
        %v2238 = vpop.permute.xlu0 %2237
        %2240 = vset.pattern.permute.xlu0 4
        %2241 = vperm.xlu0 %2240, %v366
        %v2242 = vpop.permute.xlu0 %2241
        %2244 = vset.pattern.permute.xlu0 4
        %2245 = vperm.xlu0 %2244, %v367
        %v2246 = vpop.permute.xlu0 %2245
        %2248 = vset.pattern.permute.xlu0 4
        %2249 = vperm.xlu0 %2248, %v368
        %v2250 = vpop.permute.xlu0 %2249
        %2252 = vset.pattern.permute.xlu0 4
        %2253 = vperm.xlu0 %2252, %v369
        %v2254 = vpop.permute.xlu0 %2253
        %2256 = vset.pattern.permute.xlu0 4
        %2257 = vperm.xlu0 %2256, %v370
        %v2258 = vpop.permute.xlu0 %2257
        %2260 = vset.pattern.permute.xlu0 4
        %2261 = vperm.xlu0 %2260, %v371
        %v2262 = vpop.permute.xlu0 %2261
        %v2272 = vunpack.c.l.b16 %v2224
        %v2273 = vunpack.c.l.b16 %v2225
        %v2274 = vunpack.c.l.b16 %v2226
        %v2275 = vunpack.c.l.b16 %v2227
        %v2276 = vunpack.c.l.b16 %v2228
        %v2277 = vunpack.c.l.b16 %v2229
        %v2278 = vunpack.c.l.b16 %v2230
        %v2279 = vunpack.c.l.b16 %v2231
        %v2280 = vpack.c.b16 %v2273, %v2272
        %v2281 = vpack.c.b16 %v2275, %v2274
        %v2282 = vpack.c.b16 %v2277, %v2276
        %v2283 = vpack.c.b16 %v2279, %v2278
        %v2285 = vsel %vm773, %v2280, 0
        %v2288 = vsel %vm773, %v2281, 0
        %v2291 = vsel %vm773, %v2282, 0
        %v2294 = vsel %vm773, %v2283, 0
        %2296 = vmatpush.bf16.msra.mxu0 0
        %2297 = vmatpush.bf16.msra.mxu0 0
        %2298 = vmatpush.bf16.msra.mxu0 0
        %2299 = vmatpush.bf16.msra.mxu0 0
        %2300 = vmatpush.bf16.msra.mxu0 %v2223
        %2301 = vmatpush.bf16.msra.mxu0 %v2222
        %2302 = vmatpush.bf16.msra.mxu0 %v2221
        %2303 = vmatpush.bf16.msra.mxu0 %v2220
        %2304 = vmatmul.bf16.gmra.mxu0 %v2285
        %v2305 = vpop.f32.mrf.mxu0
        %v2306 = vadd.f32 %v2234, %v2305
        %v2307 = vpop.f32.mrf.mxu0
        %v2308 = vadd.f32 %v2238, %v2307
        %2309 = vmatmul.bf16.gmra.mxu0 %v2288
        %v2310 = vpop.f32.mrf.mxu0
        %v2311 = vadd.f32 %v2242, %v2310
        %v2312 = vpop.f32.mrf.mxu0
        %v2313 = vadd.f32 %v2246, %v2312
        %2314 = vmatmul.bf16.gmra.mxu0 %v2291
        %v2315 = vpop.f32.mrf.mxu0
        %v2316 = vadd.f32 %v2250, %v2315
        %v2317 = vpop.f32.mrf.mxu0
        %v2318 = vadd.f32 %v2254, %v2317
        %2319 = vmatmul.bf16.gmra.mxu0 %v2294
        %v2320 = vpop.f32.mrf.mxu0
        %v2321 = vadd.f32 %v2258, %v2320
        %v2322 = vpop.f32.mrf.mxu0
        %v2323 = vadd.f32 %v2262, %v2322
        %2324 = vdwg.mxu0
        %v2325 = vadd.f32 %v2306, %v356
        %v2326 = vadd.f32 %v2308, %v357
        %v2327 = vadd.f32 %v2311, %v358
        %v2328 = vadd.f32 %v2313, %v359
        %v2329 = vadd.f32 %v2316, %v360
        %v2330 = vadd.f32 %v2318, %v361
        %v2331 = vadd.f32 %v2321, %v362
        %v2332 = vadd.f32 %v2323, %v363
        %v2333 = vadd.f32 %v2325, %v2326
        %v2334 = vadd.f32 %v2333, %v2327
        %v2335 = vadd.f32 %v2334, %v2328
        %v2336 = vadd.f32 %v2335, %v2329
        %v2337 = vadd.f32 %v2336, %v2330
        %v2338 = vadd.f32 %v2337, %v2331
        %v2339 = vadd.f32 %v2338, %v2332
        %2340 = vadd.xlane.f32.xlu0 %v2339
        %v2341 = vpop.xlane.xlu0 %2340
        %v2342 = vrot.slane %v2341, 4
        %v2343 = vadd.f32 %v2341, %v2342
        %v2344 = vrot.slane %v2343, 2
        %v2345 = vadd.f32 %v2343, %v2344
        %v2346 = vrot.slane %v2345, 1
        %v2347 = vadd.f32 %v2345, %v2346
        %s2348 = vtos %v2347
        %v2349 = vstv %s2348
        %v2350 = vmul.f32 %v2349, %v395
        %v2351 = vmul.f32 %v2325, %v2325
        %v2352 = vmul.f32 %v2326, %v2326
        %v2353 = vmul.f32 %v2327, %v2327
        %v2354 = vmul.f32 %v2328, %v2328
        %v2355 = vmul.f32 %v2329, %v2329
        %v2356 = vmul.f32 %v2330, %v2330
        %v2357 = vmul.f32 %v2331, %v2331
        %v2358 = vmul.f32 %v2332, %v2332
        %v2359 = vadd.f32 %v2351, %v2352
        %v2360 = vadd.f32 %v2359, %v2353
        %v2361 = vadd.f32 %v2360, %v2354
        %v2362 = vadd.f32 %v2361, %v2355
        %v2363 = vadd.f32 %v2362, %v2356
        %v2364 = vadd.f32 %v2363, %v2357
        %v2365 = vadd.f32 %v2364, %v2358
        %2366 = vadd.xlane.f32.xlu0 %v2365
        %v2367 = vpop.xlane.xlu0 %2366
        %v2368 = vrot.slane %v2367, 4
        %v2369 = vadd.f32 %v2367, %v2368
        %v2370 = vrot.slane %v2369, 2
        %v2371 = vadd.f32 %v2369, %v2370
        %v2372 = vrot.slane %v2371, 1
        %v2373 = vadd.f32 %v2371, %v2372
        %s2374 = vtos %v2373
        %v2375 = vstv %s2374
        %v2376 = vmul.f32 %v2375, %v395
        %v2377 = vmul.f32 %v2350, %v2350
        %v2378 = vsub.f32 %v2376, %v2377
        %v2379 = vmax.f32 %v2378, 0.0
        %v2380 = vsub.f32 %v2325, %v2350
        %v2381 = vsub.f32 %v2326, %v2350
        %v2382 = vsub.f32 %v2327, %v2350
        %v2383 = vsub.f32 %v2328, %v2350
        %v2384 = vsub.f32 %v2329, %v2350
        %v2385 = vsub.f32 %v2330, %v2350
        %v2386 = vsub.f32 %v2331, %v2350
        %v2387 = vsub.f32 %v2332, %v2350
        %v2388 = vadd.f32 %v2379, 1e-08
        %v2389 = vrsqrt.pop %v2388
        %v2390 = vmul.f32 %v2389, %v2388
        %v2391 = vmul.f32 %v2390, %v2389
        %v2392 = vmul.f32 0.5, %v2391
        %v2393 = vsub.f32 1.5, %v2392
        %v2394 = vmul.f32 %v2389, %v2393
        %vm2395 = vweird.f32 %v2388
        %vm2396 = vweird.f32 %v2389
        %vm2397 = vmor %vm2395, %vm2396
        %v2398 = vsel %vm2397, %v2389, %v2394
        %v2399 = vmul.f32 %v2380, %v2398
        %v2400 = vmul.f32 %v2381, %v2398
        %v2401 = vmul.f32 %v2382, %v2398
        %v2402 = vmul.f32 %v2383, %v2398
        %v2403 = vmul.f32 %v2384, %v2398
        %v2404 = vmul.f32 %v2385, %v2398
        %v2405 = vmul.f32 %v2386, %v2398
        %v2406 = vmul.f32 %v2387, %v2398
        %2407 = vset.pattern.permute.xlu0 2
        %2408 = vperm.xlu0 %2407, %v364
        %v2409 = vpop.permute.xlu0 %2408
        %2411 = vset.pattern.permute.xlu0 2
        %2412 = vperm.xlu0 %2411, %v365
        %v2413 = vpop.permute.xlu0 %2412
        %2415 = vset.pattern.permute.xlu0 2
        %2416 = vperm.xlu0 %2415, %v366
        %v2417 = vpop.permute.xlu0 %2416
        %2419 = vset.pattern.permute.xlu0 2
        %2420 = vperm.xlu0 %2419, %v367
        %v2421 = vpop.permute.xlu0 %2420
        %2423 = vset.pattern.permute.xlu0 2
        %2424 = vperm.xlu0 %2423, %v368
        %v2425 = vpop.permute.xlu0 %2424
        %2427 = vset.pattern.permute.xlu0 2
        %2428 = vperm.xlu0 %2427, %v369
        %v2429 = vpop.permute.xlu0 %2428
        %2431 = vset.pattern.permute.xlu0 2
        %2432 = vperm.xlu0 %2431, %v370
        %v2433 = vpop.permute.xlu0 %2432
        %2435 = vset.pattern.permute.xlu0 2
        %2436 = vperm.xlu0 %2435, %v371
        %v2437 = vpop.permute.xlu0 %2436
        %v2439 = vmul.f32 %v2399, %v2409
        %v2440 = vmul.f32 %v2400, %v2413
        %v2441 = vmul.f32 %v2401, %v2417
        %v2442 = vmul.f32 %v2402, %v2421
        %v2443 = vmul.f32 %v2403, %v2425
        %v2444 = vmul.f32 %v2404, %v2429
        %v2445 = vmul.f32 %v2405, %v2433
        %v2446 = vmul.f32 %v2406, %v2437
        %2447 = vset.pattern.permute.xlu0 3
        %2448 = vperm.xlu0 %2447, %v364
        %v2449 = vpop.permute.xlu0 %2448
        %2451 = vset.pattern.permute.xlu0 3
        %2452 = vperm.xlu0 %2451, %v365
        %v2453 = vpop.permute.xlu0 %2452
        %2455 = vset.pattern.permute.xlu0 3
        %2456 = vperm.xlu0 %2455, %v366
        %v2457 = vpop.permute.xlu0 %2456
        %2459 = vset.pattern.permute.xlu0 3
        %2460 = vperm.xlu0 %2459, %v367
        %v2461 = vpop.permute.xlu0 %2460
        %2463 = vset.pattern.permute.xlu0 3
        %2464 = vperm.xlu0 %2463, %v368
        %v2465 = vpop.permute.xlu0 %2464
        %2467 = vset.pattern.permute.xlu0 3
        %2468 = vperm.xlu0 %2467, %v369
        %v2469 = vpop.permute.xlu0 %2468
        %2471 = vset.pattern.permute.xlu0 3
        %2472 = vperm.xlu0 %2471, %v370
        %v2473 = vpop.permute.xlu0 %2472
        %2475 = vset.pattern.permute.xlu0 3
        %2476 = vperm.xlu0 %2475, %v371
        %v2477 = vpop.permute.xlu0 %2476
        %v2479 = vadd.f32 %v2439, %v2449
        %v2480 = vadd.f32 %v2440, %v2453
        %v2481 = vadd.f32 %v2441, %v2457
        %v2482 = vadd.f32 %v2442, %v2461
        %v2483 = vadd.f32 %v2443, %v2465
        %v2484 = vadd.f32 %v2444, %v2469
        %v2485 = vadd.f32 %v2445, %v2473
        %v2486 = vadd.f32 %v2446, %v2477
        %v2487 = vpack.c.bf16 %v2480, %v2479
        %v2488 = vpack.c.bf16 %v2482, %v2481
        %v2489 = vpack.c.bf16 %v2484, %v2483
        %v2490 = vpack.c.bf16 %v2486, %v2485
        %v2491 = vld [vmem:[%s6] sm:$0xf]
        %v2492 = vld [vmem:[%s6 + $0x4] sm:$0xf]
        %v2493 = vld [vmem:[%s6 + $0x8] sm:$0xf]
        %v2494 = vld [vmem:[%s6 + $0xc] sm:$0xf]
        %v2495 = vld [vmem:[%s6 + $0x10] sm:$0xf]
        %v2496 = vld [vmem:[%s6 + $0x14] sm:$0xf]
        %v2497 = vld [vmem:[%s6 + $0x18] sm:$0xf]
        %v2498 = vld [vmem:[%s6 + $0x1c] sm:$0xf]
        %v2499 = vld [vmem:[%s6 + $0x20] sm:$0xf]
        %v2500 = vld [vmem:[%s6 + $0x24] sm:$0xf]
        %v2501 = vld [vmem:[%s6 + $0x28] sm:$0xf]
        %v2502 = vld [vmem:[%s6 + $0x2c] sm:$0xf]
        %v2503 = vld [vmem:[%s6 + $0x30] sm:$0xf]
        %v2504 = vld [vmem:[%s6 + $0x34] sm:$0xf]
        %v2505 = vld [vmem:[%s6 + $0x38] sm:$0xf]
        %v2506 = vld [vmem:[%s6 + $0x3c] sm:$0xf]
        %v2507 = vld [vmem:[%s7] sm:$0xff]
        %v2508 = vld [vmem:[%s7 + $0x8] sm:$0xff]
        %v2509 = vld [vmem:[%s7 + $0x10] sm:$0xff]
        %v2510 = vld [vmem:[%s7 + $0x18] sm:$0xff]
        %v2511 = vld [vmem:[%s7 + $0x20] sm:$0xff]
        %v2512 = vld [vmem:[%s7 + $0x28] sm:$0xff]
        %v2513 = vld [vmem:[%s7 + $0x30] sm:$0xff]
        %v2514 = vld [vmem:[%s7 + $0x38] sm:$0xff]
        %v2515 = vld [vmem:[%s7 + $0x40] sm:$0xff]
        %v2516 = vld [vmem:[%s7 + $0x48] sm:$0xff]
        %v2517 = vld [vmem:[%s7 + $0x50] sm:$0xff]
        %v2518 = vld [vmem:[%s7 + $0x58] sm:$0xff]
        %v2519 = vld [vmem:[%s7 + $0x60] sm:$0xff]
        %v2520 = vld [vmem:[%s7 + $0x68] sm:$0xff]
        %v2521 = vld [vmem:[%s7 + $0x70] sm:$0xff]
        %v2522 = vld [vmem:[%s7 + $0x78] sm:$0xff]
        %2524 = vset.pattern.permute.xlu0 0
        %2525 = vperm.xlu0 %2524, %v2507
        %v2526 = vpop.permute.xlu0 %2525
        %2529 = vset.pattern.permute.xlu0 0
        %2530 = vperm.xlu0 %2529, %v2508
        %v2531 = vpop.permute.xlu0 %2530
        %2534 = vset.pattern.permute.xlu0 0
        %2535 = vperm.xlu0 %2534, %v2509
        %v2536 = vpop.permute.xlu0 %2535
        %2539 = vset.pattern.permute.xlu0 0
        %2540 = vperm.xlu0 %2539, %v2510
        %v2541 = vpop.permute.xlu0 %2540
        %2544 = vset.pattern.permute.xlu0 0
        %2545 = vperm.xlu0 %2544, %v2511
        %v2546 = vpop.permute.xlu0 %2545
        %2549 = vset.pattern.permute.xlu0 0
        %2550 = vperm.xlu0 %2549, %v2512
        %v2551 = vpop.permute.xlu0 %2550
        %2554 = vset.pattern.permute.xlu0 0
        %2555 = vperm.xlu0 %2554, %v2513
        %v2556 = vpop.permute.xlu0 %2555
        %2559 = vset.pattern.permute.xlu0 0
        %2560 = vperm.xlu0 %2559, %v2514
        %v2561 = vpop.permute.xlu0 %2560
        %2564 = vset.pattern.permute.xlu0 0
        %2565 = vperm.xlu0 %2564, %v2515
        %v2566 = vpop.permute.xlu0 %2565
        %2569 = vset.pattern.permute.xlu0 0
        %2570 = vperm.xlu0 %2569, %v2516
        %v2571 = vpop.permute.xlu0 %2570
        %2574 = vset.pattern.permute.xlu0 0
        %2575 = vperm.xlu0 %2574, %v2517
        %v2576 = vpop.permute.xlu0 %2575
        %2579 = vset.pattern.permute.xlu0 0
        %2580 = vperm.xlu0 %2579, %v2518
        %v2581 = vpop.permute.xlu0 %2580
        %2584 = vset.pattern.permute.xlu0 0
        %2585 = vperm.xlu0 %2584, %v2519
        %v2586 = vpop.permute.xlu0 %2585
        %2589 = vset.pattern.permute.xlu0 0
        %2590 = vperm.xlu0 %2589, %v2520
        %v2591 = vpop.permute.xlu0 %2590
        %2594 = vset.pattern.permute.xlu0 0
        %2595 = vperm.xlu0 %2594, %v2521
        %v2596 = vpop.permute.xlu0 %2595
        %2599 = vset.pattern.permute.xlu0 0
        %2600 = vperm.xlu0 %2599, %v2522
        %v2601 = vpop.permute.xlu0 %2600
        %v2619 = vunpack.c.l.b16 %v2491
        %v2620 = vunpack.c.l.b16 %v2492
        %v2621 = vunpack.c.l.b16 %v2493
        %v2622 = vunpack.c.l.b16 %v2494
        %v2623 = vunpack.c.l.b16 %v2495
        %v2624 = vunpack.c.l.b16 %v2496
        %v2625 = vunpack.c.l.b16 %v2497
        %v2626 = vunpack.c.l.b16 %v2498
        %v2627 = vunpack.c.l.b16 %v2499
        %v2628 = vunpack.c.l.b16 %v2500
        %v2629 = vunpack.c.l.b16 %v2501
        %v2630 = vunpack.c.l.b16 %v2502
        %v2631 = vunpack.c.l.b16 %v2503
        %v2632 = vunpack.c.l.b16 %v2504
        %v2633 = vunpack.c.l.b16 %v2505
        %v2634 = vunpack.c.l.b16 %v2506
        %v2635 = vpack.c.b16 %v2620, %v2619
        %v2636 = vpack.c.b16 %v2622, %v2621
        %v2637 = vpack.c.b16 %v2624, %v2623
        %v2638 = vpack.c.b16 %v2626, %v2625
        %v2639 = vpack.c.b16 %v2628, %v2627
        %v2640 = vpack.c.b16 %v2630, %v2629
        %v2641 = vpack.c.b16 %v2632, %v2631
        %v2642 = vpack.c.b16 %v2634, %v2633
        %v2644 = vsel %vm773, %v2635, 0
        %v2647 = vsel %vm773, %v2636, 0
        %v2650 = vsel %vm773, %v2637, 0
        %v2653 = vsel %vm773, %v2638, 0
        %v2656 = vsel %vm773, %v2639, 0
        %v2659 = vsel %vm773, %v2640, 0
        %v2662 = vsel %vm773, %v2641, 0
        %v2665 = vsel %vm773, %v2642, 0
        %2667 = vmatpush.bf16.msra.mxu0 0
        %2668 = vmatpush.bf16.msra.mxu0 0
        %2669 = vmatpush.bf16.msra.mxu0 0
        %2670 = vmatpush.bf16.msra.mxu0 0
        %2671 = vmatpush.bf16.msra.mxu0 %v2490
        %2672 = vmatpush.bf16.msra.mxu0 %v2489
        %2673 = vmatpush.bf16.msra.mxu0 %v2488
        %2674 = vmatpush.bf16.msra.mxu0 %v2487
        %2675 = vmatmul.bf16.gmra.mxu0 %v2644
        %v2676 = vpop.f32.mrf.mxu0
        %v2677 = vadd.f32 %v2526, %v2676
        %v2678 = vpop.f32.mrf.mxu0
        %v2679 = vadd.f32 %v2531, %v2678
        %2680 = vmatmul.bf16.gmra.mxu0 %v2647
        %v2681 = vpop.f32.mrf.mxu0
        %v2682 = vadd.f32 %v2536, %v2681
        %v2683 = vpop.f32.mrf.mxu0
        %v2684 = vadd.f32 %v2541, %v2683
        %2685 = vmatmul.bf16.gmra.mxu0 %v2650
        %v2686 = vpop.f32.mrf.mxu0
        %v2687 = vadd.f32 %v2546, %v2686
        %v2688 = vpop.f32.mrf.mxu0
        %v2689 = vadd.f32 %v2551, %v2688
        %2690 = vmatmul.bf16.gmra.mxu0 %v2653
        %v2691 = vpop.f32.mrf.mxu0
        %v2692 = vadd.f32 %v2556, %v2691
        %v2693 = vpop.f32.mrf.mxu0
        %v2694 = vadd.f32 %v2561, %v2693
        %2695 = vmatmul.bf16.gmra.mxu0 %v2656
        %v2696 = vpop.f32.mrf.mxu0
        %v2697 = vadd.f32 %v2566, %v2696
        %v2698 = vpop.f32.mrf.mxu0
        %v2699 = vadd.f32 %v2571, %v2698
        %2700 = vmatmul.bf16.gmra.mxu0 %v2659
        %v2701 = vpop.f32.mrf.mxu0
        %v2702 = vadd.f32 %v2576, %v2701
        %v2703 = vpop.f32.mrf.mxu0
        %v2704 = vadd.f32 %v2581, %v2703
        %2705 = vmatmul.bf16.gmra.mxu0 %v2662
        %v2706 = vpop.f32.mrf.mxu0
        %v2707 = vadd.f32 %v2586, %v2706
        %v2708 = vpop.f32.mrf.mxu0
        %v2709 = vadd.f32 %v2591, %v2708
        %2710 = vmatmul.bf16.gmra.mxu0 %v2665
        %v2711 = vpop.f32.mrf.mxu0
        %v2712 = vadd.f32 %v2596, %v2711
        %v2713 = vpop.f32.mrf.mxu0
        %v2714 = vadd.f32 %v2601, %v2713
        %2715 = vdwg.mxu0
        %v2716 = vmax.f32 %v2677, 0.0
        %v2717 = vmax.f32 %v2679, 0.0
        %v2718 = vmax.f32 %v2682, 0.0
        %v2719 = vmax.f32 %v2684, 0.0
        %v2720 = vmax.f32 %v2687, 0.0
        %v2721 = vmax.f32 %v2689, 0.0
        %v2722 = vmax.f32 %v2692, 0.0
        %v2723 = vmax.f32 %v2694, 0.0
        %v2724 = vmax.f32 %v2697, 0.0
        %v2725 = vmax.f32 %v2699, 0.0
        %v2726 = vmax.f32 %v2702, 0.0
        %v2727 = vmax.f32 %v2704, 0.0
        %v2728 = vmax.f32 %v2707, 0.0
        %v2729 = vmax.f32 %v2709, 0.0
        %v2730 = vmax.f32 %v2712, 0.0
        %v2731 = vmax.f32 %v2714, 0.0
        %v2732 = vpack.c.bf16 %v2717, %v2716
        %v2733 = vpack.c.bf16 %v2719, %v2718
        %v2734 = vpack.c.bf16 %v2721, %v2720
        %v2735 = vpack.c.bf16 %v2723, %v2722
        %v2736 = vpack.c.bf16 %v2725, %v2724
        %v2737 = vpack.c.bf16 %v2727, %v2726
        %v2738 = vpack.c.bf16 %v2729, %v2728
        %v2739 = vpack.c.bf16 %v2731, %v2730
        %v2740 = vld [vmem:[%s8] sm:$0xf]
        %v2741 = vld [vmem:[%s8 + $0x4] sm:$0xf]
        %v2742 = vld [vmem:[%s8 + $0x8] sm:$0xf]
        %v2743 = vld [vmem:[%s8 + $0xc] sm:$0xf]
        %v2744 = vld [vmem:[%s8 + $0x10] sm:$0xf]
        %v2745 = vld [vmem:[%s8 + $0x14] sm:$0xf]
        %v2746 = vld [vmem:[%s8 + $0x18] sm:$0xf]
        %v2747 = vld [vmem:[%s8 + $0x1c] sm:$0xf]
        %2748 = vset.pattern.permute.xlu0 5
        %2749 = vperm.xlu0 %2748, %v364
        %v2750 = vpop.permute.xlu0 %2749
        %2752 = vset.pattern.permute.xlu0 5
        %2753 = vperm.xlu0 %2752, %v365
        %v2754 = vpop.permute.xlu0 %2753
        %2756 = vset.pattern.permute.xlu0 5
        %2757 = vperm.xlu0 %2756, %v366
        %v2758 = vpop.permute.xlu0 %2757
        %2760 = vset.pattern.permute.xlu0 5
        %2761 = vperm.xlu0 %2760, %v367
        %v2762 = vpop.permute.xlu0 %2761
        %2764 = vset.pattern.permute.xlu0 5
        %2765 = vperm.xlu0 %2764, %v368
        %v2766 = vpop.permute.xlu0 %2765
        %2768 = vset.pattern.permute.xlu0 5
        %2769 = vperm.xlu0 %2768, %v369
        %v2770 = vpop.permute.xlu0 %2769
        %2772 = vset.pattern.permute.xlu0 5
        %2773 = vperm.xlu0 %2772, %v370
        %v2774 = vpop.permute.xlu0 %2773
        %2776 = vset.pattern.permute.xlu0 5
        %2777 = vperm.xlu0 %2776, %v371
        %v2778 = vpop.permute.xlu0 %2777
        %v2788 = vunpack.c.l.b16 %v2740
        %v2789 = vunpack.c.l.b16 %v2741
        %v2790 = vunpack.c.l.b16 %v2742
        %v2791 = vunpack.c.l.b16 %v2743
        %v2792 = vunpack.c.l.b16 %v2744
        %v2793 = vunpack.c.l.b16 %v2745
        %v2794 = vunpack.c.l.b16 %v2746
        %v2795 = vunpack.c.l.b16 %v2747
        %v2796 = vpack.c.b16 %v2789, %v2788
        %v2797 = vpack.c.b16 %v2791, %v2790
        %v2798 = vpack.c.b16 %v2793, %v2792
        %v2799 = vpack.c.b16 %v2795, %v2794
        %2804 = vmatpush.bf16.msra.mxu0 %v2739
        %2805 = vmatpush.bf16.msra.mxu0 %v2738
        %2806 = vmatpush.bf16.msra.mxu0 %v2737
        %2807 = vmatpush.bf16.msra.mxu0 %v2736
        %2808 = vmatpush.bf16.msra.mxu0 %v2735
        %2809 = vmatpush.bf16.msra.mxu0 %v2734
        %2810 = vmatpush.bf16.msra.mxu0 %v2733
        %2811 = vmatpush.bf16.msra.mxu0 %v2732
        %2812 = vmatmul.bf16.gmra.mxu0 %v2796
        %v2813 = vpop.f32.mrf.mxu0
        %v2814 = vadd.f32 %v2750, %v2813
        %v2815 = vpop.f32.mrf.mxu0
        %v2816 = vadd.f32 %v2754, %v2815
        %2817 = vmatmul.bf16.gmra.mxu0 %v2797
        %v2818 = vpop.f32.mrf.mxu0
        %v2819 = vadd.f32 %v2758, %v2818
        %v2820 = vpop.f32.mrf.mxu0
        %v2821 = vadd.f32 %v2762, %v2820
        %2822 = vmatmul.bf16.gmra.mxu0 %v2798
        %v2823 = vpop.f32.mrf.mxu0
        %v2824 = vadd.f32 %v2766, %v2823
        %v2825 = vpop.f32.mrf.mxu0
        %v2826 = vadd.f32 %v2770, %v2825
        %2827 = vmatmul.bf16.gmra.mxu0 %v2799
        %v2828 = vpop.f32.mrf.mxu0
        %v2829 = vadd.f32 %v2774, %v2828
        %v2830 = vpop.f32.mrf.mxu0
        %v2831 = vadd.f32 %v2778, %v2830
        %2832 = vdwg.mxu0
        %v2833 = vadd.f32 %v2814, %v2325
        %v2834 = vadd.f32 %v2816, %v2326
        %v2835 = vadd.f32 %v2819, %v2327
        %v2836 = vadd.f32 %v2821, %v2328
        %v2837 = vadd.f32 %v2824, %v2329
        %v2838 = vadd.f32 %v2826, %v2330
        %v2839 = vadd.f32 %v2829, %v2331
        %v2840 = vadd.f32 %v2831, %v2332
        %v2841 = vadd.f32 %v2833, %v340
        %v2842 = vadd.f32 %v2834, %v341
        %v2843 = vadd.f32 %v2835, %v342
        %v2844 = vadd.f32 %v2836, %v343
        %v2845 = vadd.f32 %v2837, %v344
        %v2846 = vadd.f32 %v2838, %v345
        %v2847 = vadd.f32 %v2839, %v346
        %v2848 = vadd.f32 %v2840, %v347
        %v2849 = vpack.c.bf16 %v2841, %v2841
        %v2850 = vpack.c.bf16 %v2842, %v2842
        %v2851 = vpack.c.bf16 %v2843, %v2843
        %v2852 = vpack.c.bf16 %v2844, %v2844
        %v2853 = vpack.c.bf16 %v2845, %v2845
        %v2854 = vpack.c.bf16 %v2846, %v2846
        %v2855 = vpack.c.bf16 %v2847, %v2847
        %v2856 = vpack.c.bf16 %v2848, %v2848
        %2857 = vst [vmem:[%s325] sm:$0xf] %v2849
        %2858 = vst [vmem:[%s325 + $0x4] sm:$0xf] %v2850
        %2859 = vst [vmem:[%s325 + $0x8] sm:$0xf] %v2851
        %2860 = vst [vmem:[%s325 + $0xc] sm:$0xf] %v2852
        %2861 = vst [vmem:[%s325 + $0x10] sm:$0xf] %v2853
        %2862 = vst [vmem:[%s325 + $0x14] sm:$0xf] %v2854
        %2863 = vst [vmem:[%s325 + $0x18] sm:$0xf] %v2855
        %2864 = vst [vmem:[%s325 + $0x1c] sm:$0xf] %v2856
        %s2865 = sand.u32 %s225, 1
        %s2866 = scalar_lea.sflag [#allocation3], %s2865
        %s2867 = sand.u32 %s225, 1
        %s2868 = smul.addr %s2867, 32
        %s2869 = scalar_lea.vmem [#allocation2], %s2868
        // Predicated region
        $region57: #{tpu_custom_call.1} parent=55 // pred_check
          %p2870 = pneg %p235
        $region58: #{tpu_custom_call.1} parent=55 // pred_check_branch
          %2872 = sbr.rel (%p2870) target = $region60
        $region59: #{tpu_custom_call.1} parent=55 // pred_region
          %2874 = vsyncadd %s2866, 0
          %s2875 = smul.addr %s23, 8
          %s2876 = smul.addr %s2875, 4
          %s2877 = scalar_lea.hbm %s9, %s2876
          %s2878 = sshll.u32 %s2869, 4
          %s2879 = int_to_ptr.vmem [resolvable:$true] %s2878
          %s2880 = sshll.u32 %s2877, 4
          %s2881 = int_to_ptr.hbm [resolvable:$true] %s2880
          %2886 = dma.vmem_to_hbm [thread:$0]  %s2879, 512, %s2881, %s2866, 64, 64, 4
        $region60: #{tpu_custom_call.1} parent=55 // pred_fallthru
          _
      $region56: #{tpu_custom_call.1} parent=5 // pred_fallthru
        _
      %p2887 = scmp.le.s32.totalorder 2, %s18
      // Predicated region
      $region61: #{tpu_custom_call.1} parent=5 // pred_check
        %p2888 = pneg %p2887
      $region62: #{tpu_custom_call.1} parent=5 // pred_check_branch
        %2890 = sbr.rel (%p2888) target = $region64
      $region63: #{tpu_custom_call.1} parent=5 // pred_region
        %s2891 = ssub.s32 %s18, 2
        // Predicated region
        $region65: #{tpu_custom_call.1} parent=63 // pred_check
          %p2892 = pneg %p241
        $region66: #{tpu_custom_call.1} parent=63 // pred_check_branch
          %2894 = sbr.rel (%p2892) target = $region68
        $region67: #{tpu_custom_call.1} parent=63 // pred_region
          %s2895 = sand.u32 %s226, 1
          %s2896 = scalar_lea.sflag [#allocation3], %s2895
          %s2897 = sand.u32 %s226, 1
          %s2898 = smul.addr %s2897, 32
          %s2899 = scalar_lea.vmem [#allocation2], %s2898
          %2901 = dma.done %s2896, 512
        $region68: #{tpu_custom_call.1} parent=63 // pred_fallthru
          _
      $region64: #{tpu_custom_call.1} parent=5 // pred_fallthru
        _
    $region6: #{tpu_custom_call.1} parent=1 // loop_footer
      %s22 = sadd.s32 1, %s18
    $region7: #{tpu_custom_call.1} parent=1 // loop_footer_branch
      %17 = sbr.rel target = $region3
    $region8: #{tpu_custom_call.1} parent=1 // loop_exit
      _
    %2902 = vsyncpa [#allocation3], 1
    %s2903 = scalar_lea.sflag [#allocation3], 1
    %2904 = vsyncpa %s2903, 1

</llo_original>
